<compile_context>
chip_gen: v6e
topology: v6e:2x2x1
jax: 0.10.0
libtpu: 0.0.40
codegen_flags: <defaults>
</compile_context>

<pallas_src>
import functools

import jax
import jax.numpy as jnp
from jax import lax
from jax.experimental import pallas as pl
from jax.experimental.pallas import tpu as pltpu

DILATIONS = (1, 2, 4, 8)


def _msff_kernel(xp_ref, w_ref, b_ref, o_ref, *, H, W, Cin, Cout, pad):
    # xp_ref: (1, Cin, Hp, Wp)   zero-padded NCHW input (one batch element)
    # w_ref : (4*Cout, 9*Cin)    packed weights, row = (branch, out-ch), col = (tap, in-ch)
    # b_ref : (4*Cout, 1)        packed bias
    # o_ref : (1, 4*Cout, H*W)   lane-dense concatenated ReLU(conv) outputs
    xp = xp_ref[0]          # (Cin, Hp, Wp)
    HW = H * W

    for bi, dil in enumerate(DILATIONS):
        # Build the im2col patch for this dilation: rows ordered (tap, cin) to
        # match the packed weight layout.
        taps = []
        for ky in range(3):
            for kx in range(3):
                dy = pad + (ky - 1) * dil
                dx = pad + (kx - 1) * dil
                win = lax.slice(xp, (0, dy, dx), (Cin, dy + H, dx + W))  # (Cin, H, W)
                taps.append(win.reshape(Cin, HW))
        patch = jnp.concatenate(taps, axis=0)                            # (9*Cin, HW)

        wb = w_ref[bi * Cout:(bi + 1) * Cout, :]                         # (Cout, 9*Cin)
        bb = b_ref[bi * Cout:(bi + 1) * Cout, :]                         # (Cout, 1)

        # One fat matmul per branch (K = 9*Cin) instead of 9 tiny K=Cin taps.
        acc = jnp.dot(wb, patch, preferred_element_type=jnp.float32)     # (Cout, HW)
        acc = jnp.maximum(acc + bb, 0.0)                                 # fused bias + ReLU

        # Stream the branch straight into its sublane-aligned output slice.
        o_ref[0, bi * Cout:(bi + 1) * Cout, :] = acc.astype(o_ref.dtype)


def multi_scale_feature_fusion(x_nchw, weights, biases):
    """weights: (4, Cout, Cin, 3, 3) OIHW per branch; biases: (4, Cout)."""
    N, Cin, H, W = x_nchw.shape
    Cout = weights.shape[1]
    pad = max(DILATIONS)
    Hp, Wp = H + 2 * pad, W + 2 * pad

    # Zero-pad once by the largest dilation (covers all branches); stays NCHW.
    xp = jnp.pad(x_nchw, ((0, 0), (0, 0), (pad, pad), (pad, pad)))

    # (4, Cout, Cin, 3, 3) -> (4*Cout, 9*Cin): col index = (ky*3 + kx)*Cin + ci.
    w2d = jnp.transpose(weights, (0, 1, 3, 4, 2)).reshape(4 * Cout, 9 * Cin)
    b2d = biases.reshape(4 * Cout, 1)

    kernel = functools.partial(_msff_kernel, H=H, W=W, Cin=Cin, Cout=Cout, pad=pad)

    out_flat = pl.pallas_call(
        kernel,
        out_shape=jax.ShapeDtypeStruct((N, 4 * Cout, H * W), x_nchw.dtype),
        grid_spec=pltpu.PrefetchScalarGridSpec(
            num_scalar_prefetch=0,
            grid=(N,),
            in_specs=[
                pl.BlockSpec((1, Cin, Hp, Wp), lambda n: (n, 0, 0, 0)),
                pl.BlockSpec((4 * Cout, 9 * Cin), lambda n: (0, 0)),
                pl.BlockSpec((4 * Cout, 1), lambda n: (0, 0)),
            ],
            out_specs=pl.BlockSpec((1, 4 * Cout, H * W), lambda n: (n, 0, 0)),
        ),
        compiler_params=pltpu.CompilerParams(
            dimension_semantics=("parallel",),
        ),
    )(xp, w2d, b2d)

    # Free reshape back to the PyTorch NCHW output convention (no transpose).
    return out_flat.reshape(N, 4 * Cout, H, W)


def _reference(x_nchw, weights, biases):
    outs = []
    for bi, dil in enumerate(DILATIONS):
        y = lax.conv_general_dilated(
            x_nchw, weights[bi],
            window_strides=(1, 1),
            padding=((dil, dil), (dil, dil)),
            rhs_dilation=(dil, dil),
            dimension_numbers=("NCHW", "OIHW", "NCHW"),
        )
        y = y + biases[bi][None, :, None, None]
        outs.append(jnp.maximum(y, 0.0))
    return jnp.concatenate(outs, axis=1)


if __name__ == "__main__":
    N, Cin, H, W = 2, 4, 16, 16
    Cout = 8

    key = jax.random.PRNGKey(0)
    kx, kw, kb = jax.random.split(key, 3)
    x = jax.random.normal(kx, (N, Cin, H, W), dtype=jnp.float32)
    # Deterministic synthetic parameters (Conv2d weight shape: (Cout, Cin, 3, 3) per branch).
    fan_in = Cin * 3 * 3
    bound = 1.0 / (fan_in ** 0.5)
    weights = jax.random.uniform(kw, (4, Cout, Cin, 3, 3), jnp.float32, -bound, bound)
    biases = jax.random.uniform(kb, (4, Cout), jnp.float32, -bound, bound)

    out = multi_scale_feature_fusion(x, weights, biases)
    out = jax.block_until_ready(out)

    ref = jax.block_until_ready(_reference(x, weights, biases))
    assert out.shape == (N, 4 * Cout, H, W), out.shape
    assert jnp.allclose(out, ref, atol=1e-4, rtol=1e-4), float(jnp.max(jnp.abs(out - ref)))

    print("KERNEL_OK")
</pallas_src>

<mosaic_0001>
module attributes {stable_mosaic.version = 11 : i64} {
  func.func @_msff_kernel(%arg0: i32, %arg1: memref<1x4x32x32xf32, #tpu.memory_space<vmem>>, %arg2: memref<32x36xf32, #tpu.memory_space<vmem>>, %arg3: memref<32x1xf32, #tpu.memory_space<vmem>>, %arg4: memref<1x32x256xf32, #tpu.memory_space<vmem>>) attributes {dimension_semantics = [#tpu.dimension_semantics<parallel>], iteration_bounds = array<i64: 2>, scalar_prefetch = 0 : i64, scratch_operands = 0 : i64, tpu.core_type = #tpu.core_type<tc>, window_params = [{transform_indices = @transform_0, window_bounds = array<i64: 1, 4, 32, 32>}, {pipeline_mode = #tpu.pipeline_mode<synchronous>, transform_indices = @transform_1, window_bounds = array<i64: 32, 36>}, {pipeline_mode = #tpu.pipeline_mode<synchronous>, transform_indices = @transform_2, window_bounds = array<i64: 32, 1>}, {transform_indices = @transform_3, window_bounds = array<i64: 1, 32, 256>}]} {
    %c0 = arith.constant 0 : index
    %c0_0 = arith.constant 0 : index
    %c0_1 = arith.constant 0 : index
    %c0_2 = arith.constant 0 : index
    %0 = vector.load %arg1[%c0, %c0_0, %c0_1, %c0_2] : memref<1x4x32x32xf32, #tpu.memory_space<vmem>>, vector<1x4x32x32xf32>
    %1 = vector.shape_cast %0 : vector<1x4x32x32xf32> to vector<4x32x32xf32>
    %2 = vector.extract_strided_slice %1 {offsets = [0, 7, 7], sizes = [4, 16, 16], strides = [1, 1, 1]} : vector<4x32x32xf32> to vector<4x16x16xf32>
    %3 = vector.shape_cast %2 : vector<4x16x16xf32> to vector<4x256xf32>
    %4 = vector.extract_strided_slice %1 {offsets = [0, 7, 8], sizes = [4, 16, 16], strides = [1, 1, 1]} : vector<4x32x32xf32> to vector<4x16x16xf32>
    %5 = vector.shape_cast %4 : vector<4x16x16xf32> to vector<4x256xf32>
    %6 = vector.extract_strided_slice %1 {offsets = [0, 7, 9], sizes = [4, 16, 16], strides = [1, 1, 1]} : vector<4x32x32xf32> to vector<4x16x16xf32>
    %7 = vector.shape_cast %6 : vector<4x16x16xf32> to vector<4x256xf32>
    %8 = vector.extract_strided_slice %1 {offsets = [0, 8, 7], sizes = [4, 16, 16], strides = [1, 1, 1]} : vector<4x32x32xf32> to vector<4x16x16xf32>
    %9 = vector.shape_cast %8 : vector<4x16x16xf32> to vector<4x256xf32>
    %10 = vector.extract_strided_slice %1 {offsets = [0, 8, 8], sizes = [4, 16, 16], strides = [1, 1, 1]} : vector<4x32x32xf32> to vector<4x16x16xf32>
    %11 = vector.shape_cast %10 : vector<4x16x16xf32> to vector<4x256xf32>
    %12 = vector.extract_strided_slice %1 {offsets = [0, 8, 9], sizes = [4, 16, 16], strides = [1, 1, 1]} : vector<4x32x32xf32> to vector<4x16x16xf32>
    %13 = vector.shape_cast %12 : vector<4x16x16xf32> to vector<4x256xf32>
    %14 = vector.extract_strided_slice %1 {offsets = [0, 9, 7], sizes = [4, 16, 16], strides = [1, 1, 1]} : vector<4x32x32xf32> to vector<4x16x16xf32>
    %15 = vector.shape_cast %14 : vector<4x16x16xf32> to vector<4x256xf32>
    %16 = vector.extract_strided_slice %1 {offsets = [0, 9, 8], sizes = [4, 16, 16], strides = [1, 1, 1]} : vector<4x32x32xf32> to vector<4x16x16xf32>
    %17 = vector.shape_cast %16 : vector<4x16x16xf32> to vector<4x256xf32>
    %18 = vector.extract_strided_slice %1 {offsets = [0, 9, 9], sizes = [4, 16, 16], strides = [1, 1, 1]} : vector<4x32x32xf32> to vector<4x16x16xf32>
    %19 = vector.shape_cast %18 : vector<4x16x16xf32> to vector<4x256xf32>
    %20 = tpu.concatenate %3, %5, %7, %9, %11, %13, %15, %17, %19 in 0 : vector<4x256xf32>, vector<4x256xf32>, vector<4x256xf32>, vector<4x256xf32>, vector<4x256xf32>, vector<4x256xf32>, vector<4x256xf32>, vector<4x256xf32>, vector<4x256xf32> -> vector<36x256xf32>
    %c0_3 = arith.constant 0 : index
    %c0_4 = arith.constant 0 : index
    %21 = vector.load %arg2[%c0_3, %c0_4] : memref<32x36xf32, #tpu.memory_space<vmem>>, vector<8x36xf32>
    %c0_5 = arith.constant 0 : index
    %c0_6 = arith.constant 0 : index
    %22 = vector.load %arg3[%c0_5, %c0_6] : memref<32x1xf32, #tpu.memory_space<vmem>>, vector<8x1xf32>
    %cst = arith.constant dense<0.000000e+00> : vector<8x256xf32>
    %23 = tpu.matmul %21, %20, %cst {dimension_numbers = #tpu.dot_dimension_numbers<[1], [0], [0], [1], [0, 0, 1, 1], [], []>} : vector<8x36xf32>, vector<36x256xf32>, vector<8x256xf32> -> vector<8x256xf32>
    %24 = vector.broadcast %22 : vector<8x1xf32> to vector<8x256xf32>
    %25 = arith.addf %23, %24 : vector<8x256xf32>
    %cst_7 = arith.constant 0.000000e+00 : f32
    %26 = vector.broadcast %cst_7 : f32 to vector<8x256xf32>
    %27 = arith.maximumf %25, %26 : vector<8x256xf32>
    %c0_8 = arith.constant 0 : index
    %c0_9 = arith.constant 0 : index
    %c0_10 = arith.constant 0 : index
    %28 = vector.load %arg4[%c0_8, %c0_9, %c0_10] : memref<1x32x256xf32, #tpu.memory_space<vmem>>, vector<1x8x256xf32>
    %29 = vector.shape_cast %28 : vector<1x8x256xf32> to vector<8x256xf32>
    %30 = vector.shape_cast %27 : vector<8x256xf32> to vector<1x8x256xf32>
    tpu.vector_store %arg4[%c0_8, %c0_9, %c0_10], %30 {strides = array<i32>} : memref<1x32x256xf32, #tpu.memory_space<vmem>>, vector<1x8x256xf32>,
    %31 = vector.extract_strided_slice %1 {offsets = [0, 6, 6], sizes = [4, 16, 16], strides = [1, 1, 1]} : vector<4x32x32xf32> to vector<4x16x16xf32>
    %32 = vector.shape_cast %31 : vector<4x16x16xf32> to vector<4x256xf32>
    %33 = vector.extract_strided_slice %1 {offsets = [0, 6, 8], sizes = [4, 16, 16], strides = [1, 1, 1]} : vector<4x32x32xf32> to vector<4x16x16xf32>
    %34 = vector.shape_cast %33 : vector<4x16x16xf32> to vector<4x256xf32>
    %35 = vector.extract_strided_slice %1 {offsets = [0, 6, 10], sizes = [4, 16, 16], strides = [1, 1, 1]} : vector<4x32x32xf32> to vector<4x16x16xf32>
    %36 = vector.shape_cast %35 : vector<4x16x16xf32> to vector<4x256xf32>
    %37 = vector.extract_strided_slice %1 {offsets = [0, 8, 6], sizes = [4, 16, 16], strides = [1, 1, 1]} : vector<4x32x32xf32> to vector<4x16x16xf32>
    %38 = vector.shape_cast %37 : vector<4x16x16xf32> to vector<4x256xf32>
    %39 = vector.extract_strided_slice %1 {offsets = [0, 8, 8], sizes = [4, 16, 16], strides = [1, 1, 1]} : vector<4x32x32xf32> to vector<4x16x16xf32>
    %40 = vector.shape_cast %39 : vector<4x16x16xf32> to vector<4x256xf32>
    %41 = vector.extract_strided_slice %1 {offsets = [0, 8, 10], sizes = [4, 16, 16], strides = [1, 1, 1]} : vector<4x32x32xf32> to vector<4x16x16xf32>
    %42 = vector.shape_cast %41 : vector<4x16x16xf32> to vector<4x256xf32>
    %43 = vector.extract_strided_slice %1 {offsets = [0, 10, 6], sizes = [4, 16, 16], strides = [1, 1, 1]} : vector<4x32x32xf32> to vector<4x16x16xf32>
    %44 = vector.shape_cast %43 : vector<4x16x16xf32> to vector<4x256xf32>
    %45 = vector.extract_strided_slice %1 {offsets = [0, 10, 8], sizes = [4, 16, 16], strides = [1, 1, 1]} : vector<4x32x32xf32> to vector<4x16x16xf32>
    %46 = vector.shape_cast %45 : vector<4x16x16xf32> to vector<4x256xf32>
    %47 = vector.extract_strided_slice %1 {offsets = [0, 10, 10], sizes = [4, 16, 16], strides = [1, 1, 1]} : vector<4x32x32xf32> to vector<4x16x16xf32>
    %48 = vector.shape_cast %47 : vector<4x16x16xf32> to vector<4x256xf32>
    %49 = tpu.concatenate %32, %34, %36, %38, %40, %42, %44, %46, %48 in 0 : vector<4x256xf32>, vector<4x256xf32>, vector<4x256xf32>, vector<4x256xf32>, vector<4x256xf32>, vector<4x256xf32>, vector<4x256xf32>, vector<4x256xf32>, vector<4x256xf32> -> vector<36x256xf32>
    %c8 = arith.constant 8 : index
    %c0_11 = arith.constant 0 : index
    %50 = vector.load %arg2[%c8, %c0_11] : memref<32x36xf32, #tpu.memory_space<vmem>>, vector<8x36xf32>
    %c8_12 = arith.constant 8 : index
    %c0_13 = arith.constant 0 : index
    %51 = vector.load %arg3[%c8_12, %c0_13] : memref<32x1xf32, #tpu.memory_space<vmem>>, vector<8x1xf32>
    %cst_14 = arith.constant dense<0.000000e+00> : vector<8x256xf32>
    %52 = tpu.matmul %50, %49, %cst_14 {dimension_numbers = #tpu.dot_dimension_numbers<[1], [0], [0], [1], [0, 0, 1, 1], [], []>} : vector<8x36xf32>, vector<36x256xf32>, vector<8x256xf32> -> vector<8x256xf32>
    %53 = vector.broadcast %51 : vector<8x1xf32> to vector<8x256xf32>
    %54 = arith.addf %52, %53 : vector<8x256xf32>
    %cst_15 = arith.constant 0.000000e+00 : f32
    %55 = vector.broadcast %cst_15 : f32 to vector<8x256xf32>
    %56 = arith.maximumf %54, %55 : vector<8x256xf32>
    %c0_16 = arith.constant 0 : index
    %c8_17 = arith.constant 8 : index
    %c0_18 = arith.constant 0 : index
    %57 = vector.load %arg4[%c0_16, %c8_17, %c0_18] : memref<1x32x256xf32, #tpu.memory_space<vmem>>, vector<1x8x256xf32>
    %58 = vector.shape_cast %57 : vector<1x8x256xf32> to vector<8x256xf32>
    %59 = vector.shape_cast %56 : vector<8x256xf32> to vector<1x8x256xf32>
    tpu.vector_store %arg4[%c0_16, %c8_17, %c0_18], %59 {strides = array<i32>} : memref<1x32x256xf32, #tpu.memory_space<vmem>>, vector<1x8x256xf32>,
    %60 = vector.extract_strided_slice %1 {offsets = [0, 4, 4], sizes = [4, 16, 16], strides = [1, 1, 1]} : vector<4x32x32xf32> to vector<4x16x16xf32>
    %61 = vector.shape_cast %60 : vector<4x16x16xf32> to vector<4x256xf32>
    %62 = vector.extract_strided_slice %1 {offsets = [0, 4, 8], sizes = [4, 16, 16], strides = [1, 1, 1]} : vector<4x32x32xf32> to vector<4x16x16xf32>
    %63 = vector.shape_cast %62 : vector<4x16x16xf32> to vector<4x256xf32>
    %64 = vector.extract_strided_slice %1 {offsets = [0, 4, 12], sizes = [4, 16, 16], strides = [1, 1, 1]} : vector<4x32x32xf32> to vector<4x16x16xf32>
    %65 = vector.shape_cast %64 : vector<4x16x16xf32> to vector<4x256xf32>
    %66 = vector.extract_strided_slice %1 {offsets = [0, 8, 4], sizes = [4, 16, 16], strides = [1, 1, 1]} : vector<4x32x32xf32> to vector<4x16x16xf32>
    %67 = vector.shape_cast %66 : vector<4x16x16xf32> to vector<4x256xf32>
    %68 = vector.extract_strided_slice %1 {offsets = [0, 8, 8], sizes = [4, 16, 16], strides = [1, 1, 1]} : vector<4x32x32xf32> to vector<4x16x16xf32>
    %69 = vector.shape_cast %68 : vector<4x16x16xf32> to vector<4x256xf32>
    %70 = vector.extract_strided_slice %1 {offsets = [0, 8, 12], sizes = [4, 16, 16], strides = [1, 1, 1]} : vector<4x32x32xf32> to vector<4x16x16xf32>
    %71 = vector.shape_cast %70 : vector<4x16x16xf32> to vector<4x256xf32>
    %72 = vector.extract_strided_slice %1 {offsets = [0, 12, 4], sizes = [4, 16, 16], strides = [1, 1, 1]} : vector<4x32x32xf32> to vector<4x16x16xf32>
    %73 = vector.shape_cast %72 : vector<4x16x16xf32> to vector<4x256xf32>
    %74 = vector.extract_strided_slice %1 {offsets = [0, 12, 8], sizes = [4, 16, 16], strides = [1, 1, 1]} : vector<4x32x32xf32> to vector<4x16x16xf32>
    %75 = vector.shape_cast %74 : vector<4x16x16xf32> to vector<4x256xf32>
    %76 = vector.extract_strided_slice %1 {offsets = [0, 12, 12], sizes = [4, 16, 16], strides = [1, 1, 1]} : vector<4x32x32xf32> to vector<4x16x16xf32>
    %77 = vector.shape_cast %76 : vector<4x16x16xf32> to vector<4x256xf32>
    %78 = tpu.concatenate %61, %63, %65, %67, %69, %71, %73, %75, %77 in 0 : vector<4x256xf32>, vector<4x256xf32>, vector<4x256xf32>, vector<4x256xf32>, vector<4x256xf32>, vector<4x256xf32>, vector<4x256xf32>, vector<4x256xf32>, vector<4x256xf32> -> vector<36x256xf32>
    %c16 = arith.constant 16 : index
    %c0_19 = arith.constant 0 : index
    %79 = vector.load %arg2[%c16, %c0_19] : memref<32x36xf32, #tpu.memory_space<vmem>>, vector<8x36xf32>
    %c16_20 = arith.constant 16 : index
    %c0_21 = arith.constant 0 : index
    %80 = vector.load %arg3[%c16_20, %c0_21] : memref<32x1xf32, #tpu.memory_space<vmem>>, vector<8x1xf32>
    %cst_22 = arith.constant dense<0.000000e+00> : vector<8x256xf32>
    %81 = tpu.matmul %79, %78, %cst_22 {dimension_numbers = #tpu.dot_dimension_numbers<[1], [0], [0], [1], [0, 0, 1, 1], [], []>} : vector<8x36xf32>, vector<36x256xf32>, vector<8x256xf32> -> vector<8x256xf32>
    %82 = vector.broadcast %80 : vector<8x1xf32> to vector<8x256xf32>
    %83 = arith.addf %81, %82 : vector<8x256xf32>
    %cst_23 = arith.constant 0.000000e+00 : f32
    %84 = vector.broadcast %cst_23 : f32 to vector<8x256xf32>
    %85 = arith.maximumf %83, %84 : vector<8x256xf32>
    %c0_24 = arith.constant 0 : index
    %c16_25 = arith.constant 16 : index
    %c0_26 = arith.constant 0 : index
    %86 = vector.load %arg4[%c0_24, %c16_25, %c0_26] : memref<1x32x256xf32, #tpu.memory_space<vmem>>, vector<1x8x256xf32>
    %87 = vector.shape_cast %86 : vector<1x8x256xf32> to vector<8x256xf32>
    %88 = vector.shape_cast %85 : vector<8x256xf32> to vector<1x8x256xf32>
    tpu.vector_store %arg4[%c0_24, %c16_25, %c0_26], %88 {strides = array<i32>} : memref<1x32x256xf32, #tpu.memory_space<vmem>>, vector<1x8x256xf32>,
    %89 = vector.extract_strided_slice %1 {offsets = [0, 0, 0], sizes = [4, 16, 16], strides = [1, 1, 1]} : vector<4x32x32xf32> to vector<4x16x16xf32>
    %90 = vector.shape_cast %89 : vector<4x16x16xf32> to vector<4x256xf32>
    %91 = vector.extract_strided_slice %1 {offsets = [0, 0, 8], sizes = [4, 16, 16], strides = [1, 1, 1]} : vector<4x32x32xf32> to vector<4x16x16xf32>
    %92 = vector.shape_cast %91 : vector<4x16x16xf32> to vector<4x256xf32>
    %93 = vector.extract_strided_slice %1 {offsets = [0, 0, 16], sizes = [4, 16, 16], strides = [1, 1, 1]} : vector<4x32x32xf32> to vector<4x16x16xf32>
    %94 = vector.shape_cast %93 : vector<4x16x16xf32> to vector<4x256xf32>
    %95 = vector.extract_strided_slice %1 {offsets = [0, 8, 0], sizes = [4, 16, 16], strides = [1, 1, 1]} : vector<4x32x32xf32> to vector<4x16x16xf32>
    %96 = vector.shape_cast %95 : vector<4x16x16xf32> to vector<4x256xf32>
    %97 = vector.extract_strided_slice %1 {offsets = [0, 8, 8], sizes = [4, 16, 16], strides = [1, 1, 1]} : vector<4x32x32xf32> to vector<4x16x16xf32>
    %98 = vector.shape_cast %97 : vector<4x16x16xf32> to vector<4x256xf32>
    %99 = vector.extract_strided_slice %1 {offsets = [0, 8, 16], sizes = [4, 16, 16], strides = [1, 1, 1]} : vector<4x32x32xf32> to vector<4x16x16xf32>
    %100 = vector.shape_cast %99 : vector<4x16x16xf32> to vector<4x256xf32>
    %101 = vector.extract_strided_slice %1 {offsets = [0, 16, 0], sizes = [4, 16, 16], strides = [1, 1, 1]} : vector<4x32x32xf32> to vector<4x16x16xf32>
    %102 = vector.shape_cast %101 : vector<4x16x16xf32> to vector<4x256xf32>
    %103 = vector.extract_strided_slice %1 {offsets = [0, 16, 8], sizes = [4, 16, 16], strides = [1, 1, 1]} : vector<4x32x32xf32> to vector<4x16x16xf32>
    %104 = vector.shape_cast %103 : vector<4x16x16xf32> to vector<4x256xf32>
    %105 = vector.extract_strided_slice %1 {offsets = [0, 16, 16], sizes = [4, 16, 16], strides = [1, 1, 1]} : vector<4x32x32xf32> to vector<4x16x16xf32>
    %106 = vector.shape_cast %105 : vector<4x16x16xf32> to vector<4x256xf32>
    %107 = tpu.concatenate %90, %92, %94, %96, %98, %100, %102, %104, %106 in 0 : vector<4x256xf32>, vector<4x256xf32>, vector<4x256xf32>, vector<4x256xf32>, vector<4x256xf32>, vector<4x256xf32>, vector<4x256xf32>, vector<4x256xf32>, vector<4x256xf32> -> vector<36x256xf32>
    %c24 = arith.constant 24 : index
    %c0_27 = arith.constant 0 : index
    %108 = vector.load %arg2[%c24, %c0_27] : memref<32x36xf32, #tpu.memory_space<vmem>>, vector<8x36xf32>
    %c24_28 = arith.constant 24 : index
    %c0_29 = arith.constant 0 : index
    %109 = vector.load %arg3[%c24_28, %c0_29] : memref<32x1xf32, #tpu.memory_space<vmem>>, vector<8x1xf32>
    %cst_30 = arith.constant dense<0.000000e+00> : vector<8x256xf32>
    %110 = tpu.matmul %108, %107, %cst_30 {dimension_numbers = #tpu.dot_dimension_numbers<[1], [0], [0], [1], [0, 0, 1, 1], [], []>} : vector<8x36xf32>, vector<36x256xf32>, vector<8x256xf32> -> vector<8x256xf32>
    %111 = vector.broadcast %109 : vector<8x1xf32> to vector<8x256xf32>
    %112 = arith.addf %110, %111 : vector<8x256xf32>
    %cst_31 = arith.constant 0.000000e+00 : f32
    %113 = vector.broadcast %cst_31 : f32 to vector<8x256xf32>
    %114 = arith.maximumf %112, %113 : vector<8x256xf32>
    %c0_32 = arith.constant 0 : index
    %c24_33 = arith.constant 24 : index
    %c0_34 = arith.constant 0 : index
    %115 = vector.load %arg4[%c0_32, %c24_33, %c0_34] : memref<1x32x256xf32, #tpu.memory_space<vmem>>, vector<1x8x256xf32>
    %116 = vector.shape_cast %115 : vector<1x8x256xf32> to vector<8x256xf32>
    %117 = vector.shape_cast %114 : vector<8x256xf32> to vector<1x8x256xf32>
    tpu.vector_store %arg4[%c0_32, %c24_33, %c0_34], %117 {strides = array<i32>} : memref<1x32x256xf32, #tpu.memory_space<vmem>>, vector<1x8x256xf32>,
    return
  }
  func.func @transform_0(%arg0: i32) -> (i32, i32, i32, i32) {
    %c0_i32 = arith.constant 0 : i32
    %c0_i32_0 = arith.constant 0 : i32
    %c0_i32_1 = arith.constant 0 : i32
    %c0_i32_2 = arith.constant 0 : i32
    return %arg0, %c0_i32, %c0_i32_0, %c0_i32_1 : i32, i32, i32, i32
  }
  func.func @transform_1(%arg0: i32) -> (i32, i32) {
    %c0_i32 = arith.constant 0 : i32
    %c0_i32_0 = arith.constant 0 : i32
    %c0_i32_1 = arith.constant 0 : i32
    return %c0_i32, %c0_i32_0 : i32, i32
  }
  func.func @transform_2(%arg0: i32) -> (i32, i32) {
    %c0_i32 = arith.constant 0 : i32
    %c0_i32_0 = arith.constant 0 : i32
    %c0_i32_1 = arith.constant 0 : i32
    return %c0_i32, %c0_i32_0 : i32, i32
  }
  func.func @transform_3(%arg0: i32) -> (i32, i32, i32) {
    %c0_i32 = arith.constant 0 : i32
    %c0_i32_0 = arith.constant 0 : i32
    %c0_i32_1 = arith.constant 0 : i32
    return %arg0, %c0_i32, %c0_i32_0 : i32, i32, i32
  }
}

</mosaic_0001>

<llo_original>
// kernel: tpu_custom_call.1
$region0: #{tpu_custom_call.1}
  #allocation0 [shape = 'u32[]', space=smem, size = 0x4, offset = 0x4, fixed_abs, tag = 'smem constant byte address 0x4 - core index']
  #allocation1 [shape = 'u32[144,128]{1,0:T(1,128)}', space=vmem, size = 0x12000, scoped, tag = 'internal scratch']
  %s0 = inlined_call_operand.hbm [shape: f32[2,4,32,32], index: 0, kind: input, shape index: {}]
  %s1 = inlined_call_operand.vmem [shape: f32[32,36], index: 1, kind: input, shape index: {}]
  %s2 = inlined_call_operand.vmem [shape: f32[32,1], index: 2, kind: input, shape index: {}]
  %s3 = inlined_call_operand.hbm [shape: f32[2,32,256], index: 3, kind: output, shape index: {}]
  %s4 = sld [smem:[#allocation0]]
  $region49: #{tpu_custom_call.1} parent=0
    _
  %s6 = ssub.s32 1, %s4
  %s7 = scalar_select 0, %s6, %s4
  $region1: #{tpu_custom_call.1} parent=0
    #allocation2 [shape = 'u8[131072]{0}', space=vmem, size = 0x20000, scoped, tag = 'input window, operand 0']
    #allocation3 [shape = 's32[2]{0}', space=sflag, size = 0x8, scoped, tag = 'scoped memory for tpu_custom_call.1']
    #allocation4 [shape = 's32[2]{0}', space=sflag, size = 0x8, scoped, tag = 'scoped memory for tpu_custom_call.1']
    #allocation5 [shape = 'u8[65536]{0}', space=vmem, size = 0x10000, scoped, tag = 'output window, operand 0']
    %8 = vsyncpa [#allocation3], 0
    %s9 = scalar_lea.sflag [#allocation3], 1
    %10 = vsyncpa %s9, 0
    %11 = vsyncpa [#allocation4], 0
    %s12 = scalar_lea.sflag [#allocation4], 1
    %13 = vsyncpa %s12, 0
    loop: start=0, step=1, limit=4
    $region2: #{tpu_custom_call.1} parent=1 // loop_pre_header
      _
    $region3: #{tpu_custom_call.1} parent=1 // loop_header
      %s15 = sphi 0, %s19
      %p16 = scmp.ge.s32.totalorder %s15, 4
      %s25 = sphi 0, %s27
      %s28 = sphi 0, %s25
      %s29 = sphi 0, %s28
      %s45 = sphi 0, %s29
      %s49 = sphi 0, %s49
      %s51 = sphi 0, %s49
      %s52 = sphi 0, %s51
      %s66 = sphi 0, %s52
      %s70 = sphi 0, %s70
      %s72 = sphi 0, %s70
      %s73 = sphi 0, %s72
      %s87 = sphi 0, %s73
      %s93 = sphi 0, %s95
      %s96 = sphi 0, %s93
      %s97 = sphi 0, %s96
      %s113 = sphi 0, %s97
    $region4: #{tpu_custom_call.1} parent=1 // loop_header_branch
      %18 = sbr.rel (%p16) target = $region8
    $region5: #{tpu_custom_call.1} parent=1 // loop_body
      %s20 = ssub.s32 %s15, 1
      %s21 = ssub.s32 %s15, 2
      %s22 = sadd.s32 %s15, 1
      %s23 = ssub.s32 %s15, %s22
      %p24 = scmp.eq.s32.totalorder %s23, 0
      %s26 = sadd.s32 %s25, 1
      %s27 = scalar_select %p24, %s25, %s26
      %p30 = pneg %p24
      %p31 = scmp.eq.s32.totalorder %s15, 1
      %p32 = por %p30, %p31
      %p33 = scmp.ne.s32.totalorder %s25, %s28
      %p34 = scmp.eq.s32.totalorder %s15, 0
      %p35 = por %p33, %p34
      %p36 = scmp.ne.s32.totalorder %s25, %s28
      %p37 = scmp.eq.s32.totalorder %s20, 1
      %p38 = por %p36, %p37
      %p39 = scmp.ne.s32.totalorder %s28, %s29
      %p40 = scmp.eq.s32.totalorder %s20, 0
      %p41 = por %p39, %p40
      %p42 = scmp.ne.s32.totalorder %s28, %s29
      %p43 = scmp.eq.s32.totalorder %s21, 1
      %p44 = por %p42, %p43
      %p46 = scmp.ne.s32.totalorder %s29, %s45
      %p47 = scmp.eq.s32.totalorder %s21, 0
      %p48 = por %p46, %p47
      %s50 = sadd.s32 %s49, 1
      %p53 = scmp.eq.s32.totalorder %s15, 1
      %p54 = scmp.ne.s32.totalorder %s49, %s51
      %p55 = scmp.eq.s32.totalorder %s15, 0
      %p56 = por %p54, %p55
      %p57 = scmp.ne.s32.totalorder %s49, %s51
      %p58 = scmp.eq.s32.totalorder %s20, 1
      %p59 = por %p57, %p58
      %p60 = scmp.ne.s32.totalorder %s51, %s52
      %p61 = scmp.eq.s32.totalorder %s20, 0
      %p62 = por %p60, %p61
      %p63 = scmp.ne.s32.totalorder %s51, %s52
      %p64 = scmp.eq.s32.totalorder %s21, 1
      %p65 = por %p63, %p64
      %p67 = scmp.ne.s32.totalorder %s52, %s66
      %p68 = scmp.eq.s32.totalorder %s21, 0
      %p69 = por %p67, %p68
      %s71 = sadd.s32 %s70, 1
      %p74 = scmp.eq.s32.totalorder %s15, 1
      %p75 = scmp.ne.s32.totalorder %s70, %s72
      %p76 = scmp.eq.s32.totalorder %s15, 0
      %p77 = por %p75, %p76
      %p78 = scmp.ne.s32.totalorder %s70, %s72
      %p79 = scmp.eq.s32.totalorder %s20, 1
      %p80 = por %p78, %p79
      %p81 = scmp.ne.s32.totalorder %s72, %s73
      %p82 = scmp.eq.s32.totalorder %s20, 0
      %p83 = por %p81, %p82
      %p84 = scmp.ne.s32.totalorder %s72, %s73
      %p85 = scmp.eq.s32.totalorder %s21, 1
      %p86 = por %p84, %p85
      %p88 = scmp.ne.s32.totalorder %s73, %s87
      %p89 = scmp.eq.s32.totalorder %s21, 0
      %p90 = por %p88, %p89
      %s91 = ssub.s32 %s15, %s22
      %p92 = scmp.eq.s32.totalorder %s91, 0
      %s94 = sadd.s32 %s93, 1
      %s95 = scalar_select %p92, %s93, %s94
      %p98 = pneg %p92
      %p99 = scmp.eq.s32.totalorder %s15, 1
      %p100 = por %p98, %p99
      %p101 = scmp.ne.s32.totalorder %s93, %s96
      %p102 = scmp.eq.s32.totalorder %s15, 0
      %p103 = por %p101, %p102
      %p104 = scmp.ne.s32.totalorder %s93, %s96
      %p105 = scmp.eq.s32.totalorder %s20, 1
      %p106 = por %p104, %p105
      %p107 = scmp.ne.s32.totalorder %s96, %s97
      %p108 = scmp.eq.s32.totalorder %s20, 0
      %p109 = por %p107, %p108
      %p110 = scmp.ne.s32.totalorder %s96, %s97
      %p111 = scmp.eq.s32.totalorder %s21, 1
      %p112 = por %p110, %p111
      %p114 = scmp.ne.s32.totalorder %s97, %s113
      %p115 = scmp.eq.s32.totalorder %s21, 0
      %p116 = por %p114, %p115
      %p117 = scmp.le.s32.totalorder 1, %s15
      %p118 = scmp.lt.s32.totalorder %s15, 3
      %p119 = pnand %p117, %p118
      %p120 = pneg %p119
      // Predicated region
      $region9: #{tpu_custom_call.1} parent=5 // pred_check
        _
      $region10: #{tpu_custom_call.1} parent=5 // pred_check_branch
        %122 = sbr.rel (%p119) target = $region12
      $region11: #{tpu_custom_call.1} parent=5 // pred_region
        %s123 = ssub.s32 %s15, 1
        // Predicated region
        $region13: #{tpu_custom_call.1} parent=11 // pred_check
          %p124 = pneg %p62
        $region14: #{tpu_custom_call.1} parent=11 // pred_check_branch
          %126 = sbr.rel (%p124) target = $region16
        $region15: #{tpu_custom_call.1} parent=11 // pred_region
          _
        $region16: #{tpu_custom_call.1} parent=11 // pred_fallthru
          _
        // Predicated region
        $region17: #{tpu_custom_call.1} parent=11 // pred_check
          %p127 = pneg %p83
        $region18: #{tpu_custom_call.1} parent=11 // pred_check_branch
          %129 = sbr.rel (%p127) target = $region20
        $region19: #{tpu_custom_call.1} parent=11 // pred_region
          _
        $region20: #{tpu_custom_call.1} parent=11 // pred_fallthru
          _
      $region12: #{tpu_custom_call.1} parent=5 // pred_fallthru
        _
      %p130 = scmp.lt.s32.totalorder %s15, 2
      // Predicated region
      $region21: #{tpu_custom_call.1} parent=5 // pred_check
        %p131 = pneg %p130
      $region22: #{tpu_custom_call.1} parent=5 // pred_check_branch
        %133 = sbr.rel (%p131) target = $region24
      $region23: #{tpu_custom_call.1} parent=5 // pred_region
        // Predicated region
        $region25: #{tpu_custom_call.1} parent=23 // pred_check
          %p134 = pneg %p35
        $region26: #{tpu_custom_call.1} parent=23 // pred_check_branch
          %136 = sbr.rel (%p134) target = $region28
        $region27: #{tpu_custom_call.1} parent=23 // pred_region
          %s137 = sand.u32 %s25, 1
          %s138 = scalar_lea.sflag [#allocation3], %s137
          %s139 = sand.u32 %s25, 1
          %s140 = smul.addr %s139, 128
          %s141 = scalar_lea.vmem [#allocation2], %s140
          %s143 = ssub.s32 2048, 2048
          %144 = vsyncadd %s138, %s143
          %s145 = smul.addr %s15, 16
          %s146 = smul.addr %s145, 128
          %s147 = scalar_lea.hbm %s0, %s146
          %s148 = sshll.u32 %s141, 4
          %s149 = int_to_ptr.vmem [resolvable:$true] %s148
          %154 = dma.hbm_to_vmem [thread:$0]  %s147, 2048, %s149, %s138, 128, 128, 8
        $region28: #{tpu_custom_call.1} parent=23 // pred_fallthru
          _
      $region24: #{tpu_custom_call.1} parent=5 // pred_fallthru
        _
      %p155 = scmp.le.s32.totalorder 1, %s15
      %p156 = scmp.lt.s32.totalorder %s15, 3
      %p157 = pnand %p155, %p156
      %p158 = pneg %p157
      // Predicated region
      $region29: #{tpu_custom_call.1} parent=5 // pred_check
        _
      $region30: #{tpu_custom_call.1} parent=5 // pred_check_branch
        %160 = sbr.rel (%p157) target = $region32
      $region31: #{tpu_custom_call.1} parent=5 // pred_region
        %s161 = ssub.s32 %s15, 1
        %s162 = sand.u32 %s28, 1
        %s163 = scalar_lea.sflag [#allocation3], %s162
        %s164 = sand.u32 %s28, 1
        %s165 = smul.addr %s164, 128
        %s166 = scalar_lea.vmem [#allocation2], %s165
        // Predicated region
        $region33: #{tpu_custom_call.1} parent=31 // pred_check
          %p167 = pneg %p41
        $region34: #{tpu_custom_call.1} parent=31 // pred_check_branch
          %169 = sbr.rel (%p167) target = $region36
        $region35: #{tpu_custom_call.1} parent=31 // pred_region
          %170 = dma.done %s163, 2048
        $region36: #{tpu_custom_call.1} parent=31 // pred_fallthru
          _
        %s171 = sand.u32 %s28, 1
        %s172 = scalar_lea.sflag [#allocation3], %s171
        %s173 = sand.u32 %s28, 1
        %s174 = smul.addr %s173, 128
        %s175 = scalar_lea.vmem [#allocation2], %s174
        %p176 = pneg %p41
        %p177 = pneg %p38
        %p178 = pneg %p62
        %p179 = pneg %p59
        %p180 = pneg %p83
        %p181 = pneg %p80
        %p182 = pneg %p109
        %p183 = pneg %p106
        %s184 = sand.u32 %s96, 1
        %s185 = scalar_lea.sflag [#allocation4], %s184
        %s186 = sand.u32 %s96, 1
        %s187 = smul.addr %s186, 64
        %s188 = scalar_lea.vmem [#allocation5], %s187
        %v189 = vld [vmem:[%s166] sm:$0xff]
        %v190 = vld [vmem:[%s166 + $0x8] sm:$0xff]
        %v191 = vld [vmem:[%s166 + $0x10] sm:$0xff]
        %v192 = vld [vmem:[%s166 + $0x18] sm:$0xff]
        %v193 = vld [vmem:[%s166 + $0x20] sm:$0xff]
        %v194 = vld [vmem:[%s166 + $0x28] sm:$0xff]
        %v195 = vld [vmem:[%s166 + $0x30] sm:$0xff]
        %v196 = vld [vmem:[%s166 + $0x38] sm:$0xff]
        %v197 = vld [vmem:[%s166 + $0x40] sm:$0xff]
        %v198 = vld [vmem:[%s166 + $0x48] sm:$0xff]
        %v199 = vld [vmem:[%s166 + $0x50] sm:$0xff]
        %v200 = vld [vmem:[%s166 + $0x58] sm:$0xff]
        %v201 = vld [vmem:[%s166 + $0x60] sm:$0xff]
        %v202 = vld [vmem:[%s166 + $0x68] sm:$0xff]
        %v203 = vld [vmem:[%s166 + $0x70] sm:$0xff]
        %v204 = vld [vmem:[%s166 + $0x78] sm:$0xff]
        %vm217 = vcmask 1040384
        %v218 = vrot.slane %v189, 7
        %v219 = vrot.slane %v190, 7
        %v220 = vsel %vm217, %v218, %v219
        %v221 = vrot.slane %v191, 7
        %v222 = vsel %vm217, %v219, %v221
        %v223 = vrot.slane %v193, 7
        %v224 = vrot.slane %v194, 7
        %v225 = vsel %vm217, %v223, %v224
        %v226 = vrot.slane %v195, 7
        %v227 = vsel %vm217, %v224, %v226
        %v228 = vrot.slane %v197, 7
        %v229 = vrot.slane %v198, 7
        %v230 = vsel %vm217, %v228, %v229
        %v231 = vrot.slane %v199, 7
        %v232 = vsel %vm217, %v229, %v231
        %v233 = vrot.slane %v201, 7
        %v234 = vrot.slane %v202, 7
        %v235 = vsel %vm217, %v233, %v234
        %v236 = vrot.slane %v203, 7
        %v237 = vsel %vm217, %v234, %v236
        %238 = vrot.lane.b32.xlu0 %v220, 121
        %v239 = vpop.permute.xlu0 %238
        %240 = vrot.lane.b32.xlu0 %v222, 121
        %v241 = vpop.permute.xlu0 %240
        %242 = vrot.lane.b32.xlu0 %v225, 121
        %v243 = vpop.permute.xlu0 %242
        %244 = vrot.lane.b32.xlu0 %v227, 121
        %v245 = vpop.permute.xlu0 %244
        %246 = vrot.lane.b32.xlu0 %v230, 121
        %v247 = vpop.permute.xlu0 %246
        %248 = vrot.lane.b32.xlu0 %v232, 121
        %v249 = vpop.permute.xlu0 %248
        %250 = vrot.lane.b32.xlu0 %v235, 121
        %v251 = vpop.permute.xlu0 %250
        %252 = vrot.lane.b32.xlu0 %v237, 121
        %v253 = vpop.permute.xlu0 %252
        %v262 = vcombine.low %v239, %v247
        %v263 = vcombine.high %v239, %v247
        %v265 = vunpack.c.l.s4 1983009808
        %v266 = vunpack.c.0.s8 %v265
        %v267 = vlaneseq
        %v268 = vshrl.u32 %v267, 7
        %v269 = vsub.s32 %v266, %v268
        %v270 = vrot.slane %v262, %v269
        %v272 = vunpack.c.l.s4 1983009808
        %v273 = vunpack.c.0.s8 %v272
        %v274 = vlaneseq
        %v275 = vshrl.u32 %v274, 7
        %v276 = vsub.s32 %v273, %v275
        %v277 = vrot.slane %v263, %v276
        %v278 = vcombine.low %v243, %v251
        %v279 = vcombine.high %v243, %v251
        %v281 = vunpack.c.l.s4 1983009808
        %v282 = vunpack.c.0.s8 %v281
        %v283 = vlaneseq
        %v284 = vshrl.u32 %v283, 7
        %v285 = vsub.s32 %v282, %v284
        %v286 = vrot.slane %v278, %v285
        %v288 = vunpack.c.l.s4 1983009808
        %v289 = vunpack.c.0.s8 %v288
        %v290 = vlaneseq
        %v291 = vshrl.u32 %v290, 7
        %v292 = vsub.s32 %v289, %v291
        %v293 = vrot.slane %v279, %v292
        %v294 = vcombine.low %v270, %v286
        %v295 = vcombine.high %v270, %v286
        %v297 = vunpack.c.l.s4 1934713408
        %v298 = vunpack.c.0.s8 %v297
        %v299 = vlaneseq
        %v300 = vshrl.u32 %v299, 7
        %v301 = vsub.s32 %v298, %v300
        %v302 = vrot.slane %v294, %v301
        %v304 = vunpack.c.l.s4 1934713408
        %v305 = vunpack.c.0.s8 %v304
        %v306 = vlaneseq
        %v307 = vshrl.u32 %v306, 7
        %v308 = vsub.s32 %v305, %v307
        %v309 = vrot.slane %v295, %v308
        %v310 = vcombine.low %v277, %v293
        %v311 = vcombine.high %v277, %v293
        %v313 = vunpack.c.l.s4 1934713408
        %v314 = vunpack.c.0.s8 %v313
        %v315 = vlaneseq
        %v316 = vshrl.u32 %v315, 7
        %v317 = vsub.s32 %v314, %v316
        %v318 = vrot.slane %v310, %v317
        %v320 = vunpack.c.l.s4 1934713408
        %v321 = vunpack.c.0.s8 %v320
        %v322 = vlaneseq
        %v323 = vshrl.u32 %v322, 7
        %v324 = vsub.s32 %v321, %v323
        %v325 = vrot.slane %v311, %v324
        %v326 = vcombine.high %v302, 0.0
        %v327 = vcombine.high %v309, 0.0
        %v328 = vcombine.high %v318, 0.0
        %v329 = vcombine.high %v325, 0.0
        %v330 = vcombine.low %v241, %v249
        %v331 = vcombine.high %v241, %v249
        %v333 = vunpack.c.l.s4 1983009808
        %v334 = vunpack.c.0.s8 %v333
        %v335 = vlaneseq
        %v336 = vshrl.u32 %v335, 7
        %v337 = vsub.s32 %v334, %v336
        %v338 = vrot.slane %v330, %v337
        %v340 = vunpack.c.l.s4 1983009808
        %v341 = vunpack.c.0.s8 %v340
        %v342 = vlaneseq
        %v343 = vshrl.u32 %v342, 7
        %v344 = vsub.s32 %v341, %v343
        %v345 = vrot.slane %v331, %v344
        %v346 = vcombine.low %v245, %v253
        %v347 = vcombine.high %v245, %v253
        %v349 = vunpack.c.l.s4 1983009808
        %v350 = vunpack.c.0.s8 %v349
        %v351 = vlaneseq
        %v352 = vshrl.u32 %v351, 7
        %v353 = vsub.s32 %v350, %v352
        %v354 = vrot.slane %v346, %v353
        %v356 = vunpack.c.l.s4 1983009808
        %v357 = vunpack.c.0.s8 %v356
        %v358 = vlaneseq
        %v359 = vshrl.u32 %v358, 7
        %v360 = vsub.s32 %v357, %v359
        %v361 = vrot.slane %v347, %v360
        %v362 = vcombine.low %v338, %v354
        %v363 = vcombine.high %v338, %v354
        %v365 = vunpack.c.l.s4 1934713408
        %v366 = vunpack.c.0.s8 %v365
        %v367 = vlaneseq
        %v368 = vshrl.u32 %v367, 7
        %v369 = vsub.s32 %v366, %v368
        %v370 = vrot.slane %v362, %v369
        %v372 = vunpack.c.l.s4 1934713408
        %v373 = vunpack.c.0.s8 %v372
        %v374 = vlaneseq
        %v375 = vshrl.u32 %v374, 7
        %v376 = vsub.s32 %v373, %v375
        %v377 = vrot.slane %v363, %v376
        %v378 = vcombine.low %v345, %v361
        %v379 = vcombine.high %v345, %v361
        %v381 = vunpack.c.l.s4 1934713408
        %v382 = vunpack.c.0.s8 %v381
        %v383 = vlaneseq
        %v384 = vshrl.u32 %v383, 7
        %v385 = vsub.s32 %v382, %v384
        %v386 = vrot.slane %v378, %v385
        %v388 = vunpack.c.l.s4 1934713408
        %v389 = vunpack.c.0.s8 %v388
        %v390 = vlaneseq
        %v391 = vshrl.u32 %v390, 7
        %v392 = vsub.s32 %v389, %v391
        %v393 = vrot.slane %v379, %v392
        %v394 = vcombine.high %v370, 0.0
        %v395 = vcombine.high %v377, 0.0
        %v396 = vcombine.high %v386, 0.0
        %v397 = vcombine.high %v393, 0.0
        %399 = vrot.lane.b32.xlu0 %v326, 16
        %v400 = vpop.permute.xlu0 %399
        %403 = vrot.lane.b32.xlu0 %v309, 32
        %v404 = vpop.permute.xlu0 %403
        %407 = vrot.lane.b32.xlu0 %v327, 48
        %v408 = vpop.permute.xlu0 %407
        %411 = vrot.lane.b32.xlu0 %v318, 64
        %v412 = vpop.permute.xlu0 %411
        %415 = vrot.lane.b32.xlu0 %v328, 80
        %v416 = vpop.permute.xlu0 %415
        %419 = vrot.lane.b32.xlu0 %v325, 96
        %v420 = vpop.permute.xlu0 %419
        %423 = vrot.lane.b32.xlu0 %v329, 112
        %v424 = vpop.permute.xlu0 %423
        %427 = vrot.lane.b32.xlu0 %v394, 16
        %v428 = vpop.permute.xlu0 %427
        %431 = vrot.lane.b32.xlu0 %v377, 32
        %v432 = vpop.permute.xlu0 %431
        %435 = vrot.lane.b32.xlu0 %v395, 48
        %v436 = vpop.permute.xlu0 %435
        %439 = vrot.lane.b32.xlu0 %v386, 64
        %v440 = vpop.permute.xlu0 %439
        %443 = vrot.lane.b32.xlu0 %v396, 80
        %v444 = vpop.permute.xlu0 %443
        %447 = vrot.lane.b32.xlu0 %v393, 96
        %v448 = vpop.permute.xlu0 %447
        %451 = vrot.lane.b32.xlu0 %v397, 112
        %v452 = vpop.permute.xlu0 %451
        %vm454 = vcmask 130048
        %v455 = vsel %vm454, %v302, %v400
        %vm456 = vcmask 261120
        %v457 = vsel %vm456, %v455, %v404
        %vm458 = vcmask 392192
        %v459 = vsel %vm458, %v457, %v408
        %vm460 = vcmask 523264
        %v461 = vsel %vm460, %v459, %v412
        %vm462 = vcmask 654336
        %v463 = vsel %vm462, %v461, %v416
        %vm464 = vcmask 785408
        %v465 = vsel %vm464, %v463, %v420
        %vm466 = vcmask 916480
        %v467 = vsel %vm466, %v465, %v424
        %v468 = vsel %vm454, %v370, %v428
        %v469 = vsel %vm456, %v468, %v432
        %v470 = vsel %vm458, %v469, %v436
        %v471 = vsel %vm460, %v470, %v440
        %v472 = vsel %vm462, %v471, %v444
        %v473 = vsel %vm464, %v472, %v448
        %v474 = vsel %vm466, %v473, %v452
        %475 = vrot.lane.b32.xlu0 %v220, 120
        %v476 = vpop.permute.xlu0 %475
        %477 = vrot.lane.b32.xlu0 %v222, 120
        %v478 = vpop.permute.xlu0 %477
        %479 = vrot.lane.b32.xlu0 %v225, 120
        %v480 = vpop.permute.xlu0 %479
        %481 = vrot.lane.b32.xlu0 %v227, 120
        %v482 = vpop.permute.xlu0 %481
        %483 = vrot.lane.b32.xlu0 %v230, 120
        %v484 = vpop.permute.xlu0 %483
        %485 = vrot.lane.b32.xlu0 %v232, 120
        %v486 = vpop.permute.xlu0 %485
        %487 = vrot.lane.b32.xlu0 %v235, 120
        %v488 = vpop.permute.xlu0 %487
        %489 = vrot.lane.b32.xlu0 %v237, 120
        %v490 = vpop.permute.xlu0 %489
        %v499 = vcombine.low %v476, %v484
        %v500 = vcombine.high %v476, %v484
        %v502 = vunpack.c.l.s4 1983009808
        %v503 = vunpack.c.0.s8 %v502
        %v504 = vlaneseq
        %v505 = vshrl.u32 %v504, 7
        %v506 = vsub.s32 %v503, %v505
        %v507 = vrot.slane %v499, %v506
        %v509 = vunpack.c.l.s4 1983009808
        %v510 = vunpack.c.0.s8 %v509
        %v511 = vlaneseq
        %v512 = vshrl.u32 %v511, 7
        %v513 = vsub.s32 %v510, %v512
        %v514 = vrot.slane %v500, %v513
        %v515 = vcombine.low %v480, %v488
        %v516 = vcombine.high %v480, %v488
        %v518 = vunpack.c.l.s4 1983009808
        %v519 = vunpack.c.0.s8 %v518
        %v520 = vlaneseq
        %v521 = vshrl.u32 %v520, 7
        %v522 = vsub.s32 %v519, %v521
        %v523 = vrot.slane %v515, %v522
        %v525 = vunpack.c.l.s4 1983009808
        %v526 = vunpack.c.0.s8 %v525
        %v527 = vlaneseq
        %v528 = vshrl.u32 %v527, 7
        %v529 = vsub.s32 %v526, %v528
        %v530 = vrot.slane %v516, %v529
        %v531 = vcombine.low %v507, %v523
        %v532 = vcombine.high %v507, %v523
        %v534 = vunpack.c.l.s4 1934713408
        %v535 = vunpack.c.0.s8 %v534
        %v536 = vlaneseq
        %v537 = vshrl.u32 %v536, 7
        %v538 = vsub.s32 %v535, %v537
        %v539 = vrot.slane %v531, %v538
        %v541 = vunpack.c.l.s4 1934713408
        %v542 = vunpack.c.0.s8 %v541
        %v543 = vlaneseq
        %v544 = vshrl.u32 %v543, 7
        %v545 = vsub.s32 %v542, %v544
        %v546 = vrot.slane %v532, %v545
        %v547 = vcombine.low %v514, %v530
        %v548 = vcombine.high %v514, %v530
        %v550 = vunpack.c.l.s4 1934713408
        %v551 = vunpack.c.0.s8 %v550
        %v552 = vlaneseq
        %v553 = vshrl.u32 %v552, 7
        %v554 = vsub.s32 %v551, %v553
        %v555 = vrot.slane %v547, %v554
        %v557 = vunpack.c.l.s4 1934713408
        %v558 = vunpack.c.0.s8 %v557
        %v559 = vlaneseq
        %v560 = vshrl.u32 %v559, 7
        %v561 = vsub.s32 %v558, %v560
        %v562 = vrot.slane %v548, %v561
        %v563 = vcombine.high %v539, 0.0
        %v564 = vcombine.high %v546, 0.0
        %v565 = vcombine.high %v555, 0.0
        %v566 = vcombine.high %v562, 0.0
        %v567 = vcombine.low %v478, %v486
        %v568 = vcombine.high %v478, %v486
        %v570 = vunpack.c.l.s4 1983009808
        %v571 = vunpack.c.0.s8 %v570
        %v572 = vlaneseq
        %v573 = vshrl.u32 %v572, 7
        %v574 = vsub.s32 %v571, %v573
        %v575 = vrot.slane %v567, %v574
        %v577 = vunpack.c.l.s4 1983009808
        %v578 = vunpack.c.0.s8 %v577
        %v579 = vlaneseq
        %v580 = vshrl.u32 %v579, 7
        %v581 = vsub.s32 %v578, %v580
        %v582 = vrot.slane %v568, %v581
        %v583 = vcombine.low %v482, %v490
        %v584 = vcombine.high %v482, %v490
        %v586 = vunpack.c.l.s4 1983009808
        %v587 = vunpack.c.0.s8 %v586
        %v588 = vlaneseq
        %v589 = vshrl.u32 %v588, 7
        %v590 = vsub.s32 %v587, %v589
        %v591 = vrot.slane %v583, %v590
        %v593 = vunpack.c.l.s4 1983009808
        %v594 = vunpack.c.0.s8 %v593
        %v595 = vlaneseq
        %v596 = vshrl.u32 %v595, 7
        %v597 = vsub.s32 %v594, %v596
        %v598 = vrot.slane %v584, %v597
        %v599 = vcombine.low %v575, %v591
        %v600 = vcombine.high %v575, %v591
        %v602 = vunpack.c.l.s4 1934713408
        %v603 = vunpack.c.0.s8 %v602
        %v604 = vlaneseq
        %v605 = vshrl.u32 %v604, 7
        %v606 = vsub.s32 %v603, %v605
        %v607 = vrot.slane %v599, %v606
        %v609 = vunpack.c.l.s4 1934713408
        %v610 = vunpack.c.0.s8 %v609
        %v611 = vlaneseq
        %v612 = vshrl.u32 %v611, 7
        %v613 = vsub.s32 %v610, %v612
        %v614 = vrot.slane %v600, %v613
        %v615 = vcombine.low %v582, %v598
        %v616 = vcombine.high %v582, %v598
        %v618 = vunpack.c.l.s4 1934713408
        %v619 = vunpack.c.0.s8 %v618
        %v620 = vlaneseq
        %v621 = vshrl.u32 %v620, 7
        %v622 = vsub.s32 %v619, %v621
        %v623 = vrot.slane %v615, %v622
        %v625 = vunpack.c.l.s4 1934713408
        %v626 = vunpack.c.0.s8 %v625
        %v627 = vlaneseq
        %v628 = vshrl.u32 %v627, 7
        %v629 = vsub.s32 %v626, %v628
        %v630 = vrot.slane %v616, %v629
        %v631 = vcombine.high %v607, 0.0
        %v632 = vcombine.high %v614, 0.0
        %v633 = vcombine.high %v623, 0.0
        %v634 = vcombine.high %v630, 0.0
        %636 = vrot.lane.b32.xlu0 %v563, 16
        %v637 = vpop.permute.xlu0 %636
        %640 = vrot.lane.b32.xlu0 %v546, 32
        %v641 = vpop.permute.xlu0 %640
        %644 = vrot.lane.b32.xlu0 %v564, 48
        %v645 = vpop.permute.xlu0 %644
        %648 = vrot.lane.b32.xlu0 %v555, 64
        %v649 = vpop.permute.xlu0 %648
        %652 = vrot.lane.b32.xlu0 %v565, 80
        %v653 = vpop.permute.xlu0 %652
        %656 = vrot.lane.b32.xlu0 %v562, 96
        %v657 = vpop.permute.xlu0 %656
        %660 = vrot.lane.b32.xlu0 %v566, 112
        %v661 = vpop.permute.xlu0 %660
        %664 = vrot.lane.b32.xlu0 %v631, 16
        %v665 = vpop.permute.xlu0 %664
        %668 = vrot.lane.b32.xlu0 %v614, 32
        %v669 = vpop.permute.xlu0 %668
        %672 = vrot.lane.b32.xlu0 %v632, 48
        %v673 = vpop.permute.xlu0 %672
        %676 = vrot.lane.b32.xlu0 %v623, 64
        %v677 = vpop.permute.xlu0 %676
        %680 = vrot.lane.b32.xlu0 %v633, 80
        %v681 = vpop.permute.xlu0 %680
        %684 = vrot.lane.b32.xlu0 %v630, 96
        %v685 = vpop.permute.xlu0 %684
        %688 = vrot.lane.b32.xlu0 %v634, 112
        %v689 = vpop.permute.xlu0 %688
        %v691 = vsel %vm454, %v539, %v637
        %v692 = vsel %vm456, %v691, %v641
        %v693 = vsel %vm458, %v692, %v645
        %v694 = vsel %vm460, %v693, %v649
        %v695 = vsel %vm462, %v694, %v653
        %v696 = vsel %vm464, %v695, %v657
        %v697 = vsel %vm466, %v696, %v661
        %v698 = vsel %vm454, %v607, %v665
        %v699 = vsel %vm456, %v698, %v669
        %v700 = vsel %vm458, %v699, %v673
        %v701 = vsel %vm460, %v700, %v677
        %v702 = vsel %vm462, %v701, %v681
        %v703 = vsel %vm464, %v702, %v685
        %v704 = vsel %vm466, %v703, %v689
        %705 = vrot.lane.b32.xlu0 %v220, 119
        %v706 = vpop.permute.xlu0 %705
        %707 = vrot.lane.b32.xlu0 %v222, 119
        %v708 = vpop.permute.xlu0 %707
        %709 = vrot.lane.b32.xlu0 %v225, 119
        %v710 = vpop.permute.xlu0 %709
        %711 = vrot.lane.b32.xlu0 %v227, 119
        %v712 = vpop.permute.xlu0 %711
        %713 = vrot.lane.b32.xlu0 %v230, 119
        %v714 = vpop.permute.xlu0 %713
        %715 = vrot.lane.b32.xlu0 %v232, 119
        %v716 = vpop.permute.xlu0 %715
        %717 = vrot.lane.b32.xlu0 %v235, 119
        %v718 = vpop.permute.xlu0 %717
        %719 = vrot.lane.b32.xlu0 %v237, 119
        %v720 = vpop.permute.xlu0 %719
        %v729 = vcombine.low %v706, %v714
        %v730 = vcombine.high %v706, %v714
        %v732 = vunpack.c.l.s4 1983009808
        %v733 = vunpack.c.0.s8 %v732
        %v734 = vlaneseq
        %v735 = vshrl.u32 %v734, 7
        %v736 = vsub.s32 %v733, %v735
        %v737 = vrot.slane %v729, %v736
        %v739 = vunpack.c.l.s4 1983009808
        %v740 = vunpack.c.0.s8 %v739
        %v741 = vlaneseq
        %v742 = vshrl.u32 %v741, 7
        %v743 = vsub.s32 %v740, %v742
        %v744 = vrot.slane %v730, %v743
        %v745 = vcombine.low %v710, %v718
        %v746 = vcombine.high %v710, %v718
        %v748 = vunpack.c.l.s4 1983009808
        %v749 = vunpack.c.0.s8 %v748
        %v750 = vlaneseq
        %v751 = vshrl.u32 %v750, 7
        %v752 = vsub.s32 %v749, %v751
        %v753 = vrot.slane %v745, %v752
        %v755 = vunpack.c.l.s4 1983009808
        %v756 = vunpack.c.0.s8 %v755
        %v757 = vlaneseq
        %v758 = vshrl.u32 %v757, 7
        %v759 = vsub.s32 %v756, %v758
        %v760 = vrot.slane %v746, %v759
        %v761 = vcombine.low %v737, %v753
        %v762 = vcombine.high %v737, %v753
        %v764 = vunpack.c.l.s4 1934713408
        %v765 = vunpack.c.0.s8 %v764
        %v766 = vlaneseq
        %v767 = vshrl.u32 %v766, 7
        %v768 = vsub.s32 %v765, %v767
        %v769 = vrot.slane %v761, %v768
        %v771 = vunpack.c.l.s4 1934713408
        %v772 = vunpack.c.0.s8 %v771
        %v773 = vlaneseq
        %v774 = vshrl.u32 %v773, 7
        %v775 = vsub.s32 %v772, %v774
        %v776 = vrot.slane %v762, %v775
        %v777 = vcombine.low %v744, %v760
        %v778 = vcombine.high %v744, %v760
        %v780 = vunpack.c.l.s4 1934713408
        %v781 = vunpack.c.0.s8 %v780
        %v782 = vlaneseq
        %v783 = vshrl.u32 %v782, 7
        %v784 = vsub.s32 %v781, %v783
        %v785 = vrot.slane %v777, %v784
        %v787 = vunpack.c.l.s4 1934713408
        %v788 = vunpack.c.0.s8 %v787
        %v789 = vlaneseq
        %v790 = vshrl.u32 %v789, 7
        %v791 = vsub.s32 %v788, %v790
        %v792 = vrot.slane %v778, %v791
        %v793 = vcombine.high %v769, 0.0
        %v794 = vcombine.high %v776, 0.0
        %v795 = vcombine.high %v785, 0.0
        %v796 = vcombine.high %v792, 0.0
        %v797 = vcombine.low %v708, %v716
        %v798 = vcombine.high %v708, %v716
        %v800 = vunpack.c.l.s4 1983009808
        %v801 = vunpack.c.0.s8 %v800
        %v802 = vlaneseq
        %v803 = vshrl.u32 %v802, 7
        %v804 = vsub.s32 %v801, %v803
        %v805 = vrot.slane %v797, %v804
        %v807 = vunpack.c.l.s4 1983009808
        %v808 = vunpack.c.0.s8 %v807
        %v809 = vlaneseq
        %v810 = vshrl.u32 %v809, 7
        %v811 = vsub.s32 %v808, %v810
        %v812 = vrot.slane %v798, %v811
        %v813 = vcombine.low %v712, %v720
        %v814 = vcombine.high %v712, %v720
        %v816 = vunpack.c.l.s4 1983009808
        %v817 = vunpack.c.0.s8 %v816
        %v818 = vlaneseq
        %v819 = vshrl.u32 %v818, 7
        %v820 = vsub.s32 %v817, %v819
        %v821 = vrot.slane %v813, %v820
        %v823 = vunpack.c.l.s4 1983009808
        %v824 = vunpack.c.0.s8 %v823
        %v825 = vlaneseq
        %v826 = vshrl.u32 %v825, 7
        %v827 = vsub.s32 %v824, %v826
        %v828 = vrot.slane %v814, %v827
        %v829 = vcombine.low %v805, %v821
        %v830 = vcombine.high %v805, %v821
        %v832 = vunpack.c.l.s4 1934713408
        %v833 = vunpack.c.0.s8 %v832
        %v834 = vlaneseq
        %v835 = vshrl.u32 %v834, 7
        %v836 = vsub.s32 %v833, %v835
        %v837 = vrot.slane %v829, %v836
        %v839 = vunpack.c.l.s4 1934713408
        %v840 = vunpack.c.0.s8 %v839
        %v841 = vlaneseq
        %v842 = vshrl.u32 %v841, 7
        %v843 = vsub.s32 %v840, %v842
        %v844 = vrot.slane %v830, %v843
        %v845 = vcombine.low %v812, %v828
        %v846 = vcombine.high %v812, %v828
        %v848 = vunpack.c.l.s4 1934713408
        %v849 = vunpack.c.0.s8 %v848
        %v850 = vlaneseq
        %v851 = vshrl.u32 %v850, 7
        %v852 = vsub.s32 %v849, %v851
        %v853 = vrot.slane %v845, %v852
        %v855 = vunpack.c.l.s4 1934713408
        %v856 = vunpack.c.0.s8 %v855
        %v857 = vlaneseq
        %v858 = vshrl.u32 %v857, 7
        %v859 = vsub.s32 %v856, %v858
        %v860 = vrot.slane %v846, %v859
        %v861 = vcombine.high %v837, 0.0
        %v862 = vcombine.high %v844, 0.0
        %v863 = vcombine.high %v853, 0.0
        %v864 = vcombine.high %v860, 0.0
        %866 = vrot.lane.b32.xlu0 %v793, 16
        %v867 = vpop.permute.xlu0 %866
        %870 = vrot.lane.b32.xlu0 %v776, 32
        %v871 = vpop.permute.xlu0 %870
        %874 = vrot.lane.b32.xlu0 %v794, 48
        %v875 = vpop.permute.xlu0 %874
        %878 = vrot.lane.b32.xlu0 %v785, 64
        %v879 = vpop.permute.xlu0 %878
        %882 = vrot.lane.b32.xlu0 %v795, 80
        %v883 = vpop.permute.xlu0 %882
        %886 = vrot.lane.b32.xlu0 %v792, 96
        %v887 = vpop.permute.xlu0 %886
        %890 = vrot.lane.b32.xlu0 %v796, 112
        %v891 = vpop.permute.xlu0 %890
        %894 = vrot.lane.b32.xlu0 %v861, 16
        %v895 = vpop.permute.xlu0 %894
        %898 = vrot.lane.b32.xlu0 %v844, 32
        %v899 = vpop.permute.xlu0 %898
        %902 = vrot.lane.b32.xlu0 %v862, 48
        %v903 = vpop.permute.xlu0 %902
        %906 = vrot.lane.b32.xlu0 %v853, 64
        %v907 = vpop.permute.xlu0 %906
        %910 = vrot.lane.b32.xlu0 %v863, 80
        %v911 = vpop.permute.xlu0 %910
        %914 = vrot.lane.b32.xlu0 %v860, 96
        %v915 = vpop.permute.xlu0 %914
        %918 = vrot.lane.b32.xlu0 %v864, 112
        %v919 = vpop.permute.xlu0 %918
        %v921 = vsel %vm454, %v769, %v867
        %v922 = vsel %vm456, %v921, %v871
        %v923 = vsel %vm458, %v922, %v875
        %v924 = vsel %vm460, %v923, %v879
        %v925 = vsel %vm462, %v924, %v883
        %v926 = vsel %vm464, %v925, %v887
        %v927 = vsel %vm466, %v926, %v891
        %v928 = vsel %vm454, %v837, %v895
        %v929 = vsel %vm456, %v928, %v899
        %v930 = vsel %vm458, %v929, %v903
        %v931 = vsel %vm460, %v930, %v907
        %v932 = vsel %vm462, %v931, %v911
        %v933 = vsel %vm464, %v932, %v915
        %v934 = vsel %vm466, %v933, %v919
        %935 = vrot.lane.b32.xlu0 %v190, 121
        %v936 = vpop.permute.xlu0 %935
        %937 = vrot.lane.b32.xlu0 %v191, 121
        %v938 = vpop.permute.xlu0 %937
        %939 = vrot.lane.b32.xlu0 %v194, 121
        %v940 = vpop.permute.xlu0 %939
        %941 = vrot.lane.b32.xlu0 %v195, 121
        %v942 = vpop.permute.xlu0 %941
        %943 = vrot.lane.b32.xlu0 %v198, 121
        %v944 = vpop.permute.xlu0 %943
        %945 = vrot.lane.b32.xlu0 %v199, 121
        %v946 = vpop.permute.xlu0 %945
        %947 = vrot.lane.b32.xlu0 %v202, 121
        %v948 = vpop.permute.xlu0 %947
        %949 = vrot.lane.b32.xlu0 %v203, 121
        %v950 = vpop.permute.xlu0 %949
        %v959 = vcombine.low %v936, %v944
        %v960 = vcombine.high %v936, %v944
        %v962 = vunpack.c.l.s4 1983009808
        %v963 = vunpack.c.0.s8 %v962
        %v964 = vlaneseq
        %v965 = vshrl.u32 %v964, 7
        %v966 = vsub.s32 %v963, %v965
        %v967 = vrot.slane %v959, %v966
        %v969 = vunpack.c.l.s4 1983009808
        %v970 = vunpack.c.0.s8 %v969
        %v971 = vlaneseq
        %v972 = vshrl.u32 %v971, 7
        %v973 = vsub.s32 %v970, %v972
        %v974 = vrot.slane %v960, %v973
        %v975 = vcombine.low %v940, %v948
        %v976 = vcombine.high %v940, %v948
        %v978 = vunpack.c.l.s4 1983009808
        %v979 = vunpack.c.0.s8 %v978
        %v980 = vlaneseq
        %v981 = vshrl.u32 %v980, 7
        %v982 = vsub.s32 %v979, %v981
        %v983 = vrot.slane %v975, %v982
        %v985 = vunpack.c.l.s4 1983009808
        %v986 = vunpack.c.0.s8 %v985
        %v987 = vlaneseq
        %v988 = vshrl.u32 %v987, 7
        %v989 = vsub.s32 %v986, %v988
        %v990 = vrot.slane %v976, %v989
        %v991 = vcombine.low %v967, %v983
        %v992 = vcombine.high %v967, %v983
        %v994 = vunpack.c.l.s4 1934713408
        %v995 = vunpack.c.0.s8 %v994
        %v996 = vlaneseq
        %v997 = vshrl.u32 %v996, 7
        %v998 = vsub.s32 %v995, %v997
        %v999 = vrot.slane %v991, %v998
        %v1001 = vunpack.c.l.s4 1934713408
        %v1002 = vunpack.c.0.s8 %v1001
        %v1003 = vlaneseq
        %v1004 = vshrl.u32 %v1003, 7
        %v1005 = vsub.s32 %v1002, %v1004
        %v1006 = vrot.slane %v992, %v1005
        %v1007 = vcombine.low %v974, %v990
        %v1008 = vcombine.high %v974, %v990
        %v1010 = vunpack.c.l.s4 1934713408
        %v1011 = vunpack.c.0.s8 %v1010
        %v1012 = vlaneseq
        %v1013 = vshrl.u32 %v1012, 7
        %v1014 = vsub.s32 %v1011, %v1013
        %v1015 = vrot.slane %v1007, %v1014
        %v1017 = vunpack.c.l.s4 1934713408
        %v1018 = vunpack.c.0.s8 %v1017
        %v1019 = vlaneseq
        %v1020 = vshrl.u32 %v1019, 7
        %v1021 = vsub.s32 %v1018, %v1020
        %v1022 = vrot.slane %v1008, %v1021
        %v1023 = vcombine.high %v999, 0.0
        %v1024 = vcombine.high %v1006, 0.0
        %v1025 = vcombine.high %v1015, 0.0
        %v1026 = vcombine.high %v1022, 0.0
        %v1027 = vcombine.low %v938, %v946
        %v1028 = vcombine.high %v938, %v946
        %v1030 = vunpack.c.l.s4 1983009808
        %v1031 = vunpack.c.0.s8 %v1030
        %v1032 = vlaneseq
        %v1033 = vshrl.u32 %v1032, 7
        %v1034 = vsub.s32 %v1031, %v1033
        %v1035 = vrot.slane %v1027, %v1034
        %v1037 = vunpack.c.l.s4 1983009808
        %v1038 = vunpack.c.0.s8 %v1037
        %v1039 = vlaneseq
        %v1040 = vshrl.u32 %v1039, 7
        %v1041 = vsub.s32 %v1038, %v1040
        %v1042 = vrot.slane %v1028, %v1041
        %v1043 = vcombine.low %v942, %v950
        %v1044 = vcombine.high %v942, %v950
        %v1046 = vunpack.c.l.s4 1983009808
        %v1047 = vunpack.c.0.s8 %v1046
        %v1048 = vlaneseq
        %v1049 = vshrl.u32 %v1048, 7
        %v1050 = vsub.s32 %v1047, %v1049
        %v1051 = vrot.slane %v1043, %v1050
        %v1053 = vunpack.c.l.s4 1983009808
        %v1054 = vunpack.c.0.s8 %v1053
        %v1055 = vlaneseq
        %v1056 = vshrl.u32 %v1055, 7
        %v1057 = vsub.s32 %v1054, %v1056
        %v1058 = vrot.slane %v1044, %v1057
        %v1059 = vcombine.low %v1035, %v1051
        %v1060 = vcombine.high %v1035, %v1051
        %v1062 = vunpack.c.l.s4 1934713408
        %v1063 = vunpack.c.0.s8 %v1062
        %v1064 = vlaneseq
        %v1065 = vshrl.u32 %v1064, 7
        %v1066 = vsub.s32 %v1063, %v1065
        %v1067 = vrot.slane %v1059, %v1066
        %v1069 = vunpack.c.l.s4 1934713408
        %v1070 = vunpack.c.0.s8 %v1069
        %v1071 = vlaneseq
        %v1072 = vshrl.u32 %v1071, 7
        %v1073 = vsub.s32 %v1070, %v1072
        %v1074 = vrot.slane %v1060, %v1073
        %v1075 = vcombine.low %v1042, %v1058
        %v1076 = vcombine.high %v1042, %v1058
        %v1078 = vunpack.c.l.s4 1934713408
        %v1079 = vunpack.c.0.s8 %v1078
        %v1080 = vlaneseq
        %v1081 = vshrl.u32 %v1080, 7
        %v1082 = vsub.s32 %v1079, %v1081
        %v1083 = vrot.slane %v1075, %v1082
        %v1085 = vunpack.c.l.s4 1934713408
        %v1086 = vunpack.c.0.s8 %v1085
        %v1087 = vlaneseq
        %v1088 = vshrl.u32 %v1087, 7
        %v1089 = vsub.s32 %v1086, %v1088
        %v1090 = vrot.slane %v1076, %v1089
        %v1091 = vcombine.high %v1067, 0.0
        %v1092 = vcombine.high %v1074, 0.0
        %v1093 = vcombine.high %v1083, 0.0
        %v1094 = vcombine.high %v1090, 0.0
        %1096 = vrot.lane.b32.xlu0 %v1023, 16
        %v1097 = vpop.permute.xlu0 %1096
        %1100 = vrot.lane.b32.xlu0 %v1006, 32
        %v1101 = vpop.permute.xlu0 %1100
        %1104 = vrot.lane.b32.xlu0 %v1024, 48
        %v1105 = vpop.permute.xlu0 %1104
        %1108 = vrot.lane.b32.xlu0 %v1015, 64
        %v1109 = vpop.permute.xlu0 %1108
        %1112 = vrot.lane.b32.xlu0 %v1025, 80
        %v1113 = vpop.permute.xlu0 %1112
        %1116 = vrot.lane.b32.xlu0 %v1022, 96
        %v1117 = vpop.permute.xlu0 %1116
        %1120 = vrot.lane.b32.xlu0 %v1026, 112
        %v1121 = vpop.permute.xlu0 %1120
        %1124 = vrot.lane.b32.xlu0 %v1091, 16
        %v1125 = vpop.permute.xlu0 %1124
        %1128 = vrot.lane.b32.xlu0 %v1074, 32
        %v1129 = vpop.permute.xlu0 %1128
        %1132 = vrot.lane.b32.xlu0 %v1092, 48
        %v1133 = vpop.permute.xlu0 %1132
        %1136 = vrot.lane.b32.xlu0 %v1083, 64
        %v1137 = vpop.permute.xlu0 %1136
        %1140 = vrot.lane.b32.xlu0 %v1093, 80
        %v1141 = vpop.permute.xlu0 %1140
        %1144 = vrot.lane.b32.xlu0 %v1090, 96
        %v1145 = vpop.permute.xlu0 %1144
        %1148 = vrot.lane.b32.xlu0 %v1094, 112
        %v1149 = vpop.permute.xlu0 %1148
        %v1151 = vsel %vm454, %v999, %v1097
        %v1152 = vsel %vm456, %v1151, %v1101
        %v1153 = vsel %vm458, %v1152, %v1105
        %v1154 = vsel %vm460, %v1153, %v1109
        %v1155 = vsel %vm462, %v1154, %v1113
        %v1156 = vsel %vm464, %v1155, %v1117
        %v1157 = vsel %vm466, %v1156, %v1121
        %v1158 = vsel %vm454, %v1067, %v1125
        %v1159 = vsel %vm456, %v1158, %v1129
        %v1160 = vsel %vm458, %v1159, %v1133
        %v1161 = vsel %vm460, %v1160, %v1137
        %v1162 = vsel %vm462, %v1161, %v1141
        %v1163 = vsel %vm464, %v1162, %v1145
        %v1164 = vsel %vm466, %v1163, %v1149
        %1165 = vrot.lane.b32.xlu0 %v190, 120
        %v1166 = vpop.permute.xlu0 %1165
        %1167 = vrot.lane.b32.xlu0 %v191, 120
        %v1168 = vpop.permute.xlu0 %1167
        %1169 = vrot.lane.b32.xlu0 %v194, 120
        %v1170 = vpop.permute.xlu0 %1169
        %1171 = vrot.lane.b32.xlu0 %v195, 120
        %v1172 = vpop.permute.xlu0 %1171
        %1173 = vrot.lane.b32.xlu0 %v198, 120
        %v1174 = vpop.permute.xlu0 %1173
        %1175 = vrot.lane.b32.xlu0 %v199, 120
        %v1176 = vpop.permute.xlu0 %1175
        %1177 = vrot.lane.b32.xlu0 %v202, 120
        %v1178 = vpop.permute.xlu0 %1177
        %1179 = vrot.lane.b32.xlu0 %v203, 120
        %v1180 = vpop.permute.xlu0 %1179
        %v1189 = vcombine.low %v1166, %v1174
        %v1190 = vcombine.high %v1166, %v1174
        %v1192 = vunpack.c.l.s4 1983009808
        %v1193 = vunpack.c.0.s8 %v1192
        %v1194 = vlaneseq
        %v1195 = vshrl.u32 %v1194, 7
        %v1196 = vsub.s32 %v1193, %v1195
        %v1197 = vrot.slane %v1189, %v1196
        %v1199 = vunpack.c.l.s4 1983009808
        %v1200 = vunpack.c.0.s8 %v1199
        %v1201 = vlaneseq
        %v1202 = vshrl.u32 %v1201, 7
        %v1203 = vsub.s32 %v1200, %v1202
        %v1204 = vrot.slane %v1190, %v1203
        %v1205 = vcombine.low %v1170, %v1178
        %v1206 = vcombine.high %v1170, %v1178
        %v1208 = vunpack.c.l.s4 1983009808
        %v1209 = vunpack.c.0.s8 %v1208
        %v1210 = vlaneseq
        %v1211 = vshrl.u32 %v1210, 7
        %v1212 = vsub.s32 %v1209, %v1211
        %v1213 = vrot.slane %v1205, %v1212
        %v1215 = vunpack.c.l.s4 1983009808
        %v1216 = vunpack.c.0.s8 %v1215
        %v1217 = vlaneseq
        %v1218 = vshrl.u32 %v1217, 7
        %v1219 = vsub.s32 %v1216, %v1218
        %v1220 = vrot.slane %v1206, %v1219
        %v1221 = vcombine.low %v1197, %v1213
        %v1222 = vcombine.high %v1197, %v1213
        %v1224 = vunpack.c.l.s4 1934713408
        %v1225 = vunpack.c.0.s8 %v1224
        %v1226 = vlaneseq
        %v1227 = vshrl.u32 %v1226, 7
        %v1228 = vsub.s32 %v1225, %v1227
        %v1229 = vrot.slane %v1221, %v1228
        %v1231 = vunpack.c.l.s4 1934713408
        %v1232 = vunpack.c.0.s8 %v1231
        %v1233 = vlaneseq
        %v1234 = vshrl.u32 %v1233, 7
        %v1235 = vsub.s32 %v1232, %v1234
        %v1236 = vrot.slane %v1222, %v1235
        %v1237 = vcombine.low %v1204, %v1220
        %v1238 = vcombine.high %v1204, %v1220
        %v1240 = vunpack.c.l.s4 1934713408
        %v1241 = vunpack.c.0.s8 %v1240
        %v1242 = vlaneseq
        %v1243 = vshrl.u32 %v1242, 7
        %v1244 = vsub.s32 %v1241, %v1243
        %v1245 = vrot.slane %v1237, %v1244
        %v1247 = vunpack.c.l.s4 1934713408
        %v1248 = vunpack.c.0.s8 %v1247
        %v1249 = vlaneseq
        %v1250 = vshrl.u32 %v1249, 7
        %v1251 = vsub.s32 %v1248, %v1250
        %v1252 = vrot.slane %v1238, %v1251
        %v1253 = vcombine.high %v1229, 0.0
        %v1254 = vcombine.high %v1236, 0.0
        %v1255 = vcombine.high %v1245, 0.0
        %v1256 = vcombine.high %v1252, 0.0
        %v1257 = vcombine.low %v1168, %v1176
        %v1258 = vcombine.high %v1168, %v1176
        %v1260 = vunpack.c.l.s4 1983009808
        %v1261 = vunpack.c.0.s8 %v1260
        %v1262 = vlaneseq
        %v1263 = vshrl.u32 %v1262, 7
        %v1264 = vsub.s32 %v1261, %v1263
        %v1265 = vrot.slane %v1257, %v1264
        %v1267 = vunpack.c.l.s4 1983009808
        %v1268 = vunpack.c.0.s8 %v1267
        %v1269 = vlaneseq
        %v1270 = vshrl.u32 %v1269, 7
        %v1271 = vsub.s32 %v1268, %v1270
        %v1272 = vrot.slane %v1258, %v1271
        %v1273 = vcombine.low %v1172, %v1180
        %v1274 = vcombine.high %v1172, %v1180
        %v1276 = vunpack.c.l.s4 1983009808
        %v1277 = vunpack.c.0.s8 %v1276
        %v1278 = vlaneseq
        %v1279 = vshrl.u32 %v1278, 7
        %v1280 = vsub.s32 %v1277, %v1279
        %v1281 = vrot.slane %v1273, %v1280
        %v1283 = vunpack.c.l.s4 1983009808
        %v1284 = vunpack.c.0.s8 %v1283
        %v1285 = vlaneseq
        %v1286 = vshrl.u32 %v1285, 7
        %v1287 = vsub.s32 %v1284, %v1286
        %v1288 = vrot.slane %v1274, %v1287
        %v1289 = vcombine.low %v1265, %v1281
        %v1290 = vcombine.high %v1265, %v1281
        %v1292 = vunpack.c.l.s4 1934713408
        %v1293 = vunpack.c.0.s8 %v1292
        %v1294 = vlaneseq
        %v1295 = vshrl.u32 %v1294, 7
        %v1296 = vsub.s32 %v1293, %v1295
        %v1297 = vrot.slane %v1289, %v1296
        %v1299 = vunpack.c.l.s4 1934713408
        %v1300 = vunpack.c.0.s8 %v1299
        %v1301 = vlaneseq
        %v1302 = vshrl.u32 %v1301, 7
        %v1303 = vsub.s32 %v1300, %v1302
        %v1304 = vrot.slane %v1290, %v1303
        %v1305 = vcombine.low %v1272, %v1288
        %v1306 = vcombine.high %v1272, %v1288
        %v1308 = vunpack.c.l.s4 1934713408
        %v1309 = vunpack.c.0.s8 %v1308
        %v1310 = vlaneseq
        %v1311 = vshrl.u32 %v1310, 7
        %v1312 = vsub.s32 %v1309, %v1311
        %v1313 = vrot.slane %v1305, %v1312
        %v1315 = vunpack.c.l.s4 1934713408
        %v1316 = vunpack.c.0.s8 %v1315
        %v1317 = vlaneseq
        %v1318 = vshrl.u32 %v1317, 7
        %v1319 = vsub.s32 %v1316, %v1318
        %v1320 = vrot.slane %v1306, %v1319
        %v1321 = vcombine.high %v1297, 0.0
        %v1322 = vcombine.high %v1304, 0.0
        %v1323 = vcombine.high %v1313, 0.0
        %v1324 = vcombine.high %v1320, 0.0
        %1326 = vrot.lane.b32.xlu0 %v1253, 16
        %v1327 = vpop.permute.xlu0 %1326
        %1330 = vrot.lane.b32.xlu0 %v1236, 32
        %v1331 = vpop.permute.xlu0 %1330
        %1334 = vrot.lane.b32.xlu0 %v1254, 48
        %v1335 = vpop.permute.xlu0 %1334
        %1338 = vrot.lane.b32.xlu0 %v1245, 64
        %v1339 = vpop.permute.xlu0 %1338
        %1342 = vrot.lane.b32.xlu0 %v1255, 80
        %v1343 = vpop.permute.xlu0 %1342
        %1346 = vrot.lane.b32.xlu0 %v1252, 96
        %v1347 = vpop.permute.xlu0 %1346
        %1350 = vrot.lane.b32.xlu0 %v1256, 112
        %v1351 = vpop.permute.xlu0 %1350
        %1354 = vrot.lane.b32.xlu0 %v1321, 16
        %v1355 = vpop.permute.xlu0 %1354
        %1358 = vrot.lane.b32.xlu0 %v1304, 32
        %v1359 = vpop.permute.xlu0 %1358
        %1362 = vrot.lane.b32.xlu0 %v1322, 48
        %v1363 = vpop.permute.xlu0 %1362
        %1366 = vrot.lane.b32.xlu0 %v1313, 64
        %v1367 = vpop.permute.xlu0 %1366
        %1370 = vrot.lane.b32.xlu0 %v1323, 80
        %v1371 = vpop.permute.xlu0 %1370
        %1374 = vrot.lane.b32.xlu0 %v1320, 96
        %v1375 = vpop.permute.xlu0 %1374
        %1378 = vrot.lane.b32.xlu0 %v1324, 112
        %v1379 = vpop.permute.xlu0 %1378
        %v1381 = vsel %vm454, %v1229, %v1327
        %v1382 = vsel %vm456, %v1381, %v1331
        %v1383 = vsel %vm458, %v1382, %v1335
        %v1384 = vsel %vm460, %v1383, %v1339
        %v1385 = vsel %vm462, %v1384, %v1343
        %v1386 = vsel %vm464, %v1385, %v1347
        %v1387 = vsel %vm466, %v1386, %v1351
        %v1388 = vsel %vm454, %v1297, %v1355
        %v1389 = vsel %vm456, %v1388, %v1359
        %v1390 = vsel %vm458, %v1389, %v1363
        %v1391 = vsel %vm460, %v1390, %v1367
        %v1392 = vsel %vm462, %v1391, %v1371
        %v1393 = vsel %vm464, %v1392, %v1375
        %v1394 = vsel %vm466, %v1393, %v1379
        %1395 = vrot.lane.b32.xlu0 %v190, 119
        %v1396 = vpop.permute.xlu0 %1395
        %1397 = vrot.lane.b32.xlu0 %v191, 119
        %v1398 = vpop.permute.xlu0 %1397
        %1399 = vrot.lane.b32.xlu0 %v194, 119
        %v1400 = vpop.permute.xlu0 %1399
        %1401 = vrot.lane.b32.xlu0 %v195, 119
        %v1402 = vpop.permute.xlu0 %1401
        %1403 = vrot.lane.b32.xlu0 %v198, 119
        %v1404 = vpop.permute.xlu0 %1403
        %1405 = vrot.lane.b32.xlu0 %v199, 119
        %v1406 = vpop.permute.xlu0 %1405
        %1407 = vrot.lane.b32.xlu0 %v202, 119
        %v1408 = vpop.permute.xlu0 %1407
        %1409 = vrot.lane.b32.xlu0 %v203, 119
        %v1410 = vpop.permute.xlu0 %1409
        %v1419 = vcombine.low %v1396, %v1404
        %v1420 = vcombine.high %v1396, %v1404
        %v1422 = vunpack.c.l.s4 1983009808
        %v1423 = vunpack.c.0.s8 %v1422
        %v1424 = vlaneseq
        %v1425 = vshrl.u32 %v1424, 7
        %v1426 = vsub.s32 %v1423, %v1425
        %v1427 = vrot.slane %v1419, %v1426
        %v1429 = vunpack.c.l.s4 1983009808
        %v1430 = vunpack.c.0.s8 %v1429
        %v1431 = vlaneseq
        %v1432 = vshrl.u32 %v1431, 7
        %v1433 = vsub.s32 %v1430, %v1432
        %v1434 = vrot.slane %v1420, %v1433
        %v1435 = vcombine.low %v1400, %v1408
        %v1436 = vcombine.high %v1400, %v1408
        %v1438 = vunpack.c.l.s4 1983009808
        %v1439 = vunpack.c.0.s8 %v1438
        %v1440 = vlaneseq
        %v1441 = vshrl.u32 %v1440, 7
        %v1442 = vsub.s32 %v1439, %v1441
        %v1443 = vrot.slane %v1435, %v1442
        %v1445 = vunpack.c.l.s4 1983009808
        %v1446 = vunpack.c.0.s8 %v1445
        %v1447 = vlaneseq
        %v1448 = vshrl.u32 %v1447, 7
        %v1449 = vsub.s32 %v1446, %v1448
        %v1450 = vrot.slane %v1436, %v1449
        %v1451 = vcombine.low %v1427, %v1443
        %v1452 = vcombine.high %v1427, %v1443
        %v1454 = vunpack.c.l.s4 1934713408
        %v1455 = vunpack.c.0.s8 %v1454
        %v1456 = vlaneseq
        %v1457 = vshrl.u32 %v1456, 7
        %v1458 = vsub.s32 %v1455, %v1457
        %v1459 = vrot.slane %v1451, %v1458
        %v1461 = vunpack.c.l.s4 1934713408
        %v1462 = vunpack.c.0.s8 %v1461
        %v1463 = vlaneseq
        %v1464 = vshrl.u32 %v1463, 7
        %v1465 = vsub.s32 %v1462, %v1464
        %v1466 = vrot.slane %v1452, %v1465
        %v1467 = vcombine.low %v1434, %v1450
        %v1468 = vcombine.high %v1434, %v1450
        %v1470 = vunpack.c.l.s4 1934713408
        %v1471 = vunpack.c.0.s8 %v1470
        %v1472 = vlaneseq
        %v1473 = vshrl.u32 %v1472, 7
        %v1474 = vsub.s32 %v1471, %v1473
        %v1475 = vrot.slane %v1467, %v1474
        %v1477 = vunpack.c.l.s4 1934713408
        %v1478 = vunpack.c.0.s8 %v1477
        %v1479 = vlaneseq
        %v1480 = vshrl.u32 %v1479, 7
        %v1481 = vsub.s32 %v1478, %v1480
        %v1482 = vrot.slane %v1468, %v1481
        %v1483 = vcombine.high %v1459, 0.0
        %v1484 = vcombine.high %v1466, 0.0
        %v1485 = vcombine.high %v1475, 0.0
        %v1486 = vcombine.high %v1482, 0.0
        %v1487 = vcombine.low %v1398, %v1406
        %v1488 = vcombine.high %v1398, %v1406
        %v1490 = vunpack.c.l.s4 1983009808
        %v1491 = vunpack.c.0.s8 %v1490
        %v1492 = vlaneseq
        %v1493 = vshrl.u32 %v1492, 7
        %v1494 = vsub.s32 %v1491, %v1493
        %v1495 = vrot.slane %v1487, %v1494
        %v1497 = vunpack.c.l.s4 1983009808
        %v1498 = vunpack.c.0.s8 %v1497
        %v1499 = vlaneseq
        %v1500 = vshrl.u32 %v1499, 7
        %v1501 = vsub.s32 %v1498, %v1500
        %v1502 = vrot.slane %v1488, %v1501
        %v1503 = vcombine.low %v1402, %v1410
        %v1504 = vcombine.high %v1402, %v1410
        %v1506 = vunpack.c.l.s4 1983009808
        %v1507 = vunpack.c.0.s8 %v1506
        %v1508 = vlaneseq
        %v1509 = vshrl.u32 %v1508, 7
        %v1510 = vsub.s32 %v1507, %v1509
        %v1511 = vrot.slane %v1503, %v1510
        %v1513 = vunpack.c.l.s4 1983009808
        %v1514 = vunpack.c.0.s8 %v1513
        %v1515 = vlaneseq
        %v1516 = vshrl.u32 %v1515, 7
        %v1517 = vsub.s32 %v1514, %v1516
        %v1518 = vrot.slane %v1504, %v1517
        %v1519 = vcombine.low %v1495, %v1511
        %v1520 = vcombine.high %v1495, %v1511
        %v1522 = vunpack.c.l.s4 1934713408
        %v1523 = vunpack.c.0.s8 %v1522
        %v1524 = vlaneseq
        %v1525 = vshrl.u32 %v1524, 7
        %v1526 = vsub.s32 %v1523, %v1525
        %v1527 = vrot.slane %v1519, %v1526
        %v1529 = vunpack.c.l.s4 1934713408
        %v1530 = vunpack.c.0.s8 %v1529
        %v1531 = vlaneseq
        %v1532 = vshrl.u32 %v1531, 7
        %v1533 = vsub.s32 %v1530, %v1532
        %v1534 = vrot.slane %v1520, %v1533
        %v1535 = vcombine.low %v1502, %v1518
        %v1536 = vcombine.high %v1502, %v1518
        %v1538 = vunpack.c.l.s4 1934713408
        %v1539 = vunpack.c.0.s8 %v1538
        %v1540 = vlaneseq
        %v1541 = vshrl.u32 %v1540, 7
        %v1542 = vsub.s32 %v1539, %v1541
        %v1543 = vrot.slane %v1535, %v1542
        %v1545 = vunpack.c.l.s4 1934713408
        %v1546 = vunpack.c.0.s8 %v1545
        %v1547 = vlaneseq
        %v1548 = vshrl.u32 %v1547, 7
        %v1549 = vsub.s32 %v1546, %v1548
        %v1550 = vrot.slane %v1536, %v1549
        %v1551 = vcombine.high %v1527, 0.0
        %v1552 = vcombine.high %v1534, 0.0
        %v1553 = vcombine.high %v1543, 0.0
        %v1554 = vcombine.high %v1550, 0.0
        %1556 = vrot.lane.b32.xlu0 %v1483, 16
        %v1557 = vpop.permute.xlu0 %1556
        %1560 = vrot.lane.b32.xlu0 %v1466, 32
        %v1561 = vpop.permute.xlu0 %1560
        %1564 = vrot.lane.b32.xlu0 %v1484, 48
        %v1565 = vpop.permute.xlu0 %1564
        %1568 = vrot.lane.b32.xlu0 %v1475, 64
        %v1569 = vpop.permute.xlu0 %1568
        %1572 = vrot.lane.b32.xlu0 %v1485, 80
        %v1573 = vpop.permute.xlu0 %1572
        %1576 = vrot.lane.b32.xlu0 %v1482, 96
        %v1577 = vpop.permute.xlu0 %1576
        %1580 = vrot.lane.b32.xlu0 %v1486, 112
        %v1581 = vpop.permute.xlu0 %1580
        %1584 = vrot.lane.b32.xlu0 %v1551, 16
        %v1585 = vpop.permute.xlu0 %1584
        %1588 = vrot.lane.b32.xlu0 %v1534, 32
        %v1589 = vpop.permute.xlu0 %1588
        %1592 = vrot.lane.b32.xlu0 %v1552, 48
        %v1593 = vpop.permute.xlu0 %1592
        %1596 = vrot.lane.b32.xlu0 %v1543, 64
        %v1597 = vpop.permute.xlu0 %1596
        %1600 = vrot.lane.b32.xlu0 %v1553, 80
        %v1601 = vpop.permute.xlu0 %1600
        %1604 = vrot.lane.b32.xlu0 %v1550, 96
        %v1605 = vpop.permute.xlu0 %1604
        %1608 = vrot.lane.b32.xlu0 %v1554, 112
        %v1609 = vpop.permute.xlu0 %1608
        %v1611 = vsel %vm454, %v1459, %v1557
        %v1612 = vsel %vm456, %v1611, %v1561
        %v1613 = vsel %vm458, %v1612, %v1565
        %v1614 = vsel %vm460, %v1613, %v1569
        %v1615 = vsel %vm462, %v1614, %v1573
        %v1616 = vsel %vm464, %v1615, %v1577
        %v1617 = vsel %vm466, %v1616, %v1581
        %v1618 = vsel %vm454, %v1527, %v1585
        %v1619 = vsel %vm456, %v1618, %v1589
        %v1620 = vsel %vm458, %v1619, %v1593
        %v1621 = vsel %vm460, %v1620, %v1597
        %v1622 = vsel %vm462, %v1621, %v1601
        %v1623 = vsel %vm464, %v1622, %v1605
        %v1624 = vsel %vm466, %v1623, %v1609
        %vm1629 = vcmask 1046528
        %v1630 = vrot.slane %v190, 1
        %v1631 = vrot.slane %v191, 1
        %v1632 = vsel %vm1629, %v1630, %v1631
        %v1633 = vrot.slane %v192, 1
        %v1634 = vsel %vm1629, %v1631, %v1633
        %v1635 = vrot.slane %v194, 1
        %v1636 = vrot.slane %v195, 1
        %v1637 = vsel %vm1629, %v1635, %v1636
        %v1638 = vrot.slane %v196, 1
        %v1639 = vsel %vm1629, %v1636, %v1638
        %v1640 = vrot.slane %v198, 1
        %v1641 = vrot.slane %v199, 1
        %v1642 = vsel %vm1629, %v1640, %v1641
        %v1643 = vrot.slane %v200, 1
        %v1644 = vsel %vm1629, %v1641, %v1643
        %v1645 = vrot.slane %v202, 1
        %v1646 = vrot.slane %v203, 1
        %v1647 = vsel %vm1629, %v1645, %v1646
        %v1648 = vrot.slane %v204, 1
        %v1649 = vsel %vm1629, %v1646, %v1648
        %1650 = vrot.lane.b32.xlu0 %v1632, 121
        %v1651 = vpop.permute.xlu0 %1650
        %1652 = vrot.lane.b32.xlu0 %v1634, 121
        %v1653 = vpop.permute.xlu0 %1652
        %1654 = vrot.lane.b32.xlu0 %v1637, 121
        %v1655 = vpop.permute.xlu0 %1654
        %1656 = vrot.lane.b32.xlu0 %v1639, 121
        %v1657 = vpop.permute.xlu0 %1656
        %1658 = vrot.lane.b32.xlu0 %v1642, 121
        %v1659 = vpop.permute.xlu0 %1658
        %1660 = vrot.lane.b32.xlu0 %v1644, 121
        %v1661 = vpop.permute.xlu0 %1660
        %1662 = vrot.lane.b32.xlu0 %v1647, 121
        %v1663 = vpop.permute.xlu0 %1662
        %1664 = vrot.lane.b32.xlu0 %v1649, 121
        %v1665 = vpop.permute.xlu0 %1664
        %v1674 = vcombine.low %v1651, %v1659
        %v1675 = vcombine.high %v1651, %v1659
        %v1677 = vunpack.c.l.s4 1983009808
        %v1678 = vunpack.c.0.s8 %v1677
        %v1679 = vlaneseq
        %v1680 = vshrl.u32 %v1679, 7
        %v1681 = vsub.s32 %v1678, %v1680
        %v1682 = vrot.slane %v1674, %v1681
        %v1684 = vunpack.c.l.s4 1983009808
        %v1685 = vunpack.c.0.s8 %v1684
        %v1686 = vlaneseq
        %v1687 = vshrl.u32 %v1686, 7
        %v1688 = vsub.s32 %v1685, %v1687
        %v1689 = vrot.slane %v1675, %v1688
        %v1690 = vcombine.low %v1655, %v1663
        %v1691 = vcombine.high %v1655, %v1663
        %v1693 = vunpack.c.l.s4 1983009808
        %v1694 = vunpack.c.0.s8 %v1693
        %v1695 = vlaneseq
        %v1696 = vshrl.u32 %v1695, 7
        %v1697 = vsub.s32 %v1694, %v1696
        %v1698 = vrot.slane %v1690, %v1697
        %v1700 = vunpack.c.l.s4 1983009808
        %v1701 = vunpack.c.0.s8 %v1700
        %v1702 = vlaneseq
        %v1703 = vshrl.u32 %v1702, 7
        %v1704 = vsub.s32 %v1701, %v1703
        %v1705 = vrot.slane %v1691, %v1704
        %v1706 = vcombine.low %v1682, %v1698
        %v1707 = vcombine.high %v1682, %v1698
        %v1709 = vunpack.c.l.s4 1934713408
        %v1710 = vunpack.c.0.s8 %v1709
        %v1711 = vlaneseq
        %v1712 = vshrl.u32 %v1711, 7
        %v1713 = vsub.s32 %v1710, %v1712
        %v1714 = vrot.slane %v1706, %v1713
        %v1716 = vunpack.c.l.s4 1934713408
        %v1717 = vunpack.c.0.s8 %v1716
        %v1718 = vlaneseq
        %v1719 = vshrl.u32 %v1718, 7
        %v1720 = vsub.s32 %v1717, %v1719
        %v1721 = vrot.slane %v1707, %v1720
        %v1722 = vcombine.low %v1689, %v1705
        %v1723 = vcombine.high %v1689, %v1705
        %v1725 = vunpack.c.l.s4 1934713408
        %v1726 = vunpack.c.0.s8 %v1725
        %v1727 = vlaneseq
        %v1728 = vshrl.u32 %v1727, 7
        %v1729 = vsub.s32 %v1726, %v1728
        %v1730 = vrot.slane %v1722, %v1729
        %v1732 = vunpack.c.l.s4 1934713408
        %v1733 = vunpack.c.0.s8 %v1732
        %v1734 = vlaneseq
        %v1735 = vshrl.u32 %v1734, 7
        %v1736 = vsub.s32 %v1733, %v1735
        %v1737 = vrot.slane %v1723, %v1736
        %v1738 = vcombine.high %v1714, 0.0
        %v1739 = vcombine.high %v1721, 0.0
        %v1740 = vcombine.high %v1730, 0.0
        %v1741 = vcombine.high %v1737, 0.0
        %v1742 = vcombine.low %v1653, %v1661
        %v1743 = vcombine.high %v1653, %v1661
        %v1745 = vunpack.c.l.s4 1983009808
        %v1746 = vunpack.c.0.s8 %v1745
        %v1747 = vlaneseq
        %v1748 = vshrl.u32 %v1747, 7
        %v1749 = vsub.s32 %v1746, %v1748
        %v1750 = vrot.slane %v1742, %v1749
        %v1752 = vunpack.c.l.s4 1983009808
        %v1753 = vunpack.c.0.s8 %v1752
        %v1754 = vlaneseq
        %v1755 = vshrl.u32 %v1754, 7
        %v1756 = vsub.s32 %v1753, %v1755
        %v1757 = vrot.slane %v1743, %v1756
        %v1758 = vcombine.low %v1657, %v1665
        %v1759 = vcombine.high %v1657, %v1665
        %v1761 = vunpack.c.l.s4 1983009808
        %v1762 = vunpack.c.0.s8 %v1761
        %v1763 = vlaneseq
        %v1764 = vshrl.u32 %v1763, 7
        %v1765 = vsub.s32 %v1762, %v1764
        %v1766 = vrot.slane %v1758, %v1765
        %v1768 = vunpack.c.l.s4 1983009808
        %v1769 = vunpack.c.0.s8 %v1768
        %v1770 = vlaneseq
        %v1771 = vshrl.u32 %v1770, 7
        %v1772 = vsub.s32 %v1769, %v1771
        %v1773 = vrot.slane %v1759, %v1772
        %v1774 = vcombine.low %v1750, %v1766
        %v1775 = vcombine.high %v1750, %v1766
        %v1777 = vunpack.c.l.s4 1934713408
        %v1778 = vunpack.c.0.s8 %v1777
        %v1779 = vlaneseq
        %v1780 = vshrl.u32 %v1779, 7
        %v1781 = vsub.s32 %v1778, %v1780
        %v1782 = vrot.slane %v1774, %v1781
        %v1784 = vunpack.c.l.s4 1934713408
        %v1785 = vunpack.c.0.s8 %v1784
        %v1786 = vlaneseq
        %v1787 = vshrl.u32 %v1786, 7
        %v1788 = vsub.s32 %v1785, %v1787
        %v1789 = vrot.slane %v1775, %v1788
        %v1790 = vcombine.low %v1757, %v1773
        %v1791 = vcombine.high %v1757, %v1773
        %v1793 = vunpack.c.l.s4 1934713408
        %v1794 = vunpack.c.0.s8 %v1793
        %v1795 = vlaneseq
        %v1796 = vshrl.u32 %v1795, 7
        %v1797 = vsub.s32 %v1794, %v1796
        %v1798 = vrot.slane %v1790, %v1797
        %v1800 = vunpack.c.l.s4 1934713408
        %v1801 = vunpack.c.0.s8 %v1800
        %v1802 = vlaneseq
        %v1803 = vshrl.u32 %v1802, 7
        %v1804 = vsub.s32 %v1801, %v1803
        %v1805 = vrot.slane %v1791, %v1804
        %v1806 = vcombine.high %v1782, 0.0
        %v1807 = vcombine.high %v1789, 0.0
        %v1808 = vcombine.high %v1798, 0.0
        %v1809 = vcombine.high %v1805, 0.0
        %1811 = vrot.lane.b32.xlu0 %v1738, 16
        %v1812 = vpop.permute.xlu0 %1811
        %1815 = vrot.lane.b32.xlu0 %v1721, 32
        %v1816 = vpop.permute.xlu0 %1815
        %1819 = vrot.lane.b32.xlu0 %v1739, 48
        %v1820 = vpop.permute.xlu0 %1819
        %1823 = vrot.lane.b32.xlu0 %v1730, 64
        %v1824 = vpop.permute.xlu0 %1823
        %1827 = vrot.lane.b32.xlu0 %v1740, 80
        %v1828 = vpop.permute.xlu0 %1827
        %1831 = vrot.lane.b32.xlu0 %v1737, 96
        %v1832 = vpop.permute.xlu0 %1831
        %1835 = vrot.lane.b32.xlu0 %v1741, 112
        %v1836 = vpop.permute.xlu0 %1835
        %1839 = vrot.lane.b32.xlu0 %v1806, 16
        %v1840 = vpop.permute.xlu0 %1839
        %1843 = vrot.lane.b32.xlu0 %v1789, 32
        %v1844 = vpop.permute.xlu0 %1843
        %1847 = vrot.lane.b32.xlu0 %v1807, 48
        %v1848 = vpop.permute.xlu0 %1847
        %1851 = vrot.lane.b32.xlu0 %v1798, 64
        %v1852 = vpop.permute.xlu0 %1851
        %1855 = vrot.lane.b32.xlu0 %v1808, 80
        %v1856 = vpop.permute.xlu0 %1855
        %1859 = vrot.lane.b32.xlu0 %v1805, 96
        %v1860 = vpop.permute.xlu0 %1859
        %1863 = vrot.lane.b32.xlu0 %v1809, 112
        %v1864 = vpop.permute.xlu0 %1863
        %v1866 = vsel %vm454, %v1714, %v1812
        %v1867 = vsel %vm456, %v1866, %v1816
        %v1868 = vsel %vm458, %v1867, %v1820
        %v1869 = vsel %vm460, %v1868, %v1824
        %v1870 = vsel %vm462, %v1869, %v1828
        %v1871 = vsel %vm464, %v1870, %v1832
        %v1872 = vsel %vm466, %v1871, %v1836
        %v1873 = vsel %vm454, %v1782, %v1840
        %v1874 = vsel %vm456, %v1873, %v1844
        %v1875 = vsel %vm458, %v1874, %v1848
        %v1876 = vsel %vm460, %v1875, %v1852
        %v1877 = vsel %vm462, %v1876, %v1856
        %v1878 = vsel %vm464, %v1877, %v1860
        %v1879 = vsel %vm466, %v1878, %v1864
        %1880 = vrot.lane.b32.xlu0 %v1632, 120
        %v1881 = vpop.permute.xlu0 %1880
        %1882 = vrot.lane.b32.xlu0 %v1634, 120
        %v1883 = vpop.permute.xlu0 %1882
        %1884 = vrot.lane.b32.xlu0 %v1637, 120
        %v1885 = vpop.permute.xlu0 %1884
        %1886 = vrot.lane.b32.xlu0 %v1639, 120
        %v1887 = vpop.permute.xlu0 %1886
        %1888 = vrot.lane.b32.xlu0 %v1642, 120
        %v1889 = vpop.permute.xlu0 %1888
        %1890 = vrot.lane.b32.xlu0 %v1644, 120
        %v1891 = vpop.permute.xlu0 %1890
        %1892 = vrot.lane.b32.xlu0 %v1647, 120
        %v1893 = vpop.permute.xlu0 %1892
        %1894 = vrot.lane.b32.xlu0 %v1649, 120
        %v1895 = vpop.permute.xlu0 %1894
        %v1904 = vcombine.low %v1881, %v1889
        %v1905 = vcombine.high %v1881, %v1889
        %v1907 = vunpack.c.l.s4 1983009808
        %v1908 = vunpack.c.0.s8 %v1907
        %v1909 = vlaneseq
        %v1910 = vshrl.u32 %v1909, 7
        %v1911 = vsub.s32 %v1908, %v1910
        %v1912 = vrot.slane %v1904, %v1911
        %v1914 = vunpack.c.l.s4 1983009808
        %v1915 = vunpack.c.0.s8 %v1914
        %v1916 = vlaneseq
        %v1917 = vshrl.u32 %v1916, 7
        %v1918 = vsub.s32 %v1915, %v1917
        %v1919 = vrot.slane %v1905, %v1918
        %v1920 = vcombine.low %v1885, %v1893
        %v1921 = vcombine.high %v1885, %v1893
        %v1923 = vunpack.c.l.s4 1983009808
        %v1924 = vunpack.c.0.s8 %v1923
        %v1925 = vlaneseq
        %v1926 = vshrl.u32 %v1925, 7
        %v1927 = vsub.s32 %v1924, %v1926
        %v1928 = vrot.slane %v1920, %v1927
        %v1930 = vunpack.c.l.s4 1983009808
        %v1931 = vunpack.c.0.s8 %v1930
        %v1932 = vlaneseq
        %v1933 = vshrl.u32 %v1932, 7
        %v1934 = vsub.s32 %v1931, %v1933
        %v1935 = vrot.slane %v1921, %v1934
        %v1936 = vcombine.low %v1912, %v1928
        %v1937 = vcombine.high %v1912, %v1928
        %v1939 = vunpack.c.l.s4 1934713408
        %v1940 = vunpack.c.0.s8 %v1939
        %v1941 = vlaneseq
        %v1942 = vshrl.u32 %v1941, 7
        %v1943 = vsub.s32 %v1940, %v1942
        %v1944 = vrot.slane %v1936, %v1943
        %v1946 = vunpack.c.l.s4 1934713408
        %v1947 = vunpack.c.0.s8 %v1946
        %v1948 = vlaneseq
        %v1949 = vshrl.u32 %v1948, 7
        %v1950 = vsub.s32 %v1947, %v1949
        %v1951 = vrot.slane %v1937, %v1950
        %v1952 = vcombine.low %v1919, %v1935
        %v1953 = vcombine.high %v1919, %v1935
        %v1955 = vunpack.c.l.s4 1934713408
        %v1956 = vunpack.c.0.s8 %v1955
        %v1957 = vlaneseq
        %v1958 = vshrl.u32 %v1957, 7
        %v1959 = vsub.s32 %v1956, %v1958
        %v1960 = vrot.slane %v1952, %v1959
        %v1962 = vunpack.c.l.s4 1934713408
        %v1963 = vunpack.c.0.s8 %v1962
        %v1964 = vlaneseq
        %v1965 = vshrl.u32 %v1964, 7
        %v1966 = vsub.s32 %v1963, %v1965
        %v1967 = vrot.slane %v1953, %v1966
        %v1968 = vcombine.high %v1944, 0.0
        %v1969 = vcombine.high %v1951, 0.0
        %v1970 = vcombine.high %v1960, 0.0
        %v1971 = vcombine.high %v1967, 0.0
        %v1972 = vcombine.low %v1883, %v1891
        %v1973 = vcombine.high %v1883, %v1891
        %v1975 = vunpack.c.l.s4 1983009808
        %v1976 = vunpack.c.0.s8 %v1975
        %v1977 = vlaneseq
        %v1978 = vshrl.u32 %v1977, 7
        %v1979 = vsub.s32 %v1976, %v1978
        %v1980 = vrot.slane %v1972, %v1979
        %v1982 = vunpack.c.l.s4 1983009808
        %v1983 = vunpack.c.0.s8 %v1982
        %v1984 = vlaneseq
        %v1985 = vshrl.u32 %v1984, 7
        %v1986 = vsub.s32 %v1983, %v1985
        %v1987 = vrot.slane %v1973, %v1986
        %v1988 = vcombine.low %v1887, %v1895
        %v1989 = vcombine.high %v1887, %v1895
        %v1991 = vunpack.c.l.s4 1983009808
        %v1992 = vunpack.c.0.s8 %v1991
        %v1993 = vlaneseq
        %v1994 = vshrl.u32 %v1993, 7
        %v1995 = vsub.s32 %v1992, %v1994
        %v1996 = vrot.slane %v1988, %v1995
        %v1998 = vunpack.c.l.s4 1983009808
        %v1999 = vunpack.c.0.s8 %v1998
        %v2000 = vlaneseq
        %v2001 = vshrl.u32 %v2000, 7
        %v2002 = vsub.s32 %v1999, %v2001
        %v2003 = vrot.slane %v1989, %v2002
        %v2004 = vcombine.low %v1980, %v1996
        %v2005 = vcombine.high %v1980, %v1996
        %v2007 = vunpack.c.l.s4 1934713408
        %v2008 = vunpack.c.0.s8 %v2007
        %v2009 = vlaneseq
        %v2010 = vshrl.u32 %v2009, 7
        %v2011 = vsub.s32 %v2008, %v2010
        %v2012 = vrot.slane %v2004, %v2011
        %v2014 = vunpack.c.l.s4 1934713408
        %v2015 = vunpack.c.0.s8 %v2014
        %v2016 = vlaneseq
        %v2017 = vshrl.u32 %v2016, 7
        %v2018 = vsub.s32 %v2015, %v2017
        %v2019 = vrot.slane %v2005, %v2018
        %v2020 = vcombine.low %v1987, %v2003
        %v2021 = vcombine.high %v1987, %v2003
        %v2023 = vunpack.c.l.s4 1934713408
        %v2024 = vunpack.c.0.s8 %v2023
        %v2025 = vlaneseq
        %v2026 = vshrl.u32 %v2025, 7
        %v2027 = vsub.s32 %v2024, %v2026
        %v2028 = vrot.slane %v2020, %v2027
        %v2030 = vunpack.c.l.s4 1934713408
        %v2031 = vunpack.c.0.s8 %v2030
        %v2032 = vlaneseq
        %v2033 = vshrl.u32 %v2032, 7
        %v2034 = vsub.s32 %v2031, %v2033
        %v2035 = vrot.slane %v2021, %v2034
        %v2036 = vcombine.high %v2012, 0.0
        %v2037 = vcombine.high %v2019, 0.0
        %v2038 = vcombine.high %v2028, 0.0
        %v2039 = vcombine.high %v2035, 0.0
        %2041 = vrot.lane.b32.xlu0 %v1968, 16
        %v2042 = vpop.permute.xlu0 %2041
        %2045 = vrot.lane.b32.xlu0 %v1951, 32
        %v2046 = vpop.permute.xlu0 %2045
        %2049 = vrot.lane.b32.xlu0 %v1969, 48
        %v2050 = vpop.permute.xlu0 %2049
        %2053 = vrot.lane.b32.xlu0 %v1960, 64
        %v2054 = vpop.permute.xlu0 %2053
        %2057 = vrot.lane.b32.xlu0 %v1970, 80
        %v2058 = vpop.permute.xlu0 %2057
        %2061 = vrot.lane.b32.xlu0 %v1967, 96
        %v2062 = vpop.permute.xlu0 %2061
        %2065 = vrot.lane.b32.xlu0 %v1971, 112
        %v2066 = vpop.permute.xlu0 %2065
        %2069 = vrot.lane.b32.xlu0 %v2036, 16
        %v2070 = vpop.permute.xlu0 %2069
        %2073 = vrot.lane.b32.xlu0 %v2019, 32
        %v2074 = vpop.permute.xlu0 %2073
        %2077 = vrot.lane.b32.xlu0 %v2037, 48
        %v2078 = vpop.permute.xlu0 %2077
        %2081 = vrot.lane.b32.xlu0 %v2028, 64
        %v2082 = vpop.permute.xlu0 %2081
        %2085 = vrot.lane.b32.xlu0 %v2038, 80
        %v2086 = vpop.permute.xlu0 %2085
        %2089 = vrot.lane.b32.xlu0 %v2035, 96
        %v2090 = vpop.permute.xlu0 %2089
        %2093 = vrot.lane.b32.xlu0 %v2039, 112
        %v2094 = vpop.permute.xlu0 %2093
        %v2096 = vsel %vm454, %v1944, %v2042
        %v2097 = vsel %vm456, %v2096, %v2046
        %v2098 = vsel %vm458, %v2097, %v2050
        %v2099 = vsel %vm460, %v2098, %v2054
        %v2100 = vsel %vm462, %v2099, %v2058
        %v2101 = vsel %vm464, %v2100, %v2062
        %v2102 = vsel %vm466, %v2101, %v2066
        %v2103 = vsel %vm454, %v2012, %v2070
        %v2104 = vsel %vm456, %v2103, %v2074
        %v2105 = vsel %vm458, %v2104, %v2078
        %v2106 = vsel %vm460, %v2105, %v2082
        %v2107 = vsel %vm462, %v2106, %v2086
        %v2108 = vsel %vm464, %v2107, %v2090
        %v2109 = vsel %vm466, %v2108, %v2094
        %2110 = vrot.lane.b32.xlu0 %v1632, 119
        %v2111 = vpop.permute.xlu0 %2110
        %2112 = vrot.lane.b32.xlu0 %v1634, 119
        %v2113 = vpop.permute.xlu0 %2112
        %2114 = vrot.lane.b32.xlu0 %v1637, 119
        %v2115 = vpop.permute.xlu0 %2114
        %2116 = vrot.lane.b32.xlu0 %v1639, 119
        %v2117 = vpop.permute.xlu0 %2116
        %2118 = vrot.lane.b32.xlu0 %v1642, 119
        %v2119 = vpop.permute.xlu0 %2118
        %2120 = vrot.lane.b32.xlu0 %v1644, 119
        %v2121 = vpop.permute.xlu0 %2120
        %2122 = vrot.lane.b32.xlu0 %v1647, 119
        %v2123 = vpop.permute.xlu0 %2122
        %2124 = vrot.lane.b32.xlu0 %v1649, 119
        %v2125 = vpop.permute.xlu0 %2124
        %v2134 = vcombine.low %v2111, %v2119
        %v2135 = vcombine.high %v2111, %v2119
        %v2137 = vunpack.c.l.s4 1983009808
        %v2138 = vunpack.c.0.s8 %v2137
        %v2139 = vlaneseq
        %v2140 = vshrl.u32 %v2139, 7
        %v2141 = vsub.s32 %v2138, %v2140
        %v2142 = vrot.slane %v2134, %v2141
        %v2144 = vunpack.c.l.s4 1983009808
        %v2145 = vunpack.c.0.s8 %v2144
        %v2146 = vlaneseq
        %v2147 = vshrl.u32 %v2146, 7
        %v2148 = vsub.s32 %v2145, %v2147
        %v2149 = vrot.slane %v2135, %v2148
        %v2150 = vcombine.low %v2115, %v2123
        %v2151 = vcombine.high %v2115, %v2123
        %v2153 = vunpack.c.l.s4 1983009808
        %v2154 = vunpack.c.0.s8 %v2153
        %v2155 = vlaneseq
        %v2156 = vshrl.u32 %v2155, 7
        %v2157 = vsub.s32 %v2154, %v2156
        %v2158 = vrot.slane %v2150, %v2157
        %v2160 = vunpack.c.l.s4 1983009808
        %v2161 = vunpack.c.0.s8 %v2160
        %v2162 = vlaneseq
        %v2163 = vshrl.u32 %v2162, 7
        %v2164 = vsub.s32 %v2161, %v2163
        %v2165 = vrot.slane %v2151, %v2164
        %v2166 = vcombine.low %v2142, %v2158
        %v2167 = vcombine.high %v2142, %v2158
        %v2169 = vunpack.c.l.s4 1934713408
        %v2170 = vunpack.c.0.s8 %v2169
        %v2171 = vlaneseq
        %v2172 = vshrl.u32 %v2171, 7
        %v2173 = vsub.s32 %v2170, %v2172
        %v2174 = vrot.slane %v2166, %v2173
        %v2176 = vunpack.c.l.s4 1934713408
        %v2177 = vunpack.c.0.s8 %v2176
        %v2178 = vlaneseq
        %v2179 = vshrl.u32 %v2178, 7
        %v2180 = vsub.s32 %v2177, %v2179
        %v2181 = vrot.slane %v2167, %v2180
        %v2182 = vcombine.low %v2149, %v2165
        %v2183 = vcombine.high %v2149, %v2165
        %v2185 = vunpack.c.l.s4 1934713408
        %v2186 = vunpack.c.0.s8 %v2185
        %v2187 = vlaneseq
        %v2188 = vshrl.u32 %v2187, 7
        %v2189 = vsub.s32 %v2186, %v2188
        %v2190 = vrot.slane %v2182, %v2189
        %v2192 = vunpack.c.l.s4 1934713408
        %v2193 = vunpack.c.0.s8 %v2192
        %v2194 = vlaneseq
        %v2195 = vshrl.u32 %v2194, 7
        %v2196 = vsub.s32 %v2193, %v2195
        %v2197 = vrot.slane %v2183, %v2196
        %v2198 = vcombine.high %v2174, 0.0
        %v2199 = vcombine.high %v2181, 0.0
        %v2200 = vcombine.high %v2190, 0.0
        %v2201 = vcombine.high %v2197, 0.0
        %v2202 = vcombine.low %v2113, %v2121
        %v2203 = vcombine.high %v2113, %v2121
        %v2205 = vunpack.c.l.s4 1983009808
        %v2206 = vunpack.c.0.s8 %v2205
        %v2207 = vlaneseq
        %v2208 = vshrl.u32 %v2207, 7
        %v2209 = vsub.s32 %v2206, %v2208
        %v2210 = vrot.slane %v2202, %v2209
        %v2212 = vunpack.c.l.s4 1983009808
        %v2213 = vunpack.c.0.s8 %v2212
        %v2214 = vlaneseq
        %v2215 = vshrl.u32 %v2214, 7
        %v2216 = vsub.s32 %v2213, %v2215
        %v2217 = vrot.slane %v2203, %v2216
        %v2218 = vcombine.low %v2117, %v2125
        %v2219 = vcombine.high %v2117, %v2125
        %v2221 = vunpack.c.l.s4 1983009808
        %v2222 = vunpack.c.0.s8 %v2221
        %v2223 = vlaneseq
        %v2224 = vshrl.u32 %v2223, 7
        %v2225 = vsub.s32 %v2222, %v2224
        %v2226 = vrot.slane %v2218, %v2225
        %v2228 = vunpack.c.l.s4 1983009808
        %v2229 = vunpack.c.0.s8 %v2228
        %v2230 = vlaneseq
        %v2231 = vshrl.u32 %v2230, 7
        %v2232 = vsub.s32 %v2229, %v2231
        %v2233 = vrot.slane %v2219, %v2232
        %v2234 = vcombine.low %v2210, %v2226
        %v2235 = vcombine.high %v2210, %v2226
        %v2237 = vunpack.c.l.s4 1934713408
        %v2238 = vunpack.c.0.s8 %v2237
        %v2239 = vlaneseq
        %v2240 = vshrl.u32 %v2239, 7
        %v2241 = vsub.s32 %v2238, %v2240
        %v2242 = vrot.slane %v2234, %v2241
        %v2244 = vunpack.c.l.s4 1934713408
        %v2245 = vunpack.c.0.s8 %v2244
        %v2246 = vlaneseq
        %v2247 = vshrl.u32 %v2246, 7
        %v2248 = vsub.s32 %v2245, %v2247
        %v2249 = vrot.slane %v2235, %v2248
        %v2250 = vcombine.low %v2217, %v2233
        %v2251 = vcombine.high %v2217, %v2233
        %v2253 = vunpack.c.l.s4 1934713408
        %v2254 = vunpack.c.0.s8 %v2253
        %v2255 = vlaneseq
        %v2256 = vshrl.u32 %v2255, 7
        %v2257 = vsub.s32 %v2254, %v2256
        %v2258 = vrot.slane %v2250, %v2257
        %v2260 = vunpack.c.l.s4 1934713408
        %v2261 = vunpack.c.0.s8 %v2260
        %v2262 = vlaneseq
        %v2263 = vshrl.u32 %v2262, 7
        %v2264 = vsub.s32 %v2261, %v2263
        %v2265 = vrot.slane %v2251, %v2264
        %v2266 = vcombine.high %v2242, 0.0
        %v2267 = vcombine.high %v2249, 0.0
        %v2268 = vcombine.high %v2258, 0.0
        %v2269 = vcombine.high %v2265, 0.0
        %2271 = vrot.lane.b32.xlu0 %v2198, 16
        %v2272 = vpop.permute.xlu0 %2271
        %2275 = vrot.lane.b32.xlu0 %v2181, 32
        %v2276 = vpop.permute.xlu0 %2275
        %2279 = vrot.lane.b32.xlu0 %v2199, 48
        %v2280 = vpop.permute.xlu0 %2279
        %2283 = vrot.lane.b32.xlu0 %v2190, 64
        %v2284 = vpop.permute.xlu0 %2283
        %2287 = vrot.lane.b32.xlu0 %v2200, 80
        %v2288 = vpop.permute.xlu0 %2287
        %2291 = vrot.lane.b32.xlu0 %v2197, 96
        %v2292 = vpop.permute.xlu0 %2291
        %2295 = vrot.lane.b32.xlu0 %v2201, 112
        %v2296 = vpop.permute.xlu0 %2295
        %2299 = vrot.lane.b32.xlu0 %v2266, 16
        %v2300 = vpop.permute.xlu0 %2299
        %2303 = vrot.lane.b32.xlu0 %v2249, 32
        %v2304 = vpop.permute.xlu0 %2303
        %2307 = vrot.lane.b32.xlu0 %v2267, 48
        %v2308 = vpop.permute.xlu0 %2307
        %2311 = vrot.lane.b32.xlu0 %v2258, 64
        %v2312 = vpop.permute.xlu0 %2311
        %2315 = vrot.lane.b32.xlu0 %v2268, 80
        %v2316 = vpop.permute.xlu0 %2315
        %2319 = vrot.lane.b32.xlu0 %v2265, 96
        %v2320 = vpop.permute.xlu0 %2319
        %2323 = vrot.lane.b32.xlu0 %v2269, 112
        %v2324 = vpop.permute.xlu0 %2323
        %v2326 = vsel %vm454, %v2174, %v2272
        %v2327 = vsel %vm456, %v2326, %v2276
        %v2328 = vsel %vm458, %v2327, %v2280
        %v2329 = vsel %vm460, %v2328, %v2284
        %v2330 = vsel %vm462, %v2329, %v2288
        %v2331 = vsel %vm464, %v2330, %v2292
        %v2332 = vsel %vm466, %v2331, %v2296
        %v2333 = vsel %vm454, %v2242, %v2300
        %v2334 = vsel %vm456, %v2333, %v2304
        %v2335 = vsel %vm458, %v2334, %v2308
        %v2336 = vsel %vm460, %v2335, %v2312
        %v2337 = vsel %vm462, %v2336, %v2316
        %v2338 = vsel %vm464, %v2337, %v2320
        %v2339 = vsel %vm466, %v2338, %v2324
        %v2342 = vrot.slane %v697, 4
        %v2343 = vrot.slane %v704, 4
        %v2348 = vrot.slane %v1157, 4
        %v2349 = vrot.slane %v1164, 4
        %v2354 = vrot.slane %v1617, 4
        %v2355 = vrot.slane %v1624, 4
        %v2360 = vrot.slane %v2102, 4
        %v2361 = vrot.slane %v2109, 4
        %vm2364 = vcmask 1043456
        %v2365 = vsel %vm2364, %v467, %v2342
        %v2366 = vsel %vm2364, %v474, %v2343
        %v2367 = vsel %vm2364, %v927, %v2348
        %v2368 = vsel %vm2364, %v934, %v2349
        %v2369 = vsel %vm2364, %v1387, %v2354
        %v2370 = vsel %vm2364, %v1394, %v2355
        %v2371 = vsel %vm2364, %v1872, %v2360
        %v2372 = vsel %vm2364, %v1879, %v2361
        %v2373 = vld [vmem:[%s1] sm:$0xff]
        %v2374 = vld [vmem:[%s2] sm:$0xff]
        %2376 = vset.pattern.permute.xlu0 0
        %2377 = vperm.xlu0 %2376, %v2374
        %v2378 = vpop.permute.xlu0 %2377
        %vm2380 = vcmask 293888
        %v2382 = vsel %vm2380, %v2373, 0
        %v2385 = vsel %vm2364, %v2332, 0
        %v2388 = vsel %vm2364, %v2339, 0
        %2390 = vmatprep.subr.mxu0 0.0
        %2391 = vmatpush1.msra.mxu0 0.0
        %2392 = vmatprep.subr.mxu0 0.0
        %2393 = vmatpush1.msra.mxu0 0.0
        %2394 = vmatprep.subr.mxu0 0.0
        %2395 = vmatpush1.msra.mxu0 0.0
        %2396 = vmatprep.subr.mxu0 0.0
        %2397 = vmatpush1.msra.mxu0 0.0
        %2398 = vmatprep.subr.mxu0 0.0
        %2399 = vmatpush1.msra.mxu0 0.0
        %2400 = vmatprep.subr.mxu0 0.0
        %2401 = vmatpush1.msra.mxu0 0.0
        %2402 = vmatprep.subr.mxu0 0.0
        %2403 = vmatpush1.msra.mxu0 0.0
        %2404 = vmatprep.subr.mxu0 0.0
        %2405 = vmatpush1.msra.mxu0 0.0
        %2406 = vmatprep.subr.mxu0 0.0
        %2407 = vmatpush1.msra.mxu0 0.0
        %2408 = vmatprep.subr.mxu0 0.0
        %2409 = vmatpush1.msra.mxu0 0.0
        %2410 = vmatprep.subr.mxu0 0.0
        %2411 = vmatpush1.msra.mxu0 0.0
        %2412 = vmatprep.subr.mxu0 %v2388
        %2413 = vmatpush1.msra.mxu0 %v2385
        %2414 = vmatprep.subr.mxu0 %v2372
        %2415 = vmatpush1.msra.mxu0 %v2371
        %2416 = vmatprep.subr.mxu0 %v2370
        %2417 = vmatpush1.msra.mxu0 %v2369
        %2418 = vmatprep.subr.mxu0 %v2368
        %2419 = vmatpush1.msra.mxu0 %v2367
        %2420 = vmatprep.subr.mxu0 %v2366
        %2421 = vmatpush1.msra.mxu0 %v2365
        %2422 = vmatprep.subr.mxu0 0.0
        %2423 = vmatpush2.msra.mxu0 0.0
        %2424 = vmatprep.subr.mxu0 0.0
        %2425 = vmatpush2.msra.mxu0 0.0
        %2426 = vmatprep.subr.mxu0 0.0
        %2427 = vmatpush2.msra.mxu0 0.0
        %2428 = vmatprep.subr.mxu0 0.0
        %2429 = vmatpush2.msra.mxu0 0.0
        %2430 = vmatprep.subr.mxu0 0.0
        %2431 = vmatpush2.msra.mxu0 0.0
        %2432 = vmatprep.subr.mxu0 0.0
        %2433 = vmatpush2.msra.mxu0 0.0
        %2434 = vmatprep.subr.mxu0 0.0
        %2435 = vmatpush2.msra.mxu0 0.0
        %2436 = vmatprep.subr.mxu0 0.0
        %2437 = vmatpush2.msra.mxu0 0.0
        %2438 = vmatprep.subr.mxu0 0.0
        %2439 = vmatpush2.msra.mxu0 0.0
        %2440 = vmatprep.subr.mxu0 0.0
        %2441 = vmatpush2.msra.mxu0 0.0
        %2442 = vmatprep.subr.mxu0 0.0
        %2443 = vmatpush2.msra.mxu0 0.0
        %2444 = vmatprep.subr.mxu0 0.0
        %2445 = vmatpush2.msra.mxu0 0.0
        %2446 = vmatprep.subr.mxu0 0.0
        %2447 = vmatpush2.msra.mxu0 0.0
        %2448 = vmatprep.subr.mxu0 0.0
        %2449 = vmatpush2.msra.mxu0 0.0
        %2450 = vmatprep.subr.mxu0 0.0
        %2451 = vmatpush2.msra.mxu0 0.0
        %2452 = vmatprep.subr.mxu0 0.0
        %2453 = vmatpush2.msra.mxu0 0.0
        %2454 = vmatprep.mubr.f32.mxu0 0.0
        %2455 = vmatmul.mubr.f32.gmra.mxu0 %v2382
        %v2456 = vpop.f32.mrf.mxu0
        %v2457 = vadd.f32 %v2378, %v2456
        %v2458 = vpop.f32.mrf.mxu0
        %v2459 = vadd.f32 %v2378, %v2458
        %2460 = vdwg.mxu0
        %v2461 = vmax.f32 %v2457, 0.0
        %v2462 = vmax.f32 %v2459, 0.0
        %2463 = vst [vmem:[%s188] sm:$0xff] %v2461
        %2464 = vst [vmem:[%s188 + $0x8] sm:$0xff] %v2462
        %vm2465 = vcmask 1041408
        %v2466 = vrot.slane %v189, 6
        %v2467 = vrot.slane %v190, 6
        %v2468 = vsel %vm2465, %v2466, %v2467
        %v2469 = vrot.slane %v191, 6
        %v2470 = vsel %vm2465, %v2467, %v2469
        %v2471 = vrot.slane %v193, 6
        %v2472 = vrot.slane %v194, 6
        %v2473 = vsel %vm2465, %v2471, %v2472
        %v2474 = vrot.slane %v195, 6
        %v2475 = vsel %vm2465, %v2472, %v2474
        %v2476 = vrot.slane %v197, 6
        %v2477 = vrot.slane %v198, 6
        %v2478 = vsel %vm2465, %v2476, %v2477
        %v2479 = vrot.slane %v199, 6
        %v2480 = vsel %vm2465, %v2477, %v2479
        %v2481 = vrot.slane %v201, 6
        %v2482 = vrot.slane %v202, 6
        %v2483 = vsel %vm2465, %v2481, %v2482
        %v2484 = vrot.slane %v203, 6
        %v2485 = vsel %vm2465, %v2482, %v2484
        %2486 = vrot.lane.b32.xlu0 %v2468, 122
        %v2487 = vpop.permute.xlu0 %2486
        %2488 = vrot.lane.b32.xlu0 %v2470, 122
        %v2489 = vpop.permute.xlu0 %2488
        %2490 = vrot.lane.b32.xlu0 %v2473, 122
        %v2491 = vpop.permute.xlu0 %2490
        %2492 = vrot.lane.b32.xlu0 %v2475, 122
        %v2493 = vpop.permute.xlu0 %2492
        %2494 = vrot.lane.b32.xlu0 %v2478, 122
        %v2495 = vpop.permute.xlu0 %2494
        %2496 = vrot.lane.b32.xlu0 %v2480, 122
        %v2497 = vpop.permute.xlu0 %2496
        %2498 = vrot.lane.b32.xlu0 %v2483, 122
        %v2499 = vpop.permute.xlu0 %2498
        %2500 = vrot.lane.b32.xlu0 %v2485, 122
        %v2501 = vpop.permute.xlu0 %2500
        %v2510 = vcombine.low %v2487, %v2495
        %v2511 = vcombine.high %v2487, %v2495
        %v2513 = vunpack.c.l.s4 1983009808
        %v2514 = vunpack.c.0.s8 %v2513
        %v2515 = vlaneseq
        %v2516 = vshrl.u32 %v2515, 7
        %v2517 = vsub.s32 %v2514, %v2516
        %v2518 = vrot.slane %v2510, %v2517
        %v2520 = vunpack.c.l.s4 1983009808
        %v2521 = vunpack.c.0.s8 %v2520
        %v2522 = vlaneseq
        %v2523 = vshrl.u32 %v2522, 7
        %v2524 = vsub.s32 %v2521, %v2523
        %v2525 = vrot.slane %v2511, %v2524
        %v2526 = vcombine.low %v2491, %v2499
        %v2527 = vcombine.high %v2491, %v2499
        %v2529 = vunpack.c.l.s4 1983009808
        %v2530 = vunpack.c.0.s8 %v2529
        %v2531 = vlaneseq
        %v2532 = vshrl.u32 %v2531, 7
        %v2533 = vsub.s32 %v2530, %v2532
        %v2534 = vrot.slane %v2526, %v2533
        %v2536 = vunpack.c.l.s4 1983009808
        %v2537 = vunpack.c.0.s8 %v2536
        %v2538 = vlaneseq
        %v2539 = vshrl.u32 %v2538, 7
        %v2540 = vsub.s32 %v2537, %v2539
        %v2541 = vrot.slane %v2527, %v2540
        %v2542 = vcombine.low %v2518, %v2534
        %v2543 = vcombine.high %v2518, %v2534
        %v2545 = vunpack.c.l.s4 1934713408
        %v2546 = vunpack.c.0.s8 %v2545
        %v2547 = vlaneseq
        %v2548 = vshrl.u32 %v2547, 7
        %v2549 = vsub.s32 %v2546, %v2548
        %v2550 = vrot.slane %v2542, %v2549
        %v2552 = vunpack.c.l.s4 1934713408
        %v2553 = vunpack.c.0.s8 %v2552
        %v2554 = vlaneseq
        %v2555 = vshrl.u32 %v2554, 7
        %v2556 = vsub.s32 %v2553, %v2555
        %v2557 = vrot.slane %v2543, %v2556
        %v2558 = vcombine.low %v2525, %v2541
        %v2559 = vcombine.high %v2525, %v2541
        %v2561 = vunpack.c.l.s4 1934713408
        %v2562 = vunpack.c.0.s8 %v2561
        %v2563 = vlaneseq
        %v2564 = vshrl.u32 %v2563, 7
        %v2565 = vsub.s32 %v2562, %v2564
        %v2566 = vrot.slane %v2558, %v2565
        %v2568 = vunpack.c.l.s4 1934713408
        %v2569 = vunpack.c.0.s8 %v2568
        %v2570 = vlaneseq
        %v2571 = vshrl.u32 %v2570, 7
        %v2572 = vsub.s32 %v2569, %v2571
        %v2573 = vrot.slane %v2559, %v2572
        %v2574 = vcombine.high %v2550, 0.0
        %v2575 = vcombine.high %v2557, 0.0
        %v2576 = vcombine.high %v2566, 0.0
        %v2577 = vcombine.high %v2573, 0.0
        %v2578 = vcombine.low %v2489, %v2497
        %v2579 = vcombine.high %v2489, %v2497
        %v2581 = vunpack.c.l.s4 1983009808
        %v2582 = vunpack.c.0.s8 %v2581
        %v2583 = vlaneseq
        %v2584 = vshrl.u32 %v2583, 7
        %v2585 = vsub.s32 %v2582, %v2584
        %v2586 = vrot.slane %v2578, %v2585
        %v2588 = vunpack.c.l.s4 1983009808
        %v2589 = vunpack.c.0.s8 %v2588
        %v2590 = vlaneseq
        %v2591 = vshrl.u32 %v2590, 7
        %v2592 = vsub.s32 %v2589, %v2591
        %v2593 = vrot.slane %v2579, %v2592
        %v2594 = vcombine.low %v2493, %v2501
        %v2595 = vcombine.high %v2493, %v2501
        %v2597 = vunpack.c.l.s4 1983009808
        %v2598 = vunpack.c.0.s8 %v2597
        %v2599 = vlaneseq
        %v2600 = vshrl.u32 %v2599, 7
        %v2601 = vsub.s32 %v2598, %v2600
        %v2602 = vrot.slane %v2594, %v2601
        %v2604 = vunpack.c.l.s4 1983009808
        %v2605 = vunpack.c.0.s8 %v2604
        %v2606 = vlaneseq
        %v2607 = vshrl.u32 %v2606, 7
        %v2608 = vsub.s32 %v2605, %v2607
        %v2609 = vrot.slane %v2595, %v2608
        %v2610 = vcombine.low %v2586, %v2602
        %v2611 = vcombine.high %v2586, %v2602
        %v2613 = vunpack.c.l.s4 1934713408
        %v2614 = vunpack.c.0.s8 %v2613
        %v2615 = vlaneseq
        %v2616 = vshrl.u32 %v2615, 7
        %v2617 = vsub.s32 %v2614, %v2616
        %v2618 = vrot.slane %v2610, %v2617
        %v2620 = vunpack.c.l.s4 1934713408
        %v2621 = vunpack.c.0.s8 %v2620
        %v2622 = vlaneseq
        %v2623 = vshrl.u32 %v2622, 7
        %v2624 = vsub.s32 %v2621, %v2623
        %v2625 = vrot.slane %v2611, %v2624
        %v2626 = vcombine.low %v2593, %v2609
        %v2627 = vcombine.high %v2593, %v2609
        %v2629 = vunpack.c.l.s4 1934713408
        %v2630 = vunpack.c.0.s8 %v2629
        %v2631 = vlaneseq
        %v2632 = vshrl.u32 %v2631, 7
        %v2633 = vsub.s32 %v2630, %v2632
        %v2634 = vrot.slane %v2626, %v2633
        %v2636 = vunpack.c.l.s4 1934713408
        %v2637 = vunpack.c.0.s8 %v2636
        %v2638 = vlaneseq
        %v2639 = vshrl.u32 %v2638, 7
        %v2640 = vsub.s32 %v2637, %v2639
        %v2641 = vrot.slane %v2627, %v2640
        %v2642 = vcombine.high %v2618, 0.0
        %v2643 = vcombine.high %v2625, 0.0
        %v2644 = vcombine.high %v2634, 0.0
        %v2645 = vcombine.high %v2641, 0.0
        %2647 = vrot.lane.b32.xlu0 %v2574, 16
        %v2648 = vpop.permute.xlu0 %2647
        %2651 = vrot.lane.b32.xlu0 %v2557, 32
        %v2652 = vpop.permute.xlu0 %2651
        %2655 = vrot.lane.b32.xlu0 %v2575, 48
        %v2656 = vpop.permute.xlu0 %2655
        %2659 = vrot.lane.b32.xlu0 %v2566, 64
        %v2660 = vpop.permute.xlu0 %2659
        %2663 = vrot.lane.b32.xlu0 %v2576, 80
        %v2664 = vpop.permute.xlu0 %2663
        %2667 = vrot.lane.b32.xlu0 %v2573, 96
        %v2668 = vpop.permute.xlu0 %2667
        %2671 = vrot.lane.b32.xlu0 %v2577, 112
        %v2672 = vpop.permute.xlu0 %2671
        %2675 = vrot.lane.b32.xlu0 %v2642, 16
        %v2676 = vpop.permute.xlu0 %2675
        %2679 = vrot.lane.b32.xlu0 %v2625, 32
        %v2680 = vpop.permute.xlu0 %2679
        %2683 = vrot.lane.b32.xlu0 %v2643, 48
        %v2684 = vpop.permute.xlu0 %2683
        %2687 = vrot.lane.b32.xlu0 %v2634, 64
        %v2688 = vpop.permute.xlu0 %2687
        %2691 = vrot.lane.b32.xlu0 %v2644, 80
        %v2692 = vpop.permute.xlu0 %2691
        %2695 = vrot.lane.b32.xlu0 %v2641, 96
        %v2696 = vpop.permute.xlu0 %2695
        %2699 = vrot.lane.b32.xlu0 %v2645, 112
        %v2700 = vpop.permute.xlu0 %2699
        %v2702 = vsel %vm454, %v2550, %v2648
        %v2703 = vsel %vm456, %v2702, %v2652
        %v2704 = vsel %vm458, %v2703, %v2656
        %v2705 = vsel %vm460, %v2704, %v2660
        %v2706 = vsel %vm462, %v2705, %v2664
        %v2707 = vsel %vm464, %v2706, %v2668
        %v2708 = vsel %vm466, %v2707, %v2672
        %v2709 = vsel %vm454, %v2618, %v2676
        %v2710 = vsel %vm456, %v2709, %v2680
        %v2711 = vsel %vm458, %v2710, %v2684
        %v2712 = vsel %vm460, %v2711, %v2688
        %v2713 = vsel %vm462, %v2712, %v2692
        %v2714 = vsel %vm464, %v2713, %v2696
        %v2715 = vsel %vm466, %v2714, %v2700
        %2716 = vrot.lane.b32.xlu0 %v2468, 120
        %v2717 = vpop.permute.xlu0 %2716
        %2718 = vrot.lane.b32.xlu0 %v2470, 120
        %v2719 = vpop.permute.xlu0 %2718
        %2720 = vrot.lane.b32.xlu0 %v2473, 120
        %v2721 = vpop.permute.xlu0 %2720
        %2722 = vrot.lane.b32.xlu0 %v2475, 120
        %v2723 = vpop.permute.xlu0 %2722
        %2724 = vrot.lane.b32.xlu0 %v2478, 120
        %v2725 = vpop.permute.xlu0 %2724
        %2726 = vrot.lane.b32.xlu0 %v2480, 120
        %v2727 = vpop.permute.xlu0 %2726
        %2728 = vrot.lane.b32.xlu0 %v2483, 120
        %v2729 = vpop.permute.xlu0 %2728
        %2730 = vrot.lane.b32.xlu0 %v2485, 120
        %v2731 = vpop.permute.xlu0 %2730
        %v2740 = vcombine.low %v2717, %v2725
        %v2741 = vcombine.high %v2717, %v2725
        %v2743 = vunpack.c.l.s4 1983009808
        %v2744 = vunpack.c.0.s8 %v2743
        %v2745 = vlaneseq
        %v2746 = vshrl.u32 %v2745, 7
        %v2747 = vsub.s32 %v2744, %v2746
        %v2748 = vrot.slane %v2740, %v2747
        %v2750 = vunpack.c.l.s4 1983009808
        %v2751 = vunpack.c.0.s8 %v2750
        %v2752 = vlaneseq
        %v2753 = vshrl.u32 %v2752, 7
        %v2754 = vsub.s32 %v2751, %v2753
        %v2755 = vrot.slane %v2741, %v2754
        %v2756 = vcombine.low %v2721, %v2729
        %v2757 = vcombine.high %v2721, %v2729
        %v2759 = vunpack.c.l.s4 1983009808
        %v2760 = vunpack.c.0.s8 %v2759
        %v2761 = vlaneseq
        %v2762 = vshrl.u32 %v2761, 7
        %v2763 = vsub.s32 %v2760, %v2762
        %v2764 = vrot.slane %v2756, %v2763
        %v2766 = vunpack.c.l.s4 1983009808
        %v2767 = vunpack.c.0.s8 %v2766
        %v2768 = vlaneseq
        %v2769 = vshrl.u32 %v2768, 7
        %v2770 = vsub.s32 %v2767, %v2769
        %v2771 = vrot.slane %v2757, %v2770
        %v2772 = vcombine.low %v2748, %v2764
        %v2773 = vcombine.high %v2748, %v2764
        %v2775 = vunpack.c.l.s4 1934713408
        %v2776 = vunpack.c.0.s8 %v2775
        %v2777 = vlaneseq
        %v2778 = vshrl.u32 %v2777, 7
        %v2779 = vsub.s32 %v2776, %v2778
        %v2780 = vrot.slane %v2772, %v2779
        %v2782 = vunpack.c.l.s4 1934713408
        %v2783 = vunpack.c.0.s8 %v2782
        %v2784 = vlaneseq
        %v2785 = vshrl.u32 %v2784, 7
        %v2786 = vsub.s32 %v2783, %v2785
        %v2787 = vrot.slane %v2773, %v2786
        %v2788 = vcombine.low %v2755, %v2771
        %v2789 = vcombine.high %v2755, %v2771
        %v2791 = vunpack.c.l.s4 1934713408
        %v2792 = vunpack.c.0.s8 %v2791
        %v2793 = vlaneseq
        %v2794 = vshrl.u32 %v2793, 7
        %v2795 = vsub.s32 %v2792, %v2794
        %v2796 = vrot.slane %v2788, %v2795
        %v2798 = vunpack.c.l.s4 1934713408
        %v2799 = vunpack.c.0.s8 %v2798
        %v2800 = vlaneseq
        %v2801 = vshrl.u32 %v2800, 7
        %v2802 = vsub.s32 %v2799, %v2801
        %v2803 = vrot.slane %v2789, %v2802
        %v2804 = vcombine.high %v2780, 0.0
        %v2805 = vcombine.high %v2787, 0.0
        %v2806 = vcombine.high %v2796, 0.0
        %v2807 = vcombine.high %v2803, 0.0
        %v2808 = vcombine.low %v2719, %v2727
        %v2809 = vcombine.high %v2719, %v2727
        %v2811 = vunpack.c.l.s4 1983009808
        %v2812 = vunpack.c.0.s8 %v2811
        %v2813 = vlaneseq
        %v2814 = vshrl.u32 %v2813, 7
        %v2815 = vsub.s32 %v2812, %v2814
        %v2816 = vrot.slane %v2808, %v2815
        %v2818 = vunpack.c.l.s4 1983009808
        %v2819 = vunpack.c.0.s8 %v2818
        %v2820 = vlaneseq
        %v2821 = vshrl.u32 %v2820, 7
        %v2822 = vsub.s32 %v2819, %v2821
        %v2823 = vrot.slane %v2809, %v2822
        %v2824 = vcombine.low %v2723, %v2731
        %v2825 = vcombine.high %v2723, %v2731
        %v2827 = vunpack.c.l.s4 1983009808
        %v2828 = vunpack.c.0.s8 %v2827
        %v2829 = vlaneseq
        %v2830 = vshrl.u32 %v2829, 7
        %v2831 = vsub.s32 %v2828, %v2830
        %v2832 = vrot.slane %v2824, %v2831
        %v2834 = vunpack.c.l.s4 1983009808
        %v2835 = vunpack.c.0.s8 %v2834
        %v2836 = vlaneseq
        %v2837 = vshrl.u32 %v2836, 7
        %v2838 = vsub.s32 %v2835, %v2837
        %v2839 = vrot.slane %v2825, %v2838
        %v2840 = vcombine.low %v2816, %v2832
        %v2841 = vcombine.high %v2816, %v2832
        %v2843 = vunpack.c.l.s4 1934713408
        %v2844 = vunpack.c.0.s8 %v2843
        %v2845 = vlaneseq
        %v2846 = vshrl.u32 %v2845, 7
        %v2847 = vsub.s32 %v2844, %v2846
        %v2848 = vrot.slane %v2840, %v2847
        %v2850 = vunpack.c.l.s4 1934713408
        %v2851 = vunpack.c.0.s8 %v2850
        %v2852 = vlaneseq
        %v2853 = vshrl.u32 %v2852, 7
        %v2854 = vsub.s32 %v2851, %v2853
        %v2855 = vrot.slane %v2841, %v2854
        %v2856 = vcombine.low %v2823, %v2839
        %v2857 = vcombine.high %v2823, %v2839
        %v2859 = vunpack.c.l.s4 1934713408
        %v2860 = vunpack.c.0.s8 %v2859
        %v2861 = vlaneseq
        %v2862 = vshrl.u32 %v2861, 7
        %v2863 = vsub.s32 %v2860, %v2862
        %v2864 = vrot.slane %v2856, %v2863
        %v2866 = vunpack.c.l.s4 1934713408
        %v2867 = vunpack.c.0.s8 %v2866
        %v2868 = vlaneseq
        %v2869 = vshrl.u32 %v2868, 7
        %v2870 = vsub.s32 %v2867, %v2869
        %v2871 = vrot.slane %v2857, %v2870
        %v2872 = vcombine.high %v2848, 0.0
        %v2873 = vcombine.high %v2855, 0.0
        %v2874 = vcombine.high %v2864, 0.0
        %v2875 = vcombine.high %v2871, 0.0
        %2877 = vrot.lane.b32.xlu0 %v2804, 16
        %v2878 = vpop.permute.xlu0 %2877
        %2881 = vrot.lane.b32.xlu0 %v2787, 32
        %v2882 = vpop.permute.xlu0 %2881
        %2885 = vrot.lane.b32.xlu0 %v2805, 48
        %v2886 = vpop.permute.xlu0 %2885
        %2889 = vrot.lane.b32.xlu0 %v2796, 64
        %v2890 = vpop.permute.xlu0 %2889
        %2893 = vrot.lane.b32.xlu0 %v2806, 80
        %v2894 = vpop.permute.xlu0 %2893
        %2897 = vrot.lane.b32.xlu0 %v2803, 96
        %v2898 = vpop.permute.xlu0 %2897
        %2901 = vrot.lane.b32.xlu0 %v2807, 112
        %v2902 = vpop.permute.xlu0 %2901
        %2905 = vrot.lane.b32.xlu0 %v2872, 16
        %v2906 = vpop.permute.xlu0 %2905
        %2909 = vrot.lane.b32.xlu0 %v2855, 32
        %v2910 = vpop.permute.xlu0 %2909
        %2913 = vrot.lane.b32.xlu0 %v2873, 48
        %v2914 = vpop.permute.xlu0 %2913
        %2917 = vrot.lane.b32.xlu0 %v2864, 64
        %v2918 = vpop.permute.xlu0 %2917
        %2921 = vrot.lane.b32.xlu0 %v2874, 80
        %v2922 = vpop.permute.xlu0 %2921
        %2925 = vrot.lane.b32.xlu0 %v2871, 96
        %v2926 = vpop.permute.xlu0 %2925
        %2929 = vrot.lane.b32.xlu0 %v2875, 112
        %v2930 = vpop.permute.xlu0 %2929
        %v2932 = vsel %vm454, %v2780, %v2878
        %v2933 = vsel %vm456, %v2932, %v2882
        %v2934 = vsel %vm458, %v2933, %v2886
        %v2935 = vsel %vm460, %v2934, %v2890
        %v2936 = vsel %vm462, %v2935, %v2894
        %v2937 = vsel %vm464, %v2936, %v2898
        %v2938 = vsel %vm466, %v2937, %v2902
        %v2939 = vsel %vm454, %v2848, %v2906
        %v2940 = vsel %vm456, %v2939, %v2910
        %v2941 = vsel %vm458, %v2940, %v2914
        %v2942 = vsel %vm460, %v2941, %v2918
        %v2943 = vsel %vm462, %v2942, %v2922
        %v2944 = vsel %vm464, %v2943, %v2926
        %v2945 = vsel %vm466, %v2944, %v2930
        %2946 = vrot.lane.b32.xlu0 %v2468, 118
        %v2947 = vpop.permute.xlu0 %2946
        %2948 = vrot.lane.b32.xlu0 %v2470, 118
        %v2949 = vpop.permute.xlu0 %2948
        %2950 = vrot.lane.b32.xlu0 %v2473, 118
        %v2951 = vpop.permute.xlu0 %2950
        %2952 = vrot.lane.b32.xlu0 %v2475, 118
        %v2953 = vpop.permute.xlu0 %2952
        %2954 = vrot.lane.b32.xlu0 %v2478, 118
        %v2955 = vpop.permute.xlu0 %2954
        %2956 = vrot.lane.b32.xlu0 %v2480, 118
        %v2957 = vpop.permute.xlu0 %2956
        %2958 = vrot.lane.b32.xlu0 %v2483, 118
        %v2959 = vpop.permute.xlu0 %2958
        %2960 = vrot.lane.b32.xlu0 %v2485, 118
        %v2961 = vpop.permute.xlu0 %2960
        %v2970 = vcombine.low %v2947, %v2955
        %v2971 = vcombine.high %v2947, %v2955
        %v2973 = vunpack.c.l.s4 1983009808
        %v2974 = vunpack.c.0.s8 %v2973
        %v2975 = vlaneseq
        %v2976 = vshrl.u32 %v2975, 7
        %v2977 = vsub.s32 %v2974, %v2976
        %v2978 = vrot.slane %v2970, %v2977
        %v2980 = vunpack.c.l.s4 1983009808
        %v2981 = vunpack.c.0.s8 %v2980
        %v2982 = vlaneseq
        %v2983 = vshrl.u32 %v2982, 7
        %v2984 = vsub.s32 %v2981, %v2983
        %v2985 = vrot.slane %v2971, %v2984
        %v2986 = vcombine.low %v2951, %v2959
        %v2987 = vcombine.high %v2951, %v2959
        %v2989 = vunpack.c.l.s4 1983009808
        %v2990 = vunpack.c.0.s8 %v2989
        %v2991 = vlaneseq
        %v2992 = vshrl.u32 %v2991, 7
        %v2993 = vsub.s32 %v2990, %v2992
        %v2994 = vrot.slane %v2986, %v2993
        %v2996 = vunpack.c.l.s4 1983009808
        %v2997 = vunpack.c.0.s8 %v2996
        %v2998 = vlaneseq
        %v2999 = vshrl.u32 %v2998, 7
        %v3000 = vsub.s32 %v2997, %v2999
        %v3001 = vrot.slane %v2987, %v3000
        %v3002 = vcombine.low %v2978, %v2994
        %v3003 = vcombine.high %v2978, %v2994
        %v3005 = vunpack.c.l.s4 1934713408
        %v3006 = vunpack.c.0.s8 %v3005
        %v3007 = vlaneseq
        %v3008 = vshrl.u32 %v3007, 7
        %v3009 = vsub.s32 %v3006, %v3008
        %v3010 = vrot.slane %v3002, %v3009
        %v3012 = vunpack.c.l.s4 1934713408
        %v3013 = vunpack.c.0.s8 %v3012
        %v3014 = vlaneseq
        %v3015 = vshrl.u32 %v3014, 7
        %v3016 = vsub.s32 %v3013, %v3015
        %v3017 = vrot.slane %v3003, %v3016
        %v3018 = vcombine.low %v2985, %v3001
        %v3019 = vcombine.high %v2985, %v3001
        %v3021 = vunpack.c.l.s4 1934713408
        %v3022 = vunpack.c.0.s8 %v3021
        %v3023 = vlaneseq
        %v3024 = vshrl.u32 %v3023, 7
        %v3025 = vsub.s32 %v3022, %v3024
        %v3026 = vrot.slane %v3018, %v3025
        %v3028 = vunpack.c.l.s4 1934713408
        %v3029 = vunpack.c.0.s8 %v3028
        %v3030 = vlaneseq
        %v3031 = vshrl.u32 %v3030, 7
        %v3032 = vsub.s32 %v3029, %v3031
        %v3033 = vrot.slane %v3019, %v3032
        %v3034 = vcombine.high %v3010, 0.0
        %v3035 = vcombine.high %v3017, 0.0
        %v3036 = vcombine.high %v3026, 0.0
        %v3037 = vcombine.high %v3033, 0.0
        %v3038 = vcombine.low %v2949, %v2957
        %v3039 = vcombine.high %v2949, %v2957
        %v3041 = vunpack.c.l.s4 1983009808
        %v3042 = vunpack.c.0.s8 %v3041
        %v3043 = vlaneseq
        %v3044 = vshrl.u32 %v3043, 7
        %v3045 = vsub.s32 %v3042, %v3044
        %v3046 = vrot.slane %v3038, %v3045
        %v3048 = vunpack.c.l.s4 1983009808
        %v3049 = vunpack.c.0.s8 %v3048
        %v3050 = vlaneseq
        %v3051 = vshrl.u32 %v3050, 7
        %v3052 = vsub.s32 %v3049, %v3051
        %v3053 = vrot.slane %v3039, %v3052
        %v3054 = vcombine.low %v2953, %v2961
        %v3055 = vcombine.high %v2953, %v2961
        %v3057 = vunpack.c.l.s4 1983009808
        %v3058 = vunpack.c.0.s8 %v3057
        %v3059 = vlaneseq
        %v3060 = vshrl.u32 %v3059, 7
        %v3061 = vsub.s32 %v3058, %v3060
        %v3062 = vrot.slane %v3054, %v3061
        %v3064 = vunpack.c.l.s4 1983009808
        %v3065 = vunpack.c.0.s8 %v3064
        %v3066 = vlaneseq
        %v3067 = vshrl.u32 %v3066, 7
        %v3068 = vsub.s32 %v3065, %v3067
        %v3069 = vrot.slane %v3055, %v3068
        %v3070 = vcombine.low %v3046, %v3062
        %v3071 = vcombine.high %v3046, %v3062
        %v3073 = vunpack.c.l.s4 1934713408
        %v3074 = vunpack.c.0.s8 %v3073
        %v3075 = vlaneseq
        %v3076 = vshrl.u32 %v3075, 7
        %v3077 = vsub.s32 %v3074, %v3076
        %v3078 = vrot.slane %v3070, %v3077
        %v3080 = vunpack.c.l.s4 1934713408
        %v3081 = vunpack.c.0.s8 %v3080
        %v3082 = vlaneseq
        %v3083 = vshrl.u32 %v3082, 7
        %v3084 = vsub.s32 %v3081, %v3083
        %v3085 = vrot.slane %v3071, %v3084
        %v3086 = vcombine.low %v3053, %v3069
        %v3087 = vcombine.high %v3053, %v3069
        %v3089 = vunpack.c.l.s4 1934713408
        %v3090 = vunpack.c.0.s8 %v3089
        %v3091 = vlaneseq
        %v3092 = vshrl.u32 %v3091, 7
        %v3093 = vsub.s32 %v3090, %v3092
        %v3094 = vrot.slane %v3086, %v3093
        %v3096 = vunpack.c.l.s4 1934713408
        %v3097 = vunpack.c.0.s8 %v3096
        %v3098 = vlaneseq
        %v3099 = vshrl.u32 %v3098, 7
        %v3100 = vsub.s32 %v3097, %v3099
        %v3101 = vrot.slane %v3087, %v3100
        %v3102 = vcombine.high %v3078, 0.0
        %v3103 = vcombine.high %v3085, 0.0
        %v3104 = vcombine.high %v3094, 0.0
        %v3105 = vcombine.high %v3101, 0.0
        %3107 = vrot.lane.b32.xlu0 %v3034, 16
        %v3108 = vpop.permute.xlu0 %3107
        %3111 = vrot.lane.b32.xlu0 %v3017, 32
        %v3112 = vpop.permute.xlu0 %3111
        %3115 = vrot.lane.b32.xlu0 %v3035, 48
        %v3116 = vpop.permute.xlu0 %3115
        %3119 = vrot.lane.b32.xlu0 %v3026, 64
        %v3120 = vpop.permute.xlu0 %3119
        %3123 = vrot.lane.b32.xlu0 %v3036, 80
        %v3124 = vpop.permute.xlu0 %3123
        %3127 = vrot.lane.b32.xlu0 %v3033, 96
        %v3128 = vpop.permute.xlu0 %3127
        %3131 = vrot.lane.b32.xlu0 %v3037, 112
        %v3132 = vpop.permute.xlu0 %3131
        %3135 = vrot.lane.b32.xlu0 %v3102, 16
        %v3136 = vpop.permute.xlu0 %3135
        %3139 = vrot.lane.b32.xlu0 %v3085, 32
        %v3140 = vpop.permute.xlu0 %3139
        %3143 = vrot.lane.b32.xlu0 %v3103, 48
        %v3144 = vpop.permute.xlu0 %3143
        %3147 = vrot.lane.b32.xlu0 %v3094, 64
        %v3148 = vpop.permute.xlu0 %3147
        %3151 = vrot.lane.b32.xlu0 %v3104, 80
        %v3152 = vpop.permute.xlu0 %3151
        %3155 = vrot.lane.b32.xlu0 %v3101, 96
        %v3156 = vpop.permute.xlu0 %3155
        %3159 = vrot.lane.b32.xlu0 %v3105, 112
        %v3160 = vpop.permute.xlu0 %3159
        %v3162 = vsel %vm454, %v3010, %v3108
        %v3163 = vsel %vm456, %v3162, %v3112
        %v3164 = vsel %vm458, %v3163, %v3116
        %v3165 = vsel %vm460, %v3164, %v3120
        %v3166 = vsel %vm462, %v3165, %v3124
        %v3167 = vsel %vm464, %v3166, %v3128
        %v3168 = vsel %vm466, %v3167, %v3132
        %v3169 = vsel %vm454, %v3078, %v3136
        %v3170 = vsel %vm456, %v3169, %v3140
        %v3171 = vsel %vm458, %v3170, %v3144
        %v3172 = vsel %vm460, %v3171, %v3148
        %v3173 = vsel %vm462, %v3172, %v3152
        %v3174 = vsel %vm464, %v3173, %v3156
        %v3175 = vsel %vm466, %v3174, %v3160
        %3176 = vrot.lane.b32.xlu0 %v190, 122
        %v3177 = vpop.permute.xlu0 %3176
        %3178 = vrot.lane.b32.xlu0 %v191, 122
        %v3179 = vpop.permute.xlu0 %3178
        %3180 = vrot.lane.b32.xlu0 %v194, 122
        %v3181 = vpop.permute.xlu0 %3180
        %3182 = vrot.lane.b32.xlu0 %v195, 122
        %v3183 = vpop.permute.xlu0 %3182
        %3184 = vrot.lane.b32.xlu0 %v198, 122
        %v3185 = vpop.permute.xlu0 %3184
        %3186 = vrot.lane.b32.xlu0 %v199, 122
        %v3187 = vpop.permute.xlu0 %3186
        %3188 = vrot.lane.b32.xlu0 %v202, 122
        %v3189 = vpop.permute.xlu0 %3188
        %3190 = vrot.lane.b32.xlu0 %v203, 122
        %v3191 = vpop.permute.xlu0 %3190
        %v3200 = vcombine.low %v3177, %v3185
        %v3201 = vcombine.high %v3177, %v3185
        %v3203 = vunpack.c.l.s4 1983009808
        %v3204 = vunpack.c.0.s8 %v3203
        %v3205 = vlaneseq
        %v3206 = vshrl.u32 %v3205, 7
        %v3207 = vsub.s32 %v3204, %v3206
        %v3208 = vrot.slane %v3200, %v3207
        %v3210 = vunpack.c.l.s4 1983009808
        %v3211 = vunpack.c.0.s8 %v3210
        %v3212 = vlaneseq
        %v3213 = vshrl.u32 %v3212, 7
        %v3214 = vsub.s32 %v3211, %v3213
        %v3215 = vrot.slane %v3201, %v3214
        %v3216 = vcombine.low %v3181, %v3189
        %v3217 = vcombine.high %v3181, %v3189
        %v3219 = vunpack.c.l.s4 1983009808
        %v3220 = vunpack.c.0.s8 %v3219
        %v3221 = vlaneseq
        %v3222 = vshrl.u32 %v3221, 7
        %v3223 = vsub.s32 %v3220, %v3222
        %v3224 = vrot.slane %v3216, %v3223
        %v3226 = vunpack.c.l.s4 1983009808
        %v3227 = vunpack.c.0.s8 %v3226
        %v3228 = vlaneseq
        %v3229 = vshrl.u32 %v3228, 7
        %v3230 = vsub.s32 %v3227, %v3229
        %v3231 = vrot.slane %v3217, %v3230
        %v3232 = vcombine.low %v3208, %v3224
        %v3233 = vcombine.high %v3208, %v3224
        %v3235 = vunpack.c.l.s4 1934713408
        %v3236 = vunpack.c.0.s8 %v3235
        %v3237 = vlaneseq
        %v3238 = vshrl.u32 %v3237, 7
        %v3239 = vsub.s32 %v3236, %v3238
        %v3240 = vrot.slane %v3232, %v3239
        %v3242 = vunpack.c.l.s4 1934713408
        %v3243 = vunpack.c.0.s8 %v3242
        %v3244 = vlaneseq
        %v3245 = vshrl.u32 %v3244, 7
        %v3246 = vsub.s32 %v3243, %v3245
        %v3247 = vrot.slane %v3233, %v3246
        %v3248 = vcombine.low %v3215, %v3231
        %v3249 = vcombine.high %v3215, %v3231
        %v3251 = vunpack.c.l.s4 1934713408
        %v3252 = vunpack.c.0.s8 %v3251
        %v3253 = vlaneseq
        %v3254 = vshrl.u32 %v3253, 7
        %v3255 = vsub.s32 %v3252, %v3254
        %v3256 = vrot.slane %v3248, %v3255
        %v3258 = vunpack.c.l.s4 1934713408
        %v3259 = vunpack.c.0.s8 %v3258
        %v3260 = vlaneseq
        %v3261 = vshrl.u32 %v3260, 7
        %v3262 = vsub.s32 %v3259, %v3261
        %v3263 = vrot.slane %v3249, %v3262
        %v3264 = vcombine.high %v3240, 0.0
        %v3265 = vcombine.high %v3247, 0.0
        %v3266 = vcombine.high %v3256, 0.0
        %v3267 = vcombine.high %v3263, 0.0
        %v3268 = vcombine.low %v3179, %v3187
        %v3269 = vcombine.high %v3179, %v3187
        %v3271 = vunpack.c.l.s4 1983009808
        %v3272 = vunpack.c.0.s8 %v3271
        %v3273 = vlaneseq
        %v3274 = vshrl.u32 %v3273, 7
        %v3275 = vsub.s32 %v3272, %v3274
        %v3276 = vrot.slane %v3268, %v3275
        %v3278 = vunpack.c.l.s4 1983009808
        %v3279 = vunpack.c.0.s8 %v3278
        %v3280 = vlaneseq
        %v3281 = vshrl.u32 %v3280, 7
        %v3282 = vsub.s32 %v3279, %v3281
        %v3283 = vrot.slane %v3269, %v3282
        %v3284 = vcombine.low %v3183, %v3191
        %v3285 = vcombine.high %v3183, %v3191
        %v3287 = vunpack.c.l.s4 1983009808
        %v3288 = vunpack.c.0.s8 %v3287
        %v3289 = vlaneseq
        %v3290 = vshrl.u32 %v3289, 7
        %v3291 = vsub.s32 %v3288, %v3290
        %v3292 = vrot.slane %v3284, %v3291
        %v3294 = vunpack.c.l.s4 1983009808
        %v3295 = vunpack.c.0.s8 %v3294
        %v3296 = vlaneseq
        %v3297 = vshrl.u32 %v3296, 7
        %v3298 = vsub.s32 %v3295, %v3297
        %v3299 = vrot.slane %v3285, %v3298
        %v3300 = vcombine.low %v3276, %v3292
        %v3301 = vcombine.high %v3276, %v3292
        %v3303 = vunpack.c.l.s4 1934713408
        %v3304 = vunpack.c.0.s8 %v3303
        %v3305 = vlaneseq
        %v3306 = vshrl.u32 %v3305, 7
        %v3307 = vsub.s32 %v3304, %v3306
        %v3308 = vrot.slane %v3300, %v3307
        %v3310 = vunpack.c.l.s4 1934713408
        %v3311 = vunpack.c.0.s8 %v3310
        %v3312 = vlaneseq
        %v3313 = vshrl.u32 %v3312, 7
        %v3314 = vsub.s32 %v3311, %v3313
        %v3315 = vrot.slane %v3301, %v3314
        %v3316 = vcombine.low %v3283, %v3299
        %v3317 = vcombine.high %v3283, %v3299
        %v3319 = vunpack.c.l.s4 1934713408
        %v3320 = vunpack.c.0.s8 %v3319
        %v3321 = vlaneseq
        %v3322 = vshrl.u32 %v3321, 7
        %v3323 = vsub.s32 %v3320, %v3322
        %v3324 = vrot.slane %v3316, %v3323
        %v3326 = vunpack.c.l.s4 1934713408
        %v3327 = vunpack.c.0.s8 %v3326
        %v3328 = vlaneseq
        %v3329 = vshrl.u32 %v3328, 7
        %v3330 = vsub.s32 %v3327, %v3329
        %v3331 = vrot.slane %v3317, %v3330
        %v3332 = vcombine.high %v3308, 0.0
        %v3333 = vcombine.high %v3315, 0.0
        %v3334 = vcombine.high %v3324, 0.0
        %v3335 = vcombine.high %v3331, 0.0
        %3337 = vrot.lane.b32.xlu0 %v3264, 16
        %v3338 = vpop.permute.xlu0 %3337
        %3341 = vrot.lane.b32.xlu0 %v3247, 32
        %v3342 = vpop.permute.xlu0 %3341
        %3345 = vrot.lane.b32.xlu0 %v3265, 48
        %v3346 = vpop.permute.xlu0 %3345
        %3349 = vrot.lane.b32.xlu0 %v3256, 64
        %v3350 = vpop.permute.xlu0 %3349
        %3353 = vrot.lane.b32.xlu0 %v3266, 80
        %v3354 = vpop.permute.xlu0 %3353
        %3357 = vrot.lane.b32.xlu0 %v3263, 96
        %v3358 = vpop.permute.xlu0 %3357
        %3361 = vrot.lane.b32.xlu0 %v3267, 112
        %v3362 = vpop.permute.xlu0 %3361
        %3365 = vrot.lane.b32.xlu0 %v3332, 16
        %v3366 = vpop.permute.xlu0 %3365
        %3369 = vrot.lane.b32.xlu0 %v3315, 32
        %v3370 = vpop.permute.xlu0 %3369
        %3373 = vrot.lane.b32.xlu0 %v3333, 48
        %v3374 = vpop.permute.xlu0 %3373
        %3377 = vrot.lane.b32.xlu0 %v3324, 64
        %v3378 = vpop.permute.xlu0 %3377
        %3381 = vrot.lane.b32.xlu0 %v3334, 80
        %v3382 = vpop.permute.xlu0 %3381
        %3385 = vrot.lane.b32.xlu0 %v3331, 96
        %v3386 = vpop.permute.xlu0 %3385
        %3389 = vrot.lane.b32.xlu0 %v3335, 112
        %v3390 = vpop.permute.xlu0 %3389
        %v3392 = vsel %vm454, %v3240, %v3338
        %v3393 = vsel %vm456, %v3392, %v3342
        %v3394 = vsel %vm458, %v3393, %v3346
        %v3395 = vsel %vm460, %v3394, %v3350
        %v3396 = vsel %vm462, %v3395, %v3354
        %v3397 = vsel %vm464, %v3396, %v3358
        %v3398 = vsel %vm466, %v3397, %v3362
        %v3399 = vsel %vm454, %v3308, %v3366
        %v3400 = vsel %vm456, %v3399, %v3370
        %v3401 = vsel %vm458, %v3400, %v3374
        %v3402 = vsel %vm460, %v3401, %v3378
        %v3403 = vsel %vm462, %v3402, %v3382
        %v3404 = vsel %vm464, %v3403, %v3386
        %v3405 = vsel %vm466, %v3404, %v3390
        %3406 = vrot.lane.b32.xlu0 %v190, 118
        %v3407 = vpop.permute.xlu0 %3406
        %3408 = vrot.lane.b32.xlu0 %v191, 118
        %v3409 = vpop.permute.xlu0 %3408
        %3410 = vrot.lane.b32.xlu0 %v194, 118
        %v3411 = vpop.permute.xlu0 %3410
        %3412 = vrot.lane.b32.xlu0 %v195, 118
        %v3413 = vpop.permute.xlu0 %3412
        %3414 = vrot.lane.b32.xlu0 %v198, 118
        %v3415 = vpop.permute.xlu0 %3414
        %3416 = vrot.lane.b32.xlu0 %v199, 118
        %v3417 = vpop.permute.xlu0 %3416
        %3418 = vrot.lane.b32.xlu0 %v202, 118
        %v3419 = vpop.permute.xlu0 %3418
        %3420 = vrot.lane.b32.xlu0 %v203, 118
        %v3421 = vpop.permute.xlu0 %3420
        %v3430 = vcombine.low %v3407, %v3415
        %v3431 = vcombine.high %v3407, %v3415
        %v3433 = vunpack.c.l.s4 1983009808
        %v3434 = vunpack.c.0.s8 %v3433
        %v3435 = vlaneseq
        %v3436 = vshrl.u32 %v3435, 7
        %v3437 = vsub.s32 %v3434, %v3436
        %v3438 = vrot.slane %v3430, %v3437
        %v3440 = vunpack.c.l.s4 1983009808
        %v3441 = vunpack.c.0.s8 %v3440
        %v3442 = vlaneseq
        %v3443 = vshrl.u32 %v3442, 7
        %v3444 = vsub.s32 %v3441, %v3443
        %v3445 = vrot.slane %v3431, %v3444
        %v3446 = vcombine.low %v3411, %v3419
        %v3447 = vcombine.high %v3411, %v3419
        %v3449 = vunpack.c.l.s4 1983009808
        %v3450 = vunpack.c.0.s8 %v3449
        %v3451 = vlaneseq
        %v3452 = vshrl.u32 %v3451, 7
        %v3453 = vsub.s32 %v3450, %v3452
        %v3454 = vrot.slane %v3446, %v3453
        %v3456 = vunpack.c.l.s4 1983009808
        %v3457 = vunpack.c.0.s8 %v3456
        %v3458 = vlaneseq
        %v3459 = vshrl.u32 %v3458, 7
        %v3460 = vsub.s32 %v3457, %v3459
        %v3461 = vrot.slane %v3447, %v3460
        %v3462 = vcombine.low %v3438, %v3454
        %v3463 = vcombine.high %v3438, %v3454
        %v3465 = vunpack.c.l.s4 1934713408
        %v3466 = vunpack.c.0.s8 %v3465
        %v3467 = vlaneseq
        %v3468 = vshrl.u32 %v3467, 7
        %v3469 = vsub.s32 %v3466, %v3468
        %v3470 = vrot.slane %v3462, %v3469
        %v3472 = vunpack.c.l.s4 1934713408
        %v3473 = vunpack.c.0.s8 %v3472
        %v3474 = vlaneseq
        %v3475 = vshrl.u32 %v3474, 7
        %v3476 = vsub.s32 %v3473, %v3475
        %v3477 = vrot.slane %v3463, %v3476
        %v3478 = vcombine.low %v3445, %v3461
        %v3479 = vcombine.high %v3445, %v3461
        %v3481 = vunpack.c.l.s4 1934713408
        %v3482 = vunpack.c.0.s8 %v3481
        %v3483 = vlaneseq
        %v3484 = vshrl.u32 %v3483, 7
        %v3485 = vsub.s32 %v3482, %v3484
        %v3486 = vrot.slane %v3478, %v3485
        %v3488 = vunpack.c.l.s4 1934713408
        %v3489 = vunpack.c.0.s8 %v3488
        %v3490 = vlaneseq
        %v3491 = vshrl.u32 %v3490, 7
        %v3492 = vsub.s32 %v3489, %v3491
        %v3493 = vrot.slane %v3479, %v3492
        %v3494 = vcombine.high %v3470, 0.0
        %v3495 = vcombine.high %v3477, 0.0
        %v3496 = vcombine.high %v3486, 0.0
        %v3497 = vcombine.high %v3493, 0.0
        %v3498 = vcombine.low %v3409, %v3417
        %v3499 = vcombine.high %v3409, %v3417
        %v3501 = vunpack.c.l.s4 1983009808
        %v3502 = vunpack.c.0.s8 %v3501
        %v3503 = vlaneseq
        %v3504 = vshrl.u32 %v3503, 7
        %v3505 = vsub.s32 %v3502, %v3504
        %v3506 = vrot.slane %v3498, %v3505
        %v3508 = vunpack.c.l.s4 1983009808
        %v3509 = vunpack.c.0.s8 %v3508
        %v3510 = vlaneseq
        %v3511 = vshrl.u32 %v3510, 7
        %v3512 = vsub.s32 %v3509, %v3511
        %v3513 = vrot.slane %v3499, %v3512
        %v3514 = vcombine.low %v3413, %v3421
        %v3515 = vcombine.high %v3413, %v3421
        %v3517 = vunpack.c.l.s4 1983009808
        %v3518 = vunpack.c.0.s8 %v3517
        %v3519 = vlaneseq
        %v3520 = vshrl.u32 %v3519, 7
        %v3521 = vsub.s32 %v3518, %v3520
        %v3522 = vrot.slane %v3514, %v3521
        %v3524 = vunpack.c.l.s4 1983009808
        %v3525 = vunpack.c.0.s8 %v3524
        %v3526 = vlaneseq
        %v3527 = vshrl.u32 %v3526, 7
        %v3528 = vsub.s32 %v3525, %v3527
        %v3529 = vrot.slane %v3515, %v3528
        %v3530 = vcombine.low %v3506, %v3522
        %v3531 = vcombine.high %v3506, %v3522
        %v3533 = vunpack.c.l.s4 1934713408
        %v3534 = vunpack.c.0.s8 %v3533
        %v3535 = vlaneseq
        %v3536 = vshrl.u32 %v3535, 7
        %v3537 = vsub.s32 %v3534, %v3536
        %v3538 = vrot.slane %v3530, %v3537
        %v3540 = vunpack.c.l.s4 1934713408
        %v3541 = vunpack.c.0.s8 %v3540
        %v3542 = vlaneseq
        %v3543 = vshrl.u32 %v3542, 7
        %v3544 = vsub.s32 %v3541, %v3543
        %v3545 = vrot.slane %v3531, %v3544
        %v3546 = vcombine.low %v3513, %v3529
        %v3547 = vcombine.high %v3513, %v3529
        %v3549 = vunpack.c.l.s4 1934713408
        %v3550 = vunpack.c.0.s8 %v3549
        %v3551 = vlaneseq
        %v3552 = vshrl.u32 %v3551, 7
        %v3553 = vsub.s32 %v3550, %v3552
        %v3554 = vrot.slane %v3546, %v3553
        %v3556 = vunpack.c.l.s4 1934713408
        %v3557 = vunpack.c.0.s8 %v3556
        %v3558 = vlaneseq
        %v3559 = vshrl.u32 %v3558, 7
        %v3560 = vsub.s32 %v3557, %v3559
        %v3561 = vrot.slane %v3547, %v3560
        %v3562 = vcombine.high %v3538, 0.0
        %v3563 = vcombine.high %v3545, 0.0
        %v3564 = vcombine.high %v3554, 0.0
        %v3565 = vcombine.high %v3561, 0.0
        %3567 = vrot.lane.b32.xlu0 %v3494, 16
        %v3568 = vpop.permute.xlu0 %3567
        %3571 = vrot.lane.b32.xlu0 %v3477, 32
        %v3572 = vpop.permute.xlu0 %3571
        %3575 = vrot.lane.b32.xlu0 %v3495, 48
        %v3576 = vpop.permute.xlu0 %3575
        %3579 = vrot.lane.b32.xlu0 %v3486, 64
        %v3580 = vpop.permute.xlu0 %3579
        %3583 = vrot.lane.b32.xlu0 %v3496, 80
        %v3584 = vpop.permute.xlu0 %3583
        %3587 = vrot.lane.b32.xlu0 %v3493, 96
        %v3588 = vpop.permute.xlu0 %3587
        %3591 = vrot.lane.b32.xlu0 %v3497, 112
        %v3592 = vpop.permute.xlu0 %3591
        %3595 = vrot.lane.b32.xlu0 %v3562, 16
        %v3596 = vpop.permute.xlu0 %3595
        %3599 = vrot.lane.b32.xlu0 %v3545, 32
        %v3600 = vpop.permute.xlu0 %3599
        %3603 = vrot.lane.b32.xlu0 %v3563, 48
        %v3604 = vpop.permute.xlu0 %3603
        %3607 = vrot.lane.b32.xlu0 %v3554, 64
        %v3608 = vpop.permute.xlu0 %3607
        %3611 = vrot.lane.b32.xlu0 %v3564, 80
        %v3612 = vpop.permute.xlu0 %3611
        %3615 = vrot.lane.b32.xlu0 %v3561, 96
        %v3616 = vpop.permute.xlu0 %3615
        %3619 = vrot.lane.b32.xlu0 %v3565, 112
        %v3620 = vpop.permute.xlu0 %3619
        %v3622 = vsel %vm454, %v3470, %v3568
        %v3623 = vsel %vm456, %v3622, %v3572
        %v3624 = vsel %vm458, %v3623, %v3576
        %v3625 = vsel %vm460, %v3624, %v3580
        %v3626 = vsel %vm462, %v3625, %v3584
        %v3627 = vsel %vm464, %v3626, %v3588
        %v3628 = vsel %vm466, %v3627, %v3592
        %v3629 = vsel %vm454, %v3538, %v3596
        %v3630 = vsel %vm456, %v3629, %v3600
        %v3631 = vsel %vm458, %v3630, %v3604
        %v3632 = vsel %vm460, %v3631, %v3608
        %v3633 = vsel %vm462, %v3632, %v3612
        %v3634 = vsel %vm464, %v3633, %v3616
        %v3635 = vsel %vm466, %v3634, %v3620
        %vm3636 = vcmask 1045504
        %v3637 = vrot.slane %v190, 2
        %v3638 = vrot.slane %v191, 2
        %v3639 = vsel %vm3636, %v3637, %v3638
        %v3640 = vrot.slane %v192, 2
        %v3641 = vsel %vm3636, %v3638, %v3640
        %v3642 = vrot.slane %v194, 2
        %v3643 = vrot.slane %v195, 2
        %v3644 = vsel %vm3636, %v3642, %v3643
        %v3645 = vrot.slane %v196, 2
        %v3646 = vsel %vm3636, %v3643, %v3645
        %v3647 = vrot.slane %v198, 2
        %v3648 = vrot.slane %v199, 2
        %v3649 = vsel %vm3636, %v3647, %v3648
        %v3650 = vrot.slane %v200, 2
        %v3651 = vsel %vm3636, %v3648, %v3650
        %v3652 = vrot.slane %v202, 2
        %v3653 = vrot.slane %v203, 2
        %v3654 = vsel %vm3636, %v3652, %v3653
        %v3655 = vrot.slane %v204, 2
        %v3656 = vsel %vm3636, %v3653, %v3655
        %3657 = vrot.lane.b32.xlu0 %v3639, 122
        %v3658 = vpop.permute.xlu0 %3657
        %3659 = vrot.lane.b32.xlu0 %v3641, 122
        %v3660 = vpop.permute.xlu0 %3659
        %3661 = vrot.lane.b32.xlu0 %v3644, 122
        %v3662 = vpop.permute.xlu0 %3661
        %3663 = vrot.lane.b32.xlu0 %v3646, 122
        %v3664 = vpop.permute.xlu0 %3663
        %3665 = vrot.lane.b32.xlu0 %v3649, 122
        %v3666 = vpop.permute.xlu0 %3665
        %3667 = vrot.lane.b32.xlu0 %v3651, 122
        %v3668 = vpop.permute.xlu0 %3667
        %3669 = vrot.lane.b32.xlu0 %v3654, 122
        %v3670 = vpop.permute.xlu0 %3669
        %3671 = vrot.lane.b32.xlu0 %v3656, 122
        %v3672 = vpop.permute.xlu0 %3671
        %v3681 = vcombine.low %v3658, %v3666
        %v3682 = vcombine.high %v3658, %v3666
        %v3684 = vunpack.c.l.s4 1983009808
        %v3685 = vunpack.c.0.s8 %v3684
        %v3686 = vlaneseq
        %v3687 = vshrl.u32 %v3686, 7
        %v3688 = vsub.s32 %v3685, %v3687
        %v3689 = vrot.slane %v3681, %v3688
        %v3691 = vunpack.c.l.s4 1983009808
        %v3692 = vunpack.c.0.s8 %v3691
        %v3693 = vlaneseq
        %v3694 = vshrl.u32 %v3693, 7
        %v3695 = vsub.s32 %v3692, %v3694
        %v3696 = vrot.slane %v3682, %v3695
        %v3697 = vcombine.low %v3662, %v3670
        %v3698 = vcombine.high %v3662, %v3670
        %v3700 = vunpack.c.l.s4 1983009808
        %v3701 = vunpack.c.0.s8 %v3700
        %v3702 = vlaneseq
        %v3703 = vshrl.u32 %v3702, 7
        %v3704 = vsub.s32 %v3701, %v3703
        %v3705 = vrot.slane %v3697, %v3704
        %v3707 = vunpack.c.l.s4 1983009808
        %v3708 = vunpack.c.0.s8 %v3707
        %v3709 = vlaneseq
        %v3710 = vshrl.u32 %v3709, 7
        %v3711 = vsub.s32 %v3708, %v3710
        %v3712 = vrot.slane %v3698, %v3711
        %v3713 = vcombine.low %v3689, %v3705
        %v3714 = vcombine.high %v3689, %v3705
        %v3716 = vunpack.c.l.s4 1934713408
        %v3717 = vunpack.c.0.s8 %v3716
        %v3718 = vlaneseq
        %v3719 = vshrl.u32 %v3718, 7
        %v3720 = vsub.s32 %v3717, %v3719
        %v3721 = vrot.slane %v3713, %v3720
        %v3723 = vunpack.c.l.s4 1934713408
        %v3724 = vunpack.c.0.s8 %v3723
        %v3725 = vlaneseq
        %v3726 = vshrl.u32 %v3725, 7
        %v3727 = vsub.s32 %v3724, %v3726
        %v3728 = vrot.slane %v3714, %v3727
        %v3729 = vcombine.low %v3696, %v3712
        %v3730 = vcombine.high %v3696, %v3712
        %v3732 = vunpack.c.l.s4 1934713408
        %v3733 = vunpack.c.0.s8 %v3732
        %v3734 = vlaneseq
        %v3735 = vshrl.u32 %v3734, 7
        %v3736 = vsub.s32 %v3733, %v3735
        %v3737 = vrot.slane %v3729, %v3736
        %v3739 = vunpack.c.l.s4 1934713408
        %v3740 = vunpack.c.0.s8 %v3739
        %v3741 = vlaneseq
        %v3742 = vshrl.u32 %v3741, 7
        %v3743 = vsub.s32 %v3740, %v3742
        %v3744 = vrot.slane %v3730, %v3743
        %v3745 = vcombine.high %v3721, 0.0
        %v3746 = vcombine.high %v3728, 0.0
        %v3747 = vcombine.high %v3737, 0.0
        %v3748 = vcombine.high %v3744, 0.0
        %v3749 = vcombine.low %v3660, %v3668
        %v3750 = vcombine.high %v3660, %v3668
        %v3752 = vunpack.c.l.s4 1983009808
        %v3753 = vunpack.c.0.s8 %v3752
        %v3754 = vlaneseq
        %v3755 = vshrl.u32 %v3754, 7
        %v3756 = vsub.s32 %v3753, %v3755
        %v3757 = vrot.slane %v3749, %v3756
        %v3759 = vunpack.c.l.s4 1983009808
        %v3760 = vunpack.c.0.s8 %v3759
        %v3761 = vlaneseq
        %v3762 = vshrl.u32 %v3761, 7
        %v3763 = vsub.s32 %v3760, %v3762
        %v3764 = vrot.slane %v3750, %v3763
        %v3765 = vcombine.low %v3664, %v3672
        %v3766 = vcombine.high %v3664, %v3672
        %v3768 = vunpack.c.l.s4 1983009808
        %v3769 = vunpack.c.0.s8 %v3768
        %v3770 = vlaneseq
        %v3771 = vshrl.u32 %v3770, 7
        %v3772 = vsub.s32 %v3769, %v3771
        %v3773 = vrot.slane %v3765, %v3772
        %v3775 = vunpack.c.l.s4 1983009808
        %v3776 = vunpack.c.0.s8 %v3775
        %v3777 = vlaneseq
        %v3778 = vshrl.u32 %v3777, 7
        %v3779 = vsub.s32 %v3776, %v3778
        %v3780 = vrot.slane %v3766, %v3779
        %v3781 = vcombine.low %v3757, %v3773
        %v3782 = vcombine.high %v3757, %v3773
        %v3784 = vunpack.c.l.s4 1934713408
        %v3785 = vunpack.c.0.s8 %v3784
        %v3786 = vlaneseq
        %v3787 = vshrl.u32 %v3786, 7
        %v3788 = vsub.s32 %v3785, %v3787
        %v3789 = vrot.slane %v3781, %v3788
        %v3791 = vunpack.c.l.s4 1934713408
        %v3792 = vunpack.c.0.s8 %v3791
        %v3793 = vlaneseq
        %v3794 = vshrl.u32 %v3793, 7
        %v3795 = vsub.s32 %v3792, %v3794
        %v3796 = vrot.slane %v3782, %v3795
        %v3797 = vcombine.low %v3764, %v3780
        %v3798 = vcombine.high %v3764, %v3780
        %v3800 = vunpack.c.l.s4 1934713408
        %v3801 = vunpack.c.0.s8 %v3800
        %v3802 = vlaneseq
        %v3803 = vshrl.u32 %v3802, 7
        %v3804 = vsub.s32 %v3801, %v3803
        %v3805 = vrot.slane %v3797, %v3804
        %v3807 = vunpack.c.l.s4 1934713408
        %v3808 = vunpack.c.0.s8 %v3807
        %v3809 = vlaneseq
        %v3810 = vshrl.u32 %v3809, 7
        %v3811 = vsub.s32 %v3808, %v3810
        %v3812 = vrot.slane %v3798, %v3811
        %v3813 = vcombine.high %v3789, 0.0
        %v3814 = vcombine.high %v3796, 0.0
        %v3815 = vcombine.high %v3805, 0.0
        %v3816 = vcombine.high %v3812, 0.0
        %3818 = vrot.lane.b32.xlu0 %v3745, 16
        %v3819 = vpop.permute.xlu0 %3818
        %3822 = vrot.lane.b32.xlu0 %v3728, 32
        %v3823 = vpop.permute.xlu0 %3822
        %3826 = vrot.lane.b32.xlu0 %v3746, 48
        %v3827 = vpop.permute.xlu0 %3826
        %3830 = vrot.lane.b32.xlu0 %v3737, 64
        %v3831 = vpop.permute.xlu0 %3830
        %3834 = vrot.lane.b32.xlu0 %v3747, 80
        %v3835 = vpop.permute.xlu0 %3834
        %3838 = vrot.lane.b32.xlu0 %v3744, 96
        %v3839 = vpop.permute.xlu0 %3838
        %3842 = vrot.lane.b32.xlu0 %v3748, 112
        %v3843 = vpop.permute.xlu0 %3842
        %3846 = vrot.lane.b32.xlu0 %v3813, 16
        %v3847 = vpop.permute.xlu0 %3846
        %3850 = vrot.lane.b32.xlu0 %v3796, 32
        %v3851 = vpop.permute.xlu0 %3850
        %3854 = vrot.lane.b32.xlu0 %v3814, 48
        %v3855 = vpop.permute.xlu0 %3854
        %3858 = vrot.lane.b32.xlu0 %v3805, 64
        %v3859 = vpop.permute.xlu0 %3858
        %3862 = vrot.lane.b32.xlu0 %v3815, 80
        %v3863 = vpop.permute.xlu0 %3862
        %3866 = vrot.lane.b32.xlu0 %v3812, 96
        %v3867 = vpop.permute.xlu0 %3866
        %3870 = vrot.lane.b32.xlu0 %v3816, 112
        %v3871 = vpop.permute.xlu0 %3870
        %v3873 = vsel %vm454, %v3721, %v3819
        %v3874 = vsel %vm456, %v3873, %v3823
        %v3875 = vsel %vm458, %v3874, %v3827
        %v3876 = vsel %vm460, %v3875, %v3831
        %v3877 = vsel %vm462, %v3876, %v3835
        %v3878 = vsel %vm464, %v3877, %v3839
        %v3879 = vsel %vm466, %v3878, %v3843
        %v3880 = vsel %vm454, %v3789, %v3847
        %v3881 = vsel %vm456, %v3880, %v3851
        %v3882 = vsel %vm458, %v3881, %v3855
        %v3883 = vsel %vm460, %v3882, %v3859
        %v3884 = vsel %vm462, %v3883, %v3863
        %v3885 = vsel %vm464, %v3884, %v3867
        %v3886 = vsel %vm466, %v3885, %v3871
        %3887 = vrot.lane.b32.xlu0 %v3639, 120
        %v3888 = vpop.permute.xlu0 %3887
        %3889 = vrot.lane.b32.xlu0 %v3641, 120
        %v3890 = vpop.permute.xlu0 %3889
        %3891 = vrot.lane.b32.xlu0 %v3644, 120
        %v3892 = vpop.permute.xlu0 %3891
        %3893 = vrot.lane.b32.xlu0 %v3646, 120
        %v3894 = vpop.permute.xlu0 %3893
        %3895 = vrot.lane.b32.xlu0 %v3649, 120
        %v3896 = vpop.permute.xlu0 %3895
        %3897 = vrot.lane.b32.xlu0 %v3651, 120
        %v3898 = vpop.permute.xlu0 %3897
        %3899 = vrot.lane.b32.xlu0 %v3654, 120
        %v3900 = vpop.permute.xlu0 %3899
        %3901 = vrot.lane.b32.xlu0 %v3656, 120
        %v3902 = vpop.permute.xlu0 %3901
        %v3911 = vcombine.low %v3888, %v3896
        %v3912 = vcombine.high %v3888, %v3896
        %v3914 = vunpack.c.l.s4 1983009808
        %v3915 = vunpack.c.0.s8 %v3914
        %v3916 = vlaneseq
        %v3917 = vshrl.u32 %v3916, 7
        %v3918 = vsub.s32 %v3915, %v3917
        %v3919 = vrot.slane %v3911, %v3918
        %v3921 = vunpack.c.l.s4 1983009808
        %v3922 = vunpack.c.0.s8 %v3921
        %v3923 = vlaneseq
        %v3924 = vshrl.u32 %v3923, 7
        %v3925 = vsub.s32 %v3922, %v3924
        %v3926 = vrot.slane %v3912, %v3925
        %v3927 = vcombine.low %v3892, %v3900
        %v3928 = vcombine.high %v3892, %v3900
        %v3930 = vunpack.c.l.s4 1983009808
        %v3931 = vunpack.c.0.s8 %v3930
        %v3932 = vlaneseq
        %v3933 = vshrl.u32 %v3932, 7
        %v3934 = vsub.s32 %v3931, %v3933
        %v3935 = vrot.slane %v3927, %v3934
        %v3937 = vunpack.c.l.s4 1983009808
        %v3938 = vunpack.c.0.s8 %v3937
        %v3939 = vlaneseq
        %v3940 = vshrl.u32 %v3939, 7
        %v3941 = vsub.s32 %v3938, %v3940
        %v3942 = vrot.slane %v3928, %v3941
        %v3943 = vcombine.low %v3919, %v3935
        %v3944 = vcombine.high %v3919, %v3935
        %v3946 = vunpack.c.l.s4 1934713408
        %v3947 = vunpack.c.0.s8 %v3946
        %v3948 = vlaneseq
        %v3949 = vshrl.u32 %v3948, 7
        %v3950 = vsub.s32 %v3947, %v3949
        %v3951 = vrot.slane %v3943, %v3950
        %v3953 = vunpack.c.l.s4 1934713408
        %v3954 = vunpack.c.0.s8 %v3953
        %v3955 = vlaneseq
        %v3956 = vshrl.u32 %v3955, 7
        %v3957 = vsub.s32 %v3954, %v3956
        %v3958 = vrot.slane %v3944, %v3957
        %v3959 = vcombine.low %v3926, %v3942
        %v3960 = vcombine.high %v3926, %v3942
        %v3962 = vunpack.c.l.s4 1934713408
        %v3963 = vunpack.c.0.s8 %v3962
        %v3964 = vlaneseq
        %v3965 = vshrl.u32 %v3964, 7
        %v3966 = vsub.s32 %v3963, %v3965
        %v3967 = vrot.slane %v3959, %v3966
        %v3969 = vunpack.c.l.s4 1934713408
        %v3970 = vunpack.c.0.s8 %v3969
        %v3971 = vlaneseq
        %v3972 = vshrl.u32 %v3971, 7
        %v3973 = vsub.s32 %v3970, %v3972
        %v3974 = vrot.slane %v3960, %v3973
        %v3975 = vcombine.high %v3951, 0.0
        %v3976 = vcombine.high %v3958, 0.0
        %v3977 = vcombine.high %v3967, 0.0
        %v3978 = vcombine.high %v3974, 0.0
        %v3979 = vcombine.low %v3890, %v3898
        %v3980 = vcombine.high %v3890, %v3898
        %v3982 = vunpack.c.l.s4 1983009808
        %v3983 = vunpack.c.0.s8 %v3982
        %v3984 = vlaneseq
        %v3985 = vshrl.u32 %v3984, 7
        %v3986 = vsub.s32 %v3983, %v3985
        %v3987 = vrot.slane %v3979, %v3986
        %v3989 = vunpack.c.l.s4 1983009808
        %v3990 = vunpack.c.0.s8 %v3989
        %v3991 = vlaneseq
        %v3992 = vshrl.u32 %v3991, 7
        %v3993 = vsub.s32 %v3990, %v3992
        %v3994 = vrot.slane %v3980, %v3993
        %v3995 = vcombine.low %v3894, %v3902
        %v3996 = vcombine.high %v3894, %v3902
        %v3998 = vunpack.c.l.s4 1983009808
        %v3999 = vunpack.c.0.s8 %v3998
        %v4000 = vlaneseq
        %v4001 = vshrl.u32 %v4000, 7
        %v4002 = vsub.s32 %v3999, %v4001
        %v4003 = vrot.slane %v3995, %v4002
        %v4005 = vunpack.c.l.s4 1983009808
        %v4006 = vunpack.c.0.s8 %v4005
        %v4007 = vlaneseq
        %v4008 = vshrl.u32 %v4007, 7
        %v4009 = vsub.s32 %v4006, %v4008
        %v4010 = vrot.slane %v3996, %v4009
        %v4011 = vcombine.low %v3987, %v4003
        %v4012 = vcombine.high %v3987, %v4003
        %v4014 = vunpack.c.l.s4 1934713408
        %v4015 = vunpack.c.0.s8 %v4014
        %v4016 = vlaneseq
        %v4017 = vshrl.u32 %v4016, 7
        %v4018 = vsub.s32 %v4015, %v4017
        %v4019 = vrot.slane %v4011, %v4018
        %v4021 = vunpack.c.l.s4 1934713408
        %v4022 = vunpack.c.0.s8 %v4021
        %v4023 = vlaneseq
        %v4024 = vshrl.u32 %v4023, 7
        %v4025 = vsub.s32 %v4022, %v4024
        %v4026 = vrot.slane %v4012, %v4025
        %v4027 = vcombine.low %v3994, %v4010
        %v4028 = vcombine.high %v3994, %v4010
        %v4030 = vunpack.c.l.s4 1934713408
        %v4031 = vunpack.c.0.s8 %v4030
        %v4032 = vlaneseq
        %v4033 = vshrl.u32 %v4032, 7
        %v4034 = vsub.s32 %v4031, %v4033
        %v4035 = vrot.slane %v4027, %v4034
        %v4037 = vunpack.c.l.s4 1934713408
        %v4038 = vunpack.c.0.s8 %v4037
        %v4039 = vlaneseq
        %v4040 = vshrl.u32 %v4039, 7
        %v4041 = vsub.s32 %v4038, %v4040
        %v4042 = vrot.slane %v4028, %v4041
        %v4043 = vcombine.high %v4019, 0.0
        %v4044 = vcombine.high %v4026, 0.0
        %v4045 = vcombine.high %v4035, 0.0
        %v4046 = vcombine.high %v4042, 0.0
        %4048 = vrot.lane.b32.xlu0 %v3975, 16
        %v4049 = vpop.permute.xlu0 %4048
        %4052 = vrot.lane.b32.xlu0 %v3958, 32
        %v4053 = vpop.permute.xlu0 %4052
        %4056 = vrot.lane.b32.xlu0 %v3976, 48
        %v4057 = vpop.permute.xlu0 %4056
        %4060 = vrot.lane.b32.xlu0 %v3967, 64
        %v4061 = vpop.permute.xlu0 %4060
        %4064 = vrot.lane.b32.xlu0 %v3977, 80
        %v4065 = vpop.permute.xlu0 %4064
        %4068 = vrot.lane.b32.xlu0 %v3974, 96
        %v4069 = vpop.permute.xlu0 %4068
        %4072 = vrot.lane.b32.xlu0 %v3978, 112
        %v4073 = vpop.permute.xlu0 %4072
        %4076 = vrot.lane.b32.xlu0 %v4043, 16
        %v4077 = vpop.permute.xlu0 %4076
        %4080 = vrot.lane.b32.xlu0 %v4026, 32
        %v4081 = vpop.permute.xlu0 %4080
        %4084 = vrot.lane.b32.xlu0 %v4044, 48
        %v4085 = vpop.permute.xlu0 %4084
        %4088 = vrot.lane.b32.xlu0 %v4035, 64
        %v4089 = vpop.permute.xlu0 %4088
        %4092 = vrot.lane.b32.xlu0 %v4045, 80
        %v4093 = vpop.permute.xlu0 %4092
        %4096 = vrot.lane.b32.xlu0 %v4042, 96
        %v4097 = vpop.permute.xlu0 %4096
        %4100 = vrot.lane.b32.xlu0 %v4046, 112
        %v4101 = vpop.permute.xlu0 %4100
        %v4103 = vsel %vm454, %v3951, %v4049
        %v4104 = vsel %vm456, %v4103, %v4053
        %v4105 = vsel %vm458, %v4104, %v4057
        %v4106 = vsel %vm460, %v4105, %v4061
        %v4107 = vsel %vm462, %v4106, %v4065
        %v4108 = vsel %vm464, %v4107, %v4069
        %v4109 = vsel %vm466, %v4108, %v4073
        %v4110 = vsel %vm454, %v4019, %v4077
        %v4111 = vsel %vm456, %v4110, %v4081
        %v4112 = vsel %vm458, %v4111, %v4085
        %v4113 = vsel %vm460, %v4112, %v4089
        %v4114 = vsel %vm462, %v4113, %v4093
        %v4115 = vsel %vm464, %v4114, %v4097
        %v4116 = vsel %vm466, %v4115, %v4101
        %4117 = vrot.lane.b32.xlu0 %v3639, 118
        %v4118 = vpop.permute.xlu0 %4117
        %4119 = vrot.lane.b32.xlu0 %v3641, 118
        %v4120 = vpop.permute.xlu0 %4119
        %4121 = vrot.lane.b32.xlu0 %v3644, 118
        %v4122 = vpop.permute.xlu0 %4121
        %4123 = vrot.lane.b32.xlu0 %v3646, 118
        %v4124 = vpop.permute.xlu0 %4123
        %4125 = vrot.lane.b32.xlu0 %v3649, 118
        %v4126 = vpop.permute.xlu0 %4125
        %4127 = vrot.lane.b32.xlu0 %v3651, 118
        %v4128 = vpop.permute.xlu0 %4127
        %4129 = vrot.lane.b32.xlu0 %v3654, 118
        %v4130 = vpop.permute.xlu0 %4129
        %4131 = vrot.lane.b32.xlu0 %v3656, 118
        %v4132 = vpop.permute.xlu0 %4131
        %v4141 = vcombine.low %v4118, %v4126
        %v4142 = vcombine.high %v4118, %v4126
        %v4144 = vunpack.c.l.s4 1983009808
        %v4145 = vunpack.c.0.s8 %v4144
        %v4146 = vlaneseq
        %v4147 = vshrl.u32 %v4146, 7
        %v4148 = vsub.s32 %v4145, %v4147
        %v4149 = vrot.slane %v4141, %v4148
        %v4151 = vunpack.c.l.s4 1983009808
        %v4152 = vunpack.c.0.s8 %v4151
        %v4153 = vlaneseq
        %v4154 = vshrl.u32 %v4153, 7
        %v4155 = vsub.s32 %v4152, %v4154
        %v4156 = vrot.slane %v4142, %v4155
        %v4157 = vcombine.low %v4122, %v4130
        %v4158 = vcombine.high %v4122, %v4130
        %v4160 = vunpack.c.l.s4 1983009808
        %v4161 = vunpack.c.0.s8 %v4160
        %v4162 = vlaneseq
        %v4163 = vshrl.u32 %v4162, 7
        %v4164 = vsub.s32 %v4161, %v4163
        %v4165 = vrot.slane %v4157, %v4164
        %v4167 = vunpack.c.l.s4 1983009808
        %v4168 = vunpack.c.0.s8 %v4167
        %v4169 = vlaneseq
        %v4170 = vshrl.u32 %v4169, 7
        %v4171 = vsub.s32 %v4168, %v4170
        %v4172 = vrot.slane %v4158, %v4171
        %v4173 = vcombine.low %v4149, %v4165
        %v4174 = vcombine.high %v4149, %v4165
        %v4176 = vunpack.c.l.s4 1934713408
        %v4177 = vunpack.c.0.s8 %v4176
        %v4178 = vlaneseq
        %v4179 = vshrl.u32 %v4178, 7
        %v4180 = vsub.s32 %v4177, %v4179
        %v4181 = vrot.slane %v4173, %v4180
        %v4183 = vunpack.c.l.s4 1934713408
        %v4184 = vunpack.c.0.s8 %v4183
        %v4185 = vlaneseq
        %v4186 = vshrl.u32 %v4185, 7
        %v4187 = vsub.s32 %v4184, %v4186
        %v4188 = vrot.slane %v4174, %v4187
        %v4189 = vcombine.low %v4156, %v4172
        %v4190 = vcombine.high %v4156, %v4172
        %v4192 = vunpack.c.l.s4 1934713408
        %v4193 = vunpack.c.0.s8 %v4192
        %v4194 = vlaneseq
        %v4195 = vshrl.u32 %v4194, 7
        %v4196 = vsub.s32 %v4193, %v4195
        %v4197 = vrot.slane %v4189, %v4196
        %v4199 = vunpack.c.l.s4 1934713408
        %v4200 = vunpack.c.0.s8 %v4199
        %v4201 = vlaneseq
        %v4202 = vshrl.u32 %v4201, 7
        %v4203 = vsub.s32 %v4200, %v4202
        %v4204 = vrot.slane %v4190, %v4203
        %v4205 = vcombine.high %v4181, 0.0
        %v4206 = vcombine.high %v4188, 0.0
        %v4207 = vcombine.high %v4197, 0.0
        %v4208 = vcombine.high %v4204, 0.0
        %v4209 = vcombine.low %v4120, %v4128
        %v4210 = vcombine.high %v4120, %v4128
        %v4212 = vunpack.c.l.s4 1983009808
        %v4213 = vunpack.c.0.s8 %v4212
        %v4214 = vlaneseq
        %v4215 = vshrl.u32 %v4214, 7
        %v4216 = vsub.s32 %v4213, %v4215
        %v4217 = vrot.slane %v4209, %v4216
        %v4219 = vunpack.c.l.s4 1983009808
        %v4220 = vunpack.c.0.s8 %v4219
        %v4221 = vlaneseq
        %v4222 = vshrl.u32 %v4221, 7
        %v4223 = vsub.s32 %v4220, %v4222
        %v4224 = vrot.slane %v4210, %v4223
        %v4225 = vcombine.low %v4124, %v4132
        %v4226 = vcombine.high %v4124, %v4132
        %v4228 = vunpack.c.l.s4 1983009808
        %v4229 = vunpack.c.0.s8 %v4228
        %v4230 = vlaneseq
        %v4231 = vshrl.u32 %v4230, 7
        %v4232 = vsub.s32 %v4229, %v4231
        %v4233 = vrot.slane %v4225, %v4232
        %v4235 = vunpack.c.l.s4 1983009808
        %v4236 = vunpack.c.0.s8 %v4235
        %v4237 = vlaneseq
        %v4238 = vshrl.u32 %v4237, 7
        %v4239 = vsub.s32 %v4236, %v4238
        %v4240 = vrot.slane %v4226, %v4239
        %v4241 = vcombine.low %v4217, %v4233
        %v4242 = vcombine.high %v4217, %v4233
        %v4244 = vunpack.c.l.s4 1934713408
        %v4245 = vunpack.c.0.s8 %v4244
        %v4246 = vlaneseq
        %v4247 = vshrl.u32 %v4246, 7
        %v4248 = vsub.s32 %v4245, %v4247
        %v4249 = vrot.slane %v4241, %v4248
        %v4251 = vunpack.c.l.s4 1934713408
        %v4252 = vunpack.c.0.s8 %v4251
        %v4253 = vlaneseq
        %v4254 = vshrl.u32 %v4253, 7
        %v4255 = vsub.s32 %v4252, %v4254
        %v4256 = vrot.slane %v4242, %v4255
        %v4257 = vcombine.low %v4224, %v4240
        %v4258 = vcombine.high %v4224, %v4240
        %v4260 = vunpack.c.l.s4 1934713408
        %v4261 = vunpack.c.0.s8 %v4260
        %v4262 = vlaneseq
        %v4263 = vshrl.u32 %v4262, 7
        %v4264 = vsub.s32 %v4261, %v4263
        %v4265 = vrot.slane %v4257, %v4264
        %v4267 = vunpack.c.l.s4 1934713408
        %v4268 = vunpack.c.0.s8 %v4267
        %v4269 = vlaneseq
        %v4270 = vshrl.u32 %v4269, 7
        %v4271 = vsub.s32 %v4268, %v4270
        %v4272 = vrot.slane %v4258, %v4271
        %v4273 = vcombine.high %v4249, 0.0
        %v4274 = vcombine.high %v4256, 0.0
        %v4275 = vcombine.high %v4265, 0.0
        %v4276 = vcombine.high %v4272, 0.0
        %4278 = vrot.lane.b32.xlu0 %v4205, 16
        %v4279 = vpop.permute.xlu0 %4278
        %4282 = vrot.lane.b32.xlu0 %v4188, 32
        %v4283 = vpop.permute.xlu0 %4282
        %4286 = vrot.lane.b32.xlu0 %v4206, 48
        %v4287 = vpop.permute.xlu0 %4286
        %4290 = vrot.lane.b32.xlu0 %v4197, 64
        %v4291 = vpop.permute.xlu0 %4290
        %4294 = vrot.lane.b32.xlu0 %v4207, 80
        %v4295 = vpop.permute.xlu0 %4294
        %4298 = vrot.lane.b32.xlu0 %v4204, 96
        %v4299 = vpop.permute.xlu0 %4298
        %4302 = vrot.lane.b32.xlu0 %v4208, 112
        %v4303 = vpop.permute.xlu0 %4302
        %4306 = vrot.lane.b32.xlu0 %v4273, 16
        %v4307 = vpop.permute.xlu0 %4306
        %4310 = vrot.lane.b32.xlu0 %v4256, 32
        %v4311 = vpop.permute.xlu0 %4310
        %4314 = vrot.lane.b32.xlu0 %v4274, 48
        %v4315 = vpop.permute.xlu0 %4314
        %4318 = vrot.lane.b32.xlu0 %v4265, 64
        %v4319 = vpop.permute.xlu0 %4318
        %4322 = vrot.lane.b32.xlu0 %v4275, 80
        %v4323 = vpop.permute.xlu0 %4322
        %4326 = vrot.lane.b32.xlu0 %v4272, 96
        %v4327 = vpop.permute.xlu0 %4326
        %4330 = vrot.lane.b32.xlu0 %v4276, 112
        %v4331 = vpop.permute.xlu0 %4330
        %v4333 = vsel %vm454, %v4181, %v4279
        %v4334 = vsel %vm456, %v4333, %v4283
        %v4335 = vsel %vm458, %v4334, %v4287
        %v4336 = vsel %vm460, %v4335, %v4291
        %v4337 = vsel %vm462, %v4336, %v4295
        %v4338 = vsel %vm464, %v4337, %v4299
        %v4339 = vsel %vm466, %v4338, %v4303
        %v4340 = vsel %vm454, %v4249, %v4307
        %v4341 = vsel %vm456, %v4340, %v4311
        %v4342 = vsel %vm458, %v4341, %v4315
        %v4343 = vsel %vm460, %v4342, %v4319
        %v4344 = vsel %vm462, %v4343, %v4323
        %v4345 = vsel %vm464, %v4344, %v4327
        %v4346 = vsel %vm466, %v4345, %v4331
        %v4349 = vrot.slane %v2938, 4
        %v4350 = vrot.slane %v2945, 4
        %v4355 = vrot.slane %v3398, 4
        %v4356 = vrot.slane %v3405, 4
        %v4361 = vrot.slane %v3628, 4
        %v4362 = vrot.slane %v3635, 4
        %v4367 = vrot.slane %v4109, 4
        %v4368 = vrot.slane %v4116, 4
        %v4371 = vsel %vm2364, %v2708, %v4349
        %v4372 = vsel %vm2364, %v2715, %v4350
        %v4373 = vsel %vm2364, %v3168, %v4355
        %v4374 = vsel %vm2364, %v3175, %v4356
        %v4375 = vsel %vm2364, %v1387, %v4361
        %v4376 = vsel %vm2364, %v1394, %v4362
        %v4377 = vsel %vm2364, %v3879, %v4367
        %v4378 = vsel %vm2364, %v3886, %v4368
        %v4379 = vld [vmem:[%s1 + $0x8] sm:$0xff]
        %v4380 = vld [vmem:[%s2 + $0x8] sm:$0xff]
        %4382 = vset.pattern.permute.xlu0 0
        %4383 = vperm.xlu0 %4382, %v4380
        %v4384 = vpop.permute.xlu0 %4383
        %v4387 = vsel %vm2380, %v4379, 0
        %v4390 = vsel %vm2364, %v4339, 0
        %v4393 = vsel %vm2364, %v4346, 0
        %4395 = vmatprep.subr.mxu0 0.0
        %4396 = vmatpush1.msra.mxu0 0.0
        %4397 = vmatprep.subr.mxu0 0.0
        %4398 = vmatpush1.msra.mxu0 0.0
        %4399 = vmatprep.subr.mxu0 0.0
        %4400 = vmatpush1.msra.mxu0 0.0
        %4401 = vmatprep.subr.mxu0 0.0
        %4402 = vmatpush1.msra.mxu0 0.0
        %4403 = vmatprep.subr.mxu0 0.0
        %4404 = vmatpush1.msra.mxu0 0.0
        %4405 = vmatprep.subr.mxu0 0.0
        %4406 = vmatpush1.msra.mxu0 0.0
        %4407 = vmatprep.subr.mxu0 0.0
        %4408 = vmatpush1.msra.mxu0 0.0
        %4409 = vmatprep.subr.mxu0 0.0
        %4410 = vmatpush1.msra.mxu0 0.0
        %4411 = vmatprep.subr.mxu0 0.0
        %4412 = vmatpush1.msra.mxu0 0.0
        %4413 = vmatprep.subr.mxu0 0.0
        %4414 = vmatpush1.msra.mxu0 0.0
        %4415 = vmatprep.subr.mxu0 0.0
        %4416 = vmatpush1.msra.mxu0 0.0
        %4417 = vmatprep.subr.mxu0 %v4393
        %4418 = vmatpush1.msra.mxu0 %v4390
        %4419 = vmatprep.subr.mxu0 %v4378
        %4420 = vmatpush1.msra.mxu0 %v4377
        %4421 = vmatprep.subr.mxu0 %v4376
        %4422 = vmatpush1.msra.mxu0 %v4375
        %4423 = vmatprep.subr.mxu0 %v4374
        %4424 = vmatpush1.msra.mxu0 %v4373
        %4425 = vmatprep.subr.mxu0 %v4372
        %4426 = vmatpush1.msra.mxu0 %v4371
        %4427 = vmatprep.subr.mxu0 0.0
        %4428 = vmatpush2.msra.mxu0 0.0
        %4429 = vmatprep.subr.mxu0 0.0
        %4430 = vmatpush2.msra.mxu0 0.0
        %4431 = vmatprep.subr.mxu0 0.0
        %4432 = vmatpush2.msra.mxu0 0.0
        %4433 = vmatprep.subr.mxu0 0.0
        %4434 = vmatpush2.msra.mxu0 0.0
        %4435 = vmatprep.subr.mxu0 0.0
        %4436 = vmatpush2.msra.mxu0 0.0
        %4437 = vmatprep.subr.mxu0 0.0
        %4438 = vmatpush2.msra.mxu0 0.0
        %4439 = vmatprep.subr.mxu0 0.0
        %4440 = vmatpush2.msra.mxu0 0.0
        %4441 = vmatprep.subr.mxu0 0.0
        %4442 = vmatpush2.msra.mxu0 0.0
        %4443 = vmatprep.subr.mxu0 0.0
        %4444 = vmatpush2.msra.mxu0 0.0
        %4445 = vmatprep.subr.mxu0 0.0
        %4446 = vmatpush2.msra.mxu0 0.0
        %4447 = vmatprep.subr.mxu0 0.0
        %4448 = vmatpush2.msra.mxu0 0.0
        %4449 = vmatprep.subr.mxu0 0.0
        %4450 = vmatpush2.msra.mxu0 0.0
        %4451 = vmatprep.subr.mxu0 0.0
        %4452 = vmatpush2.msra.mxu0 0.0
        %4453 = vmatprep.subr.mxu0 0.0
        %4454 = vmatpush2.msra.mxu0 0.0
        %4455 = vmatprep.subr.mxu0 0.0
        %4456 = vmatpush2.msra.mxu0 0.0
        %4457 = vmatprep.subr.mxu0 0.0
        %4458 = vmatpush2.msra.mxu0 0.0
        %4459 = vmatprep.mubr.f32.mxu0 0.0
        %4460 = vmatmul.mubr.f32.gmra.mxu0 %v4387
        %v4461 = vpop.f32.mrf.mxu0
        %v4462 = vadd.f32 %v4384, %v4461
        %v4463 = vpop.f32.mrf.mxu0
        %v4464 = vadd.f32 %v4384, %v4463
        %4465 = vdwg.mxu0
        %v4466 = vmax.f32 %v4462, 0.0
        %v4467 = vmax.f32 %v4464, 0.0
        %4468 = vst [vmem:[%s188 + $0x10] sm:$0xff] %v4466
        %4469 = vst [vmem:[%s188 + $0x18] sm:$0xff] %v4467
        %v4470 = vrot.slane %v189, 4
        %v4471 = vrot.slane %v190, 4
        %v4472 = vsel %vm2364, %v4470, %v4471
        %v4473 = vrot.slane %v191, 4
        %v4474 = vsel %vm2364, %v4471, %v4473
        %v4475 = vrot.slane %v193, 4
        %v4476 = vrot.slane %v194, 4
        %v4477 = vsel %vm2364, %v4475, %v4476
        %v4478 = vrot.slane %v195, 4
        %v4479 = vsel %vm2364, %v4476, %v4478
        %v4480 = vrot.slane %v197, 4
        %v4481 = vrot.slane %v198, 4
        %v4482 = vsel %vm2364, %v4480, %v4481
        %v4483 = vrot.slane %v199, 4
        %v4484 = vsel %vm2364, %v4481, %v4483
        %v4485 = vrot.slane %v201, 4
        %v4486 = vrot.slane %v202, 4
        %v4487 = vsel %vm2364, %v4485, %v4486
        %v4488 = vrot.slane %v203, 4
        %v4489 = vsel %vm2364, %v4486, %v4488
        %4490 = vrot.lane.b32.xlu0 %v4472, 124
        %v4491 = vpop.permute.xlu0 %4490
        %4492 = vrot.lane.b32.xlu0 %v4474, 124
        %v4493 = vpop.permute.xlu0 %4492
        %4494 = vrot.lane.b32.xlu0 %v4477, 124
        %v4495 = vpop.permute.xlu0 %4494
        %4496 = vrot.lane.b32.xlu0 %v4479, 124
        %v4497 = vpop.permute.xlu0 %4496
        %4498 = vrot.lane.b32.xlu0 %v4482, 124
        %v4499 = vpop.permute.xlu0 %4498
        %4500 = vrot.lane.b32.xlu0 %v4484, 124
        %v4501 = vpop.permute.xlu0 %4500
        %4502 = vrot.lane.b32.xlu0 %v4487, 124
        %v4503 = vpop.permute.xlu0 %4502
        %4504 = vrot.lane.b32.xlu0 %v4489, 124
        %v4505 = vpop.permute.xlu0 %4504
        %v4514 = vcombine.low %v4491, %v4499
        %v4515 = vcombine.high %v4491, %v4499
        %v4517 = vunpack.c.l.s4 1983009808
        %v4518 = vunpack.c.0.s8 %v4517
        %v4519 = vlaneseq
        %v4520 = vshrl.u32 %v4519, 7
        %v4521 = vsub.s32 %v4518, %v4520
        %v4522 = vrot.slane %v4514, %v4521
        %v4524 = vunpack.c.l.s4 1983009808
        %v4525 = vunpack.c.0.s8 %v4524
        %v4526 = vlaneseq
        %v4527 = vshrl.u32 %v4526, 7
        %v4528 = vsub.s32 %v4525, %v4527
        %v4529 = vrot.slane %v4515, %v4528
        %v4530 = vcombine.low %v4495, %v4503
        %v4531 = vcombine.high %v4495, %v4503
        %v4533 = vunpack.c.l.s4 1983009808
        %v4534 = vunpack.c.0.s8 %v4533
        %v4535 = vlaneseq
        %v4536 = vshrl.u32 %v4535, 7
        %v4537 = vsub.s32 %v4534, %v4536
        %v4538 = vrot.slane %v4530, %v4537
        %v4540 = vunpack.c.l.s4 1983009808
        %v4541 = vunpack.c.0.s8 %v4540
        %v4542 = vlaneseq
        %v4543 = vshrl.u32 %v4542, 7
        %v4544 = vsub.s32 %v4541, %v4543
        %v4545 = vrot.slane %v4531, %v4544
        %v4546 = vcombine.low %v4522, %v4538
        %v4547 = vcombine.high %v4522, %v4538
        %v4549 = vunpack.c.l.s4 1934713408
        %v4550 = vunpack.c.0.s8 %v4549
        %v4551 = vlaneseq
        %v4552 = vshrl.u32 %v4551, 7
        %v4553 = vsub.s32 %v4550, %v4552
        %v4554 = vrot.slane %v4546, %v4553
        %v4556 = vunpack.c.l.s4 1934713408
        %v4557 = vunpack.c.0.s8 %v4556
        %v4558 = vlaneseq
        %v4559 = vshrl.u32 %v4558, 7
        %v4560 = vsub.s32 %v4557, %v4559
        %v4561 = vrot.slane %v4547, %v4560
        %v4562 = vcombine.low %v4529, %v4545
        %v4563 = vcombine.high %v4529, %v4545
        %v4565 = vunpack.c.l.s4 1934713408
        %v4566 = vunpack.c.0.s8 %v4565
        %v4567 = vlaneseq
        %v4568 = vshrl.u32 %v4567, 7
        %v4569 = vsub.s32 %v4566, %v4568
        %v4570 = vrot.slane %v4562, %v4569
        %v4572 = vunpack.c.l.s4 1934713408
        %v4573 = vunpack.c.0.s8 %v4572
        %v4574 = vlaneseq
        %v4575 = vshrl.u32 %v4574, 7
        %v4576 = vsub.s32 %v4573, %v4575
        %v4577 = vrot.slane %v4563, %v4576
        %v4578 = vcombine.high %v4554, 0.0
        %v4579 = vcombine.high %v4561, 0.0
        %v4580 = vcombine.high %v4570, 0.0
        %v4581 = vcombine.high %v4577, 0.0
        %v4582 = vcombine.low %v4493, %v4501
        %v4583 = vcombine.high %v4493, %v4501
        %v4585 = vunpack.c.l.s4 1983009808
        %v4586 = vunpack.c.0.s8 %v4585
        %v4587 = vlaneseq
        %v4588 = vshrl.u32 %v4587, 7
        %v4589 = vsub.s32 %v4586, %v4588
        %v4590 = vrot.slane %v4582, %v4589
        %v4592 = vunpack.c.l.s4 1983009808
        %v4593 = vunpack.c.0.s8 %v4592
        %v4594 = vlaneseq
        %v4595 = vshrl.u32 %v4594, 7
        %v4596 = vsub.s32 %v4593, %v4595
        %v4597 = vrot.slane %v4583, %v4596
        %v4598 = vcombine.low %v4497, %v4505
        %v4599 = vcombine.high %v4497, %v4505
        %v4601 = vunpack.c.l.s4 1983009808
        %v4602 = vunpack.c.0.s8 %v4601
        %v4603 = vlaneseq
        %v4604 = vshrl.u32 %v4603, 7
        %v4605 = vsub.s32 %v4602, %v4604
        %v4606 = vrot.slane %v4598, %v4605
        %v4608 = vunpack.c.l.s4 1983009808
        %v4609 = vunpack.c.0.s8 %v4608
        %v4610 = vlaneseq
        %v4611 = vshrl.u32 %v4610, 7
        %v4612 = vsub.s32 %v4609, %v4611
        %v4613 = vrot.slane %v4599, %v4612
        %v4614 = vcombine.low %v4590, %v4606
        %v4615 = vcombine.high %v4590, %v4606
        %v4617 = vunpack.c.l.s4 1934713408
        %v4618 = vunpack.c.0.s8 %v4617
        %v4619 = vlaneseq
        %v4620 = vshrl.u32 %v4619, 7
        %v4621 = vsub.s32 %v4618, %v4620
        %v4622 = vrot.slane %v4614, %v4621
        %v4624 = vunpack.c.l.s4 1934713408
        %v4625 = vunpack.c.0.s8 %v4624
        %v4626 = vlaneseq
        %v4627 = vshrl.u32 %v4626, 7
        %v4628 = vsub.s32 %v4625, %v4627
        %v4629 = vrot.slane %v4615, %v4628
        %v4630 = vcombine.low %v4597, %v4613
        %v4631 = vcombine.high %v4597, %v4613
        %v4633 = vunpack.c.l.s4 1934713408
        %v4634 = vunpack.c.0.s8 %v4633
        %v4635 = vlaneseq
        %v4636 = vshrl.u32 %v4635, 7
        %v4637 = vsub.s32 %v4634, %v4636
        %v4638 = vrot.slane %v4630, %v4637
        %v4640 = vunpack.c.l.s4 1934713408
        %v4641 = vunpack.c.0.s8 %v4640
        %v4642 = vlaneseq
        %v4643 = vshrl.u32 %v4642, 7
        %v4644 = vsub.s32 %v4641, %v4643
        %v4645 = vrot.slane %v4631, %v4644
        %v4646 = vcombine.high %v4622, 0.0
        %v4647 = vcombine.high %v4629, 0.0
        %v4648 = vcombine.high %v4638, 0.0
        %v4649 = vcombine.high %v4645, 0.0
        %4651 = vrot.lane.b32.xlu0 %v4578, 16
        %v4652 = vpop.permute.xlu0 %4651
        %4655 = vrot.lane.b32.xlu0 %v4561, 32
        %v4656 = vpop.permute.xlu0 %4655
        %4659 = vrot.lane.b32.xlu0 %v4579, 48
        %v4660 = vpop.permute.xlu0 %4659
        %4663 = vrot.lane.b32.xlu0 %v4570, 64
        %v4664 = vpop.permute.xlu0 %4663
        %4667 = vrot.lane.b32.xlu0 %v4580, 80
        %v4668 = vpop.permute.xlu0 %4667
        %4671 = vrot.lane.b32.xlu0 %v4577, 96
        %v4672 = vpop.permute.xlu0 %4671
        %4675 = vrot.lane.b32.xlu0 %v4581, 112
        %v4676 = vpop.permute.xlu0 %4675
        %4679 = vrot.lane.b32.xlu0 %v4646, 16
        %v4680 = vpop.permute.xlu0 %4679
        %4683 = vrot.lane.b32.xlu0 %v4629, 32
        %v4684 = vpop.permute.xlu0 %4683
        %4687 = vrot.lane.b32.xlu0 %v4647, 48
        %v4688 = vpop.permute.xlu0 %4687
        %4691 = vrot.lane.b32.xlu0 %v4638, 64
        %v4692 = vpop.permute.xlu0 %4691
        %4695 = vrot.lane.b32.xlu0 %v4648, 80
        %v4696 = vpop.permute.xlu0 %4695
        %4699 = vrot.lane.b32.xlu0 %v4645, 96
        %v4700 = vpop.permute.xlu0 %4699
        %4703 = vrot.lane.b32.xlu0 %v4649, 112
        %v4704 = vpop.permute.xlu0 %4703
        %v4706 = vsel %vm454, %v4554, %v4652
        %v4707 = vsel %vm456, %v4706, %v4656
        %v4708 = vsel %vm458, %v4707, %v4660
        %v4709 = vsel %vm460, %v4708, %v4664
        %v4710 = vsel %vm462, %v4709, %v4668
        %v4711 = vsel %vm464, %v4710, %v4672
        %v4712 = vsel %vm466, %v4711, %v4676
        %v4713 = vsel %vm454, %v4622, %v4680
        %v4714 = vsel %vm456, %v4713, %v4684
        %v4715 = vsel %vm458, %v4714, %v4688
        %v4716 = vsel %vm460, %v4715, %v4692
        %v4717 = vsel %vm462, %v4716, %v4696
        %v4718 = vsel %vm464, %v4717, %v4700
        %v4719 = vsel %vm466, %v4718, %v4704
        %4720 = vrot.lane.b32.xlu0 %v4472, 120
        %v4721 = vpop.permute.xlu0 %4720
        %4722 = vrot.lane.b32.xlu0 %v4474, 120
        %v4723 = vpop.permute.xlu0 %4722
        %4724 = vrot.lane.b32.xlu0 %v4477, 120
        %v4725 = vpop.permute.xlu0 %4724
        %4726 = vrot.lane.b32.xlu0 %v4479, 120
        %v4727 = vpop.permute.xlu0 %4726
        %4728 = vrot.lane.b32.xlu0 %v4482, 120
        %v4729 = vpop.permute.xlu0 %4728
        %4730 = vrot.lane.b32.xlu0 %v4484, 120
        %v4731 = vpop.permute.xlu0 %4730
        %4732 = vrot.lane.b32.xlu0 %v4487, 120
        %v4733 = vpop.permute.xlu0 %4732
        %4734 = vrot.lane.b32.xlu0 %v4489, 120
        %v4735 = vpop.permute.xlu0 %4734
        %v4744 = vcombine.low %v4721, %v4729
        %v4745 = vcombine.high %v4721, %v4729
        %v4747 = vunpack.c.l.s4 1983009808
        %v4748 = vunpack.c.0.s8 %v4747
        %v4749 = vlaneseq
        %v4750 = vshrl.u32 %v4749, 7
        %v4751 = vsub.s32 %v4748, %v4750
        %v4752 = vrot.slane %v4744, %v4751
        %v4754 = vunpack.c.l.s4 1983009808
        %v4755 = vunpack.c.0.s8 %v4754
        %v4756 = vlaneseq
        %v4757 = vshrl.u32 %v4756, 7
        %v4758 = vsub.s32 %v4755, %v4757
        %v4759 = vrot.slane %v4745, %v4758
        %v4760 = vcombine.low %v4725, %v4733
        %v4761 = vcombine.high %v4725, %v4733
        %v4763 = vunpack.c.l.s4 1983009808
        %v4764 = vunpack.c.0.s8 %v4763
        %v4765 = vlaneseq
        %v4766 = vshrl.u32 %v4765, 7
        %v4767 = vsub.s32 %v4764, %v4766
        %v4768 = vrot.slane %v4760, %v4767
        %v4770 = vunpack.c.l.s4 1983009808
        %v4771 = vunpack.c.0.s8 %v4770
        %v4772 = vlaneseq
        %v4773 = vshrl.u32 %v4772, 7
        %v4774 = vsub.s32 %v4771, %v4773
        %v4775 = vrot.slane %v4761, %v4774
        %v4776 = vcombine.low %v4752, %v4768
        %v4777 = vcombine.high %v4752, %v4768
        %v4779 = vunpack.c.l.s4 1934713408
        %v4780 = vunpack.c.0.s8 %v4779
        %v4781 = vlaneseq
        %v4782 = vshrl.u32 %v4781, 7
        %v4783 = vsub.s32 %v4780, %v4782
        %v4784 = vrot.slane %v4776, %v4783
        %v4786 = vunpack.c.l.s4 1934713408
        %v4787 = vunpack.c.0.s8 %v4786
        %v4788 = vlaneseq
        %v4789 = vshrl.u32 %v4788, 7
        %v4790 = vsub.s32 %v4787, %v4789
        %v4791 = vrot.slane %v4777, %v4790
        %v4792 = vcombine.low %v4759, %v4775
        %v4793 = vcombine.high %v4759, %v4775
        %v4795 = vunpack.c.l.s4 1934713408
        %v4796 = vunpack.c.0.s8 %v4795
        %v4797 = vlaneseq
        %v4798 = vshrl.u32 %v4797, 7
        %v4799 = vsub.s32 %v4796, %v4798
        %v4800 = vrot.slane %v4792, %v4799
        %v4802 = vunpack.c.l.s4 1934713408
        %v4803 = vunpack.c.0.s8 %v4802
        %v4804 = vlaneseq
        %v4805 = vshrl.u32 %v4804, 7
        %v4806 = vsub.s32 %v4803, %v4805
        %v4807 = vrot.slane %v4793, %v4806
        %v4808 = vcombine.high %v4784, 0.0
        %v4809 = vcombine.high %v4791, 0.0
        %v4810 = vcombine.high %v4800, 0.0
        %v4811 = vcombine.high %v4807, 0.0
        %v4812 = vcombine.low %v4723, %v4731
        %v4813 = vcombine.high %v4723, %v4731
        %v4815 = vunpack.c.l.s4 1983009808
        %v4816 = vunpack.c.0.s8 %v4815
        %v4817 = vlaneseq
        %v4818 = vshrl.u32 %v4817, 7
        %v4819 = vsub.s32 %v4816, %v4818
        %v4820 = vrot.slane %v4812, %v4819
        %v4822 = vunpack.c.l.s4 1983009808
        %v4823 = vunpack.c.0.s8 %v4822
        %v4824 = vlaneseq
        %v4825 = vshrl.u32 %v4824, 7
        %v4826 = vsub.s32 %v4823, %v4825
        %v4827 = vrot.slane %v4813, %v4826
        %v4828 = vcombine.low %v4727, %v4735
        %v4829 = vcombine.high %v4727, %v4735
        %v4831 = vunpack.c.l.s4 1983009808
        %v4832 = vunpack.c.0.s8 %v4831
        %v4833 = vlaneseq
        %v4834 = vshrl.u32 %v4833, 7
        %v4835 = vsub.s32 %v4832, %v4834
        %v4836 = vrot.slane %v4828, %v4835
        %v4838 = vunpack.c.l.s4 1983009808
        %v4839 = vunpack.c.0.s8 %v4838
        %v4840 = vlaneseq
        %v4841 = vshrl.u32 %v4840, 7
        %v4842 = vsub.s32 %v4839, %v4841
        %v4843 = vrot.slane %v4829, %v4842
        %v4844 = vcombine.low %v4820, %v4836
        %v4845 = vcombine.high %v4820, %v4836
        %v4847 = vunpack.c.l.s4 1934713408
        %v4848 = vunpack.c.0.s8 %v4847
        %v4849 = vlaneseq
        %v4850 = vshrl.u32 %v4849, 7
        %v4851 = vsub.s32 %v4848, %v4850
        %v4852 = vrot.slane %v4844, %v4851
        %v4854 = vunpack.c.l.s4 1934713408
        %v4855 = vunpack.c.0.s8 %v4854
        %v4856 = vlaneseq
        %v4857 = vshrl.u32 %v4856, 7
        %v4858 = vsub.s32 %v4855, %v4857
        %v4859 = vrot.slane %v4845, %v4858
        %v4860 = vcombine.low %v4827, %v4843
        %v4861 = vcombine.high %v4827, %v4843
        %v4863 = vunpack.c.l.s4 1934713408
        %v4864 = vunpack.c.0.s8 %v4863
        %v4865 = vlaneseq
        %v4866 = vshrl.u32 %v4865, 7
        %v4867 = vsub.s32 %v4864, %v4866
        %v4868 = vrot.slane %v4860, %v4867
        %v4870 = vunpack.c.l.s4 1934713408
        %v4871 = vunpack.c.0.s8 %v4870
        %v4872 = vlaneseq
        %v4873 = vshrl.u32 %v4872, 7
        %v4874 = vsub.s32 %v4871, %v4873
        %v4875 = vrot.slane %v4861, %v4874
        %v4876 = vcombine.high %v4852, 0.0
        %v4877 = vcombine.high %v4859, 0.0
        %v4878 = vcombine.high %v4868, 0.0
        %v4879 = vcombine.high %v4875, 0.0
        %4881 = vrot.lane.b32.xlu0 %v4808, 16
        %v4882 = vpop.permute.xlu0 %4881
        %4885 = vrot.lane.b32.xlu0 %v4791, 32
        %v4886 = vpop.permute.xlu0 %4885
        %4889 = vrot.lane.b32.xlu0 %v4809, 48
        %v4890 = vpop.permute.xlu0 %4889
        %4893 = vrot.lane.b32.xlu0 %v4800, 64
        %v4894 = vpop.permute.xlu0 %4893
        %4897 = vrot.lane.b32.xlu0 %v4810, 80
        %v4898 = vpop.permute.xlu0 %4897
        %4901 = vrot.lane.b32.xlu0 %v4807, 96
        %v4902 = vpop.permute.xlu0 %4901
        %4905 = vrot.lane.b32.xlu0 %v4811, 112
        %v4906 = vpop.permute.xlu0 %4905
        %4909 = vrot.lane.b32.xlu0 %v4876, 16
        %v4910 = vpop.permute.xlu0 %4909
        %4913 = vrot.lane.b32.xlu0 %v4859, 32
        %v4914 = vpop.permute.xlu0 %4913
        %4917 = vrot.lane.b32.xlu0 %v4877, 48
        %v4918 = vpop.permute.xlu0 %4917
        %4921 = vrot.lane.b32.xlu0 %v4868, 64
        %v4922 = vpop.permute.xlu0 %4921
        %4925 = vrot.lane.b32.xlu0 %v4878, 80
        %v4926 = vpop.permute.xlu0 %4925
        %4929 = vrot.lane.b32.xlu0 %v4875, 96
        %v4930 = vpop.permute.xlu0 %4929
        %4933 = vrot.lane.b32.xlu0 %v4879, 112
        %v4934 = vpop.permute.xlu0 %4933
        %v4936 = vsel %vm454, %v4784, %v4882
        %v4937 = vsel %vm456, %v4936, %v4886
        %v4938 = vsel %vm458, %v4937, %v4890
        %v4939 = vsel %vm460, %v4938, %v4894
        %v4940 = vsel %vm462, %v4939, %v4898
        %v4941 = vsel %vm464, %v4940, %v4902
        %v4942 = vsel %vm466, %v4941, %v4906
        %v4943 = vsel %vm454, %v4852, %v4910
        %v4944 = vsel %vm456, %v4943, %v4914
        %v4945 = vsel %vm458, %v4944, %v4918
        %v4946 = vsel %vm460, %v4945, %v4922
        %v4947 = vsel %vm462, %v4946, %v4926
        %v4948 = vsel %vm464, %v4947, %v4930
        %v4949 = vsel %vm466, %v4948, %v4934
        %4950 = vrot.lane.b32.xlu0 %v4472, 116
        %v4951 = vpop.permute.xlu0 %4950
        %4952 = vrot.lane.b32.xlu0 %v4474, 116
        %v4953 = vpop.permute.xlu0 %4952
        %4954 = vrot.lane.b32.xlu0 %v4477, 116
        %v4955 = vpop.permute.xlu0 %4954
        %4956 = vrot.lane.b32.xlu0 %v4479, 116
        %v4957 = vpop.permute.xlu0 %4956
        %4958 = vrot.lane.b32.xlu0 %v4482, 116
        %v4959 = vpop.permute.xlu0 %4958
        %4960 = vrot.lane.b32.xlu0 %v4484, 116
        %v4961 = vpop.permute.xlu0 %4960
        %4962 = vrot.lane.b32.xlu0 %v4487, 116
        %v4963 = vpop.permute.xlu0 %4962
        %4964 = vrot.lane.b32.xlu0 %v4489, 116
        %v4965 = vpop.permute.xlu0 %4964
        %v4974 = vcombine.low %v4951, %v4959
        %v4975 = vcombine.high %v4951, %v4959
        %v4977 = vunpack.c.l.s4 1983009808
        %v4978 = vunpack.c.0.s8 %v4977
        %v4979 = vlaneseq
        %v4980 = vshrl.u32 %v4979, 7
        %v4981 = vsub.s32 %v4978, %v4980
        %v4982 = vrot.slane %v4974, %v4981
        %v4984 = vunpack.c.l.s4 1983009808
        %v4985 = vunpack.c.0.s8 %v4984
        %v4986 = vlaneseq
        %v4987 = vshrl.u32 %v4986, 7
        %v4988 = vsub.s32 %v4985, %v4987
        %v4989 = vrot.slane %v4975, %v4988
        %v4990 = vcombine.low %v4955, %v4963
        %v4991 = vcombine.high %v4955, %v4963
        %v4993 = vunpack.c.l.s4 1983009808
        %v4994 = vunpack.c.0.s8 %v4993
        %v4995 = vlaneseq
        %v4996 = vshrl.u32 %v4995, 7
        %v4997 = vsub.s32 %v4994, %v4996
        %v4998 = vrot.slane %v4990, %v4997
        %v5000 = vunpack.c.l.s4 1983009808
        %v5001 = vunpack.c.0.s8 %v5000
        %v5002 = vlaneseq
        %v5003 = vshrl.u32 %v5002, 7
        %v5004 = vsub.s32 %v5001, %v5003
        %v5005 = vrot.slane %v4991, %v5004
        %v5006 = vcombine.low %v4982, %v4998
        %v5007 = vcombine.high %v4982, %v4998
        %v5009 = vunpack.c.l.s4 1934713408
        %v5010 = vunpack.c.0.s8 %v5009
        %v5011 = vlaneseq
        %v5012 = vshrl.u32 %v5011, 7
        %v5013 = vsub.s32 %v5010, %v5012
        %v5014 = vrot.slane %v5006, %v5013
        %v5016 = vunpack.c.l.s4 1934713408
        %v5017 = vunpack.c.0.s8 %v5016
        %v5018 = vlaneseq
        %v5019 = vshrl.u32 %v5018, 7
        %v5020 = vsub.s32 %v5017, %v5019
        %v5021 = vrot.slane %v5007, %v5020
        %v5022 = vcombine.low %v4989, %v5005
        %v5023 = vcombine.high %v4989, %v5005
        %v5025 = vunpack.c.l.s4 1934713408
        %v5026 = vunpack.c.0.s8 %v5025
        %v5027 = vlaneseq
        %v5028 = vshrl.u32 %v5027, 7
        %v5029 = vsub.s32 %v5026, %v5028
        %v5030 = vrot.slane %v5022, %v5029
        %v5032 = vunpack.c.l.s4 1934713408
        %v5033 = vunpack.c.0.s8 %v5032
        %v5034 = vlaneseq
        %v5035 = vshrl.u32 %v5034, 7
        %v5036 = vsub.s32 %v5033, %v5035
        %v5037 = vrot.slane %v5023, %v5036
        %v5038 = vcombine.high %v5014, 0.0
        %v5039 = vcombine.high %v5021, 0.0
        %v5040 = vcombine.high %v5030, 0.0
        %v5041 = vcombine.high %v5037, 0.0
        %v5042 = vcombine.low %v4953, %v4961
        %v5043 = vcombine.high %v4953, %v4961
        %v5045 = vunpack.c.l.s4 1983009808
        %v5046 = vunpack.c.0.s8 %v5045
        %v5047 = vlaneseq
        %v5048 = vshrl.u32 %v5047, 7
        %v5049 = vsub.s32 %v5046, %v5048
        %v5050 = vrot.slane %v5042, %v5049
        %v5052 = vunpack.c.l.s4 1983009808
        %v5053 = vunpack.c.0.s8 %v5052
        %v5054 = vlaneseq
        %v5055 = vshrl.u32 %v5054, 7
        %v5056 = vsub.s32 %v5053, %v5055
        %v5057 = vrot.slane %v5043, %v5056
        %v5058 = vcombine.low %v4957, %v4965
        %v5059 = vcombine.high %v4957, %v4965
        %v5061 = vunpack.c.l.s4 1983009808
        %v5062 = vunpack.c.0.s8 %v5061
        %v5063 = vlaneseq
        %v5064 = vshrl.u32 %v5063, 7
        %v5065 = vsub.s32 %v5062, %v5064
        %v5066 = vrot.slane %v5058, %v5065
        %v5068 = vunpack.c.l.s4 1983009808
        %v5069 = vunpack.c.0.s8 %v5068
        %v5070 = vlaneseq
        %v5071 = vshrl.u32 %v5070, 7
        %v5072 = vsub.s32 %v5069, %v5071
        %v5073 = vrot.slane %v5059, %v5072
        %v5074 = vcombine.low %v5050, %v5066
        %v5075 = vcombine.high %v5050, %v5066
        %v5077 = vunpack.c.l.s4 1934713408
        %v5078 = vunpack.c.0.s8 %v5077
        %v5079 = vlaneseq
        %v5080 = vshrl.u32 %v5079, 7
        %v5081 = vsub.s32 %v5078, %v5080
        %v5082 = vrot.slane %v5074, %v5081
        %v5084 = vunpack.c.l.s4 1934713408
        %v5085 = vunpack.c.0.s8 %v5084
        %v5086 = vlaneseq
        %v5087 = vshrl.u32 %v5086, 7
        %v5088 = vsub.s32 %v5085, %v5087
        %v5089 = vrot.slane %v5075, %v5088
        %v5090 = vcombine.low %v5057, %v5073
        %v5091 = vcombine.high %v5057, %v5073
        %v5093 = vunpack.c.l.s4 1934713408
        %v5094 = vunpack.c.0.s8 %v5093
        %v5095 = vlaneseq
        %v5096 = vshrl.u32 %v5095, 7
        %v5097 = vsub.s32 %v5094, %v5096
        %v5098 = vrot.slane %v5090, %v5097
        %v5100 = vunpack.c.l.s4 1934713408
        %v5101 = vunpack.c.0.s8 %v5100
        %v5102 = vlaneseq
        %v5103 = vshrl.u32 %v5102, 7
        %v5104 = vsub.s32 %v5101, %v5103
        %v5105 = vrot.slane %v5091, %v5104
        %v5106 = vcombine.high %v5082, 0.0
        %v5107 = vcombine.high %v5089, 0.0
        %v5108 = vcombine.high %v5098, 0.0
        %v5109 = vcombine.high %v5105, 0.0
        %5111 = vrot.lane.b32.xlu0 %v5038, 16
        %v5112 = vpop.permute.xlu0 %5111
        %5115 = vrot.lane.b32.xlu0 %v5021, 32
        %v5116 = vpop.permute.xlu0 %5115
        %5119 = vrot.lane.b32.xlu0 %v5039, 48
        %v5120 = vpop.permute.xlu0 %5119
        %5123 = vrot.lane.b32.xlu0 %v5030, 64
        %v5124 = vpop.permute.xlu0 %5123
        %5127 = vrot.lane.b32.xlu0 %v5040, 80
        %v5128 = vpop.permute.xlu0 %5127
        %5131 = vrot.lane.b32.xlu0 %v5037, 96
        %v5132 = vpop.permute.xlu0 %5131
        %5135 = vrot.lane.b32.xlu0 %v5041, 112
        %v5136 = vpop.permute.xlu0 %5135
        %5139 = vrot.lane.b32.xlu0 %v5106, 16
        %v5140 = vpop.permute.xlu0 %5139
        %5143 = vrot.lane.b32.xlu0 %v5089, 32
        %v5144 = vpop.permute.xlu0 %5143
        %5147 = vrot.lane.b32.xlu0 %v5107, 48
        %v5148 = vpop.permute.xlu0 %5147
        %5151 = vrot.lane.b32.xlu0 %v5098, 64
        %v5152 = vpop.permute.xlu0 %5151
        %5155 = vrot.lane.b32.xlu0 %v5108, 80
        %v5156 = vpop.permute.xlu0 %5155
        %5159 = vrot.lane.b32.xlu0 %v5105, 96
        %v5160 = vpop.permute.xlu0 %5159
        %5163 = vrot.lane.b32.xlu0 %v5109, 112
        %v5164 = vpop.permute.xlu0 %5163
        %v5166 = vsel %vm454, %v5014, %v5112
        %v5167 = vsel %vm456, %v5166, %v5116
        %v5168 = vsel %vm458, %v5167, %v5120
        %v5169 = vsel %vm460, %v5168, %v5124
        %v5170 = vsel %vm462, %v5169, %v5128
        %v5171 = vsel %vm464, %v5170, %v5132
        %v5172 = vsel %vm466, %v5171, %v5136
        %v5173 = vsel %vm454, %v5082, %v5140
        %v5174 = vsel %vm456, %v5173, %v5144
        %v5175 = vsel %vm458, %v5174, %v5148
        %v5176 = vsel %vm460, %v5175, %v5152
        %v5177 = vsel %vm462, %v5176, %v5156
        %v5178 = vsel %vm464, %v5177, %v5160
        %v5179 = vsel %vm466, %v5178, %v5164
        %5180 = vrot.lane.b32.xlu0 %v190, 124
        %v5181 = vpop.permute.xlu0 %5180
        %5182 = vrot.lane.b32.xlu0 %v191, 124
        %v5183 = vpop.permute.xlu0 %5182
        %5184 = vrot.lane.b32.xlu0 %v194, 124
        %v5185 = vpop.permute.xlu0 %5184
        %5186 = vrot.lane.b32.xlu0 %v195, 124
        %v5187 = vpop.permute.xlu0 %5186
        %5188 = vrot.lane.b32.xlu0 %v198, 124
        %v5189 = vpop.permute.xlu0 %5188
        %5190 = vrot.lane.b32.xlu0 %v199, 124
        %v5191 = vpop.permute.xlu0 %5190
        %5192 = vrot.lane.b32.xlu0 %v202, 124
        %v5193 = vpop.permute.xlu0 %5192
        %5194 = vrot.lane.b32.xlu0 %v203, 124
        %v5195 = vpop.permute.xlu0 %5194
        %v5204 = vcombine.low %v5181, %v5189
        %v5205 = vcombine.high %v5181, %v5189
        %v5207 = vunpack.c.l.s4 1983009808
        %v5208 = vunpack.c.0.s8 %v5207
        %v5209 = vlaneseq
        %v5210 = vshrl.u32 %v5209, 7
        %v5211 = vsub.s32 %v5208, %v5210
        %v5212 = vrot.slane %v5204, %v5211
        %v5214 = vunpack.c.l.s4 1983009808
        %v5215 = vunpack.c.0.s8 %v5214
        %v5216 = vlaneseq
        %v5217 = vshrl.u32 %v5216, 7
        %v5218 = vsub.s32 %v5215, %v5217
        %v5219 = vrot.slane %v5205, %v5218
        %v5220 = vcombine.low %v5185, %v5193
        %v5221 = vcombine.high %v5185, %v5193
        %v5223 = vunpack.c.l.s4 1983009808
        %v5224 = vunpack.c.0.s8 %v5223
        %v5225 = vlaneseq
        %v5226 = vshrl.u32 %v5225, 7
        %v5227 = vsub.s32 %v5224, %v5226
        %v5228 = vrot.slane %v5220, %v5227
        %v5230 = vunpack.c.l.s4 1983009808
        %v5231 = vunpack.c.0.s8 %v5230
        %v5232 = vlaneseq
        %v5233 = vshrl.u32 %v5232, 7
        %v5234 = vsub.s32 %v5231, %v5233
        %v5235 = vrot.slane %v5221, %v5234
        %v5236 = vcombine.low %v5212, %v5228
        %v5237 = vcombine.high %v5212, %v5228
        %v5239 = vunpack.c.l.s4 1934713408
        %v5240 = vunpack.c.0.s8 %v5239
        %v5241 = vlaneseq
        %v5242 = vshrl.u32 %v5241, 7
        %v5243 = vsub.s32 %v5240, %v5242
        %v5244 = vrot.slane %v5236, %v5243
        %v5246 = vunpack.c.l.s4 1934713408
        %v5247 = vunpack.c.0.s8 %v5246
        %v5248 = vlaneseq
        %v5249 = vshrl.u32 %v5248, 7
        %v5250 = vsub.s32 %v5247, %v5249
        %v5251 = vrot.slane %v5237, %v5250
        %v5252 = vcombine.low %v5219, %v5235
        %v5253 = vcombine.high %v5219, %v5235
        %v5255 = vunpack.c.l.s4 1934713408
        %v5256 = vunpack.c.0.s8 %v5255
        %v5257 = vlaneseq
        %v5258 = vshrl.u32 %v5257, 7
        %v5259 = vsub.s32 %v5256, %v5258
        %v5260 = vrot.slane %v5252, %v5259
        %v5262 = vunpack.c.l.s4 1934713408
        %v5263 = vunpack.c.0.s8 %v5262
        %v5264 = vlaneseq
        %v5265 = vshrl.u32 %v5264, 7
        %v5266 = vsub.s32 %v5263, %v5265
        %v5267 = vrot.slane %v5253, %v5266
        %v5268 = vcombine.high %v5244, 0.0
        %v5269 = vcombine.high %v5251, 0.0
        %v5270 = vcombine.high %v5260, 0.0
        %v5271 = vcombine.high %v5267, 0.0
        %v5272 = vcombine.low %v5183, %v5191
        %v5273 = vcombine.high %v5183, %v5191
        %v5275 = vunpack.c.l.s4 1983009808
        %v5276 = vunpack.c.0.s8 %v5275
        %v5277 = vlaneseq
        %v5278 = vshrl.u32 %v5277, 7
        %v5279 = vsub.s32 %v5276, %v5278
        %v5280 = vrot.slane %v5272, %v5279
        %v5282 = vunpack.c.l.s4 1983009808
        %v5283 = vunpack.c.0.s8 %v5282
        %v5284 = vlaneseq
        %v5285 = vshrl.u32 %v5284, 7
        %v5286 = vsub.s32 %v5283, %v5285
        %v5287 = vrot.slane %v5273, %v5286
        %v5288 = vcombine.low %v5187, %v5195
        %v5289 = vcombine.high %v5187, %v5195
        %v5291 = vunpack.c.l.s4 1983009808
        %v5292 = vunpack.c.0.s8 %v5291
        %v5293 = vlaneseq
        %v5294 = vshrl.u32 %v5293, 7
        %v5295 = vsub.s32 %v5292, %v5294
        %v5296 = vrot.slane %v5288, %v5295
        %v5298 = vunpack.c.l.s4 1983009808
        %v5299 = vunpack.c.0.s8 %v5298
        %v5300 = vlaneseq
        %v5301 = vshrl.u32 %v5300, 7
        %v5302 = vsub.s32 %v5299, %v5301
        %v5303 = vrot.slane %v5289, %v5302
        %v5304 = vcombine.low %v5280, %v5296
        %v5305 = vcombine.high %v5280, %v5296
        %v5307 = vunpack.c.l.s4 1934713408
        %v5308 = vunpack.c.0.s8 %v5307
        %v5309 = vlaneseq
        %v5310 = vshrl.u32 %v5309, 7
        %v5311 = vsub.s32 %v5308, %v5310
        %v5312 = vrot.slane %v5304, %v5311
        %v5314 = vunpack.c.l.s4 1934713408
        %v5315 = vunpack.c.0.s8 %v5314
        %v5316 = vlaneseq
        %v5317 = vshrl.u32 %v5316, 7
        %v5318 = vsub.s32 %v5315, %v5317
        %v5319 = vrot.slane %v5305, %v5318
        %v5320 = vcombine.low %v5287, %v5303
        %v5321 = vcombine.high %v5287, %v5303
        %v5323 = vunpack.c.l.s4 1934713408
        %v5324 = vunpack.c.0.s8 %v5323
        %v5325 = vlaneseq
        %v5326 = vshrl.u32 %v5325, 7
        %v5327 = vsub.s32 %v5324, %v5326
        %v5328 = vrot.slane %v5320, %v5327
        %v5330 = vunpack.c.l.s4 1934713408
        %v5331 = vunpack.c.0.s8 %v5330
        %v5332 = vlaneseq
        %v5333 = vshrl.u32 %v5332, 7
        %v5334 = vsub.s32 %v5331, %v5333
        %v5335 = vrot.slane %v5321, %v5334
        %v5336 = vcombine.high %v5312, 0.0
        %v5337 = vcombine.high %v5319, 0.0
        %v5338 = vcombine.high %v5328, 0.0
        %v5339 = vcombine.high %v5335, 0.0
        %5341 = vrot.lane.b32.xlu0 %v5268, 16
        %v5342 = vpop.permute.xlu0 %5341
        %5345 = vrot.lane.b32.xlu0 %v5251, 32
        %v5346 = vpop.permute.xlu0 %5345
        %5349 = vrot.lane.b32.xlu0 %v5269, 48
        %v5350 = vpop.permute.xlu0 %5349
        %5353 = vrot.lane.b32.xlu0 %v5260, 64
        %v5354 = vpop.permute.xlu0 %5353
        %5357 = vrot.lane.b32.xlu0 %v5270, 80
        %v5358 = vpop.permute.xlu0 %5357
        %5361 = vrot.lane.b32.xlu0 %v5267, 96
        %v5362 = vpop.permute.xlu0 %5361
        %5365 = vrot.lane.b32.xlu0 %v5271, 112
        %v5366 = vpop.permute.xlu0 %5365
        %5369 = vrot.lane.b32.xlu0 %v5336, 16
        %v5370 = vpop.permute.xlu0 %5369
        %5373 = vrot.lane.b32.xlu0 %v5319, 32
        %v5374 = vpop.permute.xlu0 %5373
        %5377 = vrot.lane.b32.xlu0 %v5337, 48
        %v5378 = vpop.permute.xlu0 %5377
        %5381 = vrot.lane.b32.xlu0 %v5328, 64
        %v5382 = vpop.permute.xlu0 %5381
        %5385 = vrot.lane.b32.xlu0 %v5338, 80
        %v5386 = vpop.permute.xlu0 %5385
        %5389 = vrot.lane.b32.xlu0 %v5335, 96
        %v5390 = vpop.permute.xlu0 %5389
        %5393 = vrot.lane.b32.xlu0 %v5339, 112
        %v5394 = vpop.permute.xlu0 %5393
        %v5396 = vsel %vm454, %v5244, %v5342
        %v5397 = vsel %vm456, %v5396, %v5346
        %v5398 = vsel %vm458, %v5397, %v5350
        %v5399 = vsel %vm460, %v5398, %v5354
        %v5400 = vsel %vm462, %v5399, %v5358
        %v5401 = vsel %vm464, %v5400, %v5362
        %v5402 = vsel %vm466, %v5401, %v5366
        %v5403 = vsel %vm454, %v5312, %v5370
        %v5404 = vsel %vm456, %v5403, %v5374
        %v5405 = vsel %vm458, %v5404, %v5378
        %v5406 = vsel %vm460, %v5405, %v5382
        %v5407 = vsel %vm462, %v5406, %v5386
        %v5408 = vsel %vm464, %v5407, %v5390
        %v5409 = vsel %vm466, %v5408, %v5394
        %5410 = vrot.lane.b32.xlu0 %v190, 116
        %v5411 = vpop.permute.xlu0 %5410
        %5412 = vrot.lane.b32.xlu0 %v191, 116
        %v5413 = vpop.permute.xlu0 %5412
        %5414 = vrot.lane.b32.xlu0 %v194, 116
        %v5415 = vpop.permute.xlu0 %5414
        %5416 = vrot.lane.b32.xlu0 %v195, 116
        %v5417 = vpop.permute.xlu0 %5416
        %5418 = vrot.lane.b32.xlu0 %v198, 116
        %v5419 = vpop.permute.xlu0 %5418
        %5420 = vrot.lane.b32.xlu0 %v199, 116
        %v5421 = vpop.permute.xlu0 %5420
        %5422 = vrot.lane.b32.xlu0 %v202, 116
        %v5423 = vpop.permute.xlu0 %5422
        %5424 = vrot.lane.b32.xlu0 %v203, 116
        %v5425 = vpop.permute.xlu0 %5424
        %v5434 = vcombine.low %v5411, %v5419
        %v5435 = vcombine.high %v5411, %v5419
        %v5437 = vunpack.c.l.s4 1983009808
        %v5438 = vunpack.c.0.s8 %v5437
        %v5439 = vlaneseq
        %v5440 = vshrl.u32 %v5439, 7
        %v5441 = vsub.s32 %v5438, %v5440
        %v5442 = vrot.slane %v5434, %v5441
        %v5444 = vunpack.c.l.s4 1983009808
        %v5445 = vunpack.c.0.s8 %v5444
        %v5446 = vlaneseq
        %v5447 = vshrl.u32 %v5446, 7
        %v5448 = vsub.s32 %v5445, %v5447
        %v5449 = vrot.slane %v5435, %v5448
        %v5450 = vcombine.low %v5415, %v5423
        %v5451 = vcombine.high %v5415, %v5423
        %v5453 = vunpack.c.l.s4 1983009808
        %v5454 = vunpack.c.0.s8 %v5453
        %v5455 = vlaneseq
        %v5456 = vshrl.u32 %v5455, 7
        %v5457 = vsub.s32 %v5454, %v5456
        %v5458 = vrot.slane %v5450, %v5457
        %v5460 = vunpack.c.l.s4 1983009808
        %v5461 = vunpack.c.0.s8 %v5460
        %v5462 = vlaneseq
        %v5463 = vshrl.u32 %v5462, 7
        %v5464 = vsub.s32 %v5461, %v5463
        %v5465 = vrot.slane %v5451, %v5464
        %v5466 = vcombine.low %v5442, %v5458
        %v5467 = vcombine.high %v5442, %v5458
        %v5469 = vunpack.c.l.s4 1934713408
        %v5470 = vunpack.c.0.s8 %v5469
        %v5471 = vlaneseq
        %v5472 = vshrl.u32 %v5471, 7
        %v5473 = vsub.s32 %v5470, %v5472
        %v5474 = vrot.slane %v5466, %v5473
        %v5476 = vunpack.c.l.s4 1934713408
        %v5477 = vunpack.c.0.s8 %v5476
        %v5478 = vlaneseq
        %v5479 = vshrl.u32 %v5478, 7
        %v5480 = vsub.s32 %v5477, %v5479
        %v5481 = vrot.slane %v5467, %v5480
        %v5482 = vcombine.low %v5449, %v5465
        %v5483 = vcombine.high %v5449, %v5465
        %v5485 = vunpack.c.l.s4 1934713408
        %v5486 = vunpack.c.0.s8 %v5485
        %v5487 = vlaneseq
        %v5488 = vshrl.u32 %v5487, 7
        %v5489 = vsub.s32 %v5486, %v5488
        %v5490 = vrot.slane %v5482, %v5489
        %v5492 = vunpack.c.l.s4 1934713408
        %v5493 = vunpack.c.0.s8 %v5492
        %v5494 = vlaneseq
        %v5495 = vshrl.u32 %v5494, 7
        %v5496 = vsub.s32 %v5493, %v5495
        %v5497 = vrot.slane %v5483, %v5496
        %v5498 = vcombine.high %v5474, 0.0
        %v5499 = vcombine.high %v5481, 0.0
        %v5500 = vcombine.high %v5490, 0.0
        %v5501 = vcombine.high %v5497, 0.0
        %v5502 = vcombine.low %v5413, %v5421
        %v5503 = vcombine.high %v5413, %v5421
        %v5505 = vunpack.c.l.s4 1983009808
        %v5506 = vunpack.c.0.s8 %v5505
        %v5507 = vlaneseq
        %v5508 = vshrl.u32 %v5507, 7
        %v5509 = vsub.s32 %v5506, %v5508
        %v5510 = vrot.slane %v5502, %v5509
        %v5512 = vunpack.c.l.s4 1983009808
        %v5513 = vunpack.c.0.s8 %v5512
        %v5514 = vlaneseq
        %v5515 = vshrl.u32 %v5514, 7
        %v5516 = vsub.s32 %v5513, %v5515
        %v5517 = vrot.slane %v5503, %v5516
        %v5518 = vcombine.low %v5417, %v5425
        %v5519 = vcombine.high %v5417, %v5425
        %v5521 = vunpack.c.l.s4 1983009808
        %v5522 = vunpack.c.0.s8 %v5521
        %v5523 = vlaneseq
        %v5524 = vshrl.u32 %v5523, 7
        %v5525 = vsub.s32 %v5522, %v5524
        %v5526 = vrot.slane %v5518, %v5525
        %v5528 = vunpack.c.l.s4 1983009808
        %v5529 = vunpack.c.0.s8 %v5528
        %v5530 = vlaneseq
        %v5531 = vshrl.u32 %v5530, 7
        %v5532 = vsub.s32 %v5529, %v5531
        %v5533 = vrot.slane %v5519, %v5532
        %v5534 = vcombine.low %v5510, %v5526
        %v5535 = vcombine.high %v5510, %v5526
        %v5537 = vunpack.c.l.s4 1934713408
        %v5538 = vunpack.c.0.s8 %v5537
        %v5539 = vlaneseq
        %v5540 = vshrl.u32 %v5539, 7
        %v5541 = vsub.s32 %v5538, %v5540
        %v5542 = vrot.slane %v5534, %v5541
        %v5544 = vunpack.c.l.s4 1934713408
        %v5545 = vunpack.c.0.s8 %v5544
        %v5546 = vlaneseq
        %v5547 = vshrl.u32 %v5546, 7
        %v5548 = vsub.s32 %v5545, %v5547
        %v5549 = vrot.slane %v5535, %v5548
        %v5550 = vcombine.low %v5517, %v5533
        %v5551 = vcombine.high %v5517, %v5533
        %v5553 = vunpack.c.l.s4 1934713408
        %v5554 = vunpack.c.0.s8 %v5553
        %v5555 = vlaneseq
        %v5556 = vshrl.u32 %v5555, 7
        %v5557 = vsub.s32 %v5554, %v5556
        %v5558 = vrot.slane %v5550, %v5557
        %v5560 = vunpack.c.l.s4 1934713408
        %v5561 = vunpack.c.0.s8 %v5560
        %v5562 = vlaneseq
        %v5563 = vshrl.u32 %v5562, 7
        %v5564 = vsub.s32 %v5561, %v5563
        %v5565 = vrot.slane %v5551, %v5564
        %v5566 = vcombine.high %v5542, 0.0
        %v5567 = vcombine.high %v5549, 0.0
        %v5568 = vcombine.high %v5558, 0.0
        %v5569 = vcombine.high %v5565, 0.0
        %5571 = vrot.lane.b32.xlu0 %v5498, 16
        %v5572 = vpop.permute.xlu0 %5571
        %5575 = vrot.lane.b32.xlu0 %v5481, 32
        %v5576 = vpop.permute.xlu0 %5575
        %5579 = vrot.lane.b32.xlu0 %v5499, 48
        %v5580 = vpop.permute.xlu0 %5579
        %5583 = vrot.lane.b32.xlu0 %v5490, 64
        %v5584 = vpop.permute.xlu0 %5583
        %5587 = vrot.lane.b32.xlu0 %v5500, 80
        %v5588 = vpop.permute.xlu0 %5587
        %5591 = vrot.lane.b32.xlu0 %v5497, 96
        %v5592 = vpop.permute.xlu0 %5591
        %5595 = vrot.lane.b32.xlu0 %v5501, 112
        %v5596 = vpop.permute.xlu0 %5595
        %5599 = vrot.lane.b32.xlu0 %v5566, 16
        %v5600 = vpop.permute.xlu0 %5599
        %5603 = vrot.lane.b32.xlu0 %v5549, 32
        %v5604 = vpop.permute.xlu0 %5603
        %5607 = vrot.lane.b32.xlu0 %v5567, 48
        %v5608 = vpop.permute.xlu0 %5607
        %5611 = vrot.lane.b32.xlu0 %v5558, 64
        %v5612 = vpop.permute.xlu0 %5611
        %5615 = vrot.lane.b32.xlu0 %v5568, 80
        %v5616 = vpop.permute.xlu0 %5615
        %5619 = vrot.lane.b32.xlu0 %v5565, 96
        %v5620 = vpop.permute.xlu0 %5619
        %5623 = vrot.lane.b32.xlu0 %v5569, 112
        %v5624 = vpop.permute.xlu0 %5623
        %v5626 = vsel %vm454, %v5474, %v5572
        %v5627 = vsel %vm456, %v5626, %v5576
        %v5628 = vsel %vm458, %v5627, %v5580
        %v5629 = vsel %vm460, %v5628, %v5584
        %v5630 = vsel %vm462, %v5629, %v5588
        %v5631 = vsel %vm464, %v5630, %v5592
        %v5632 = vsel %vm466, %v5631, %v5596
        %v5633 = vsel %vm454, %v5542, %v5600
        %v5634 = vsel %vm456, %v5633, %v5604
        %v5635 = vsel %vm458, %v5634, %v5608
        %v5636 = vsel %vm460, %v5635, %v5612
        %v5637 = vsel %vm462, %v5636, %v5616
        %v5638 = vsel %vm464, %v5637, %v5620
        %v5639 = vsel %vm466, %v5638, %v5624
        %v5640 = vrot.slane %v192, 4
        %v5641 = vsel %vm2364, %v4473, %v5640
        %v5642 = vrot.slane %v196, 4
        %v5643 = vsel %vm2364, %v4478, %v5642
        %v5644 = vrot.slane %v200, 4
        %v5645 = vsel %vm2364, %v4483, %v5644
        %v5646 = vrot.slane %v204, 4
        %v5647 = vsel %vm2364, %v4488, %v5646
        %5648 = vrot.lane.b32.xlu0 %v5641, 124
        %v5649 = vpop.permute.xlu0 %5648
        %5650 = vrot.lane.b32.xlu0 %v5643, 124
        %v5651 = vpop.permute.xlu0 %5650
        %5652 = vrot.lane.b32.xlu0 %v5645, 124
        %v5653 = vpop.permute.xlu0 %5652
        %5654 = vrot.lane.b32.xlu0 %v5647, 124
        %v5655 = vpop.permute.xlu0 %5654
        %v5660 = vcombine.low %v5649, %v5653
        %v5661 = vcombine.high %v5649, %v5653
        %v5663 = vunpack.c.l.s4 1983009808
        %v5664 = vunpack.c.0.s8 %v5663
        %v5665 = vlaneseq
        %v5666 = vshrl.u32 %v5665, 7
        %v5667 = vsub.s32 %v5664, %v5666
        %v5668 = vrot.slane %v5660, %v5667
        %v5670 = vunpack.c.l.s4 1983009808
        %v5671 = vunpack.c.0.s8 %v5670
        %v5672 = vlaneseq
        %v5673 = vshrl.u32 %v5672, 7
        %v5674 = vsub.s32 %v5671, %v5673
        %v5675 = vrot.slane %v5661, %v5674
        %v5676 = vcombine.low %v5651, %v5655
        %v5677 = vcombine.high %v5651, %v5655
        %v5679 = vunpack.c.l.s4 1983009808
        %v5680 = vunpack.c.0.s8 %v5679
        %v5681 = vlaneseq
        %v5682 = vshrl.u32 %v5681, 7
        %v5683 = vsub.s32 %v5680, %v5682
        %v5684 = vrot.slane %v5676, %v5683
        %v5686 = vunpack.c.l.s4 1983009808
        %v5687 = vunpack.c.0.s8 %v5686
        %v5688 = vlaneseq
        %v5689 = vshrl.u32 %v5688, 7
        %v5690 = vsub.s32 %v5687, %v5689
        %v5691 = vrot.slane %v5677, %v5690
        %v5692 = vcombine.low %v5668, %v5684
        %v5693 = vcombine.high %v5668, %v5684
        %v5695 = vunpack.c.l.s4 1934713408
        %v5696 = vunpack.c.0.s8 %v5695
        %v5697 = vlaneseq
        %v5698 = vshrl.u32 %v5697, 7
        %v5699 = vsub.s32 %v5696, %v5698
        %v5700 = vrot.slane %v5692, %v5699
        %v5702 = vunpack.c.l.s4 1934713408
        %v5703 = vunpack.c.0.s8 %v5702
        %v5704 = vlaneseq
        %v5705 = vshrl.u32 %v5704, 7
        %v5706 = vsub.s32 %v5703, %v5705
        %v5707 = vrot.slane %v5693, %v5706
        %v5708 = vcombine.low %v5675, %v5691
        %v5709 = vcombine.high %v5675, %v5691
        %v5711 = vunpack.c.l.s4 1934713408
        %v5712 = vunpack.c.0.s8 %v5711
        %v5713 = vlaneseq
        %v5714 = vshrl.u32 %v5713, 7
        %v5715 = vsub.s32 %v5712, %v5714
        %v5716 = vrot.slane %v5708, %v5715
        %v5718 = vunpack.c.l.s4 1934713408
        %v5719 = vunpack.c.0.s8 %v5718
        %v5720 = vlaneseq
        %v5721 = vshrl.u32 %v5720, 7
        %v5722 = vsub.s32 %v5719, %v5721
        %v5723 = vrot.slane %v5709, %v5722
        %v5724 = vcombine.high %v5700, 0.0
        %v5725 = vcombine.high %v5707, 0.0
        %v5726 = vcombine.high %v5716, 0.0
        %v5727 = vcombine.high %v5723, 0.0
        %5729 = vrot.lane.b32.xlu0 %v5724, 16
        %v5730 = vpop.permute.xlu0 %5729
        %5733 = vrot.lane.b32.xlu0 %v5707, 32
        %v5734 = vpop.permute.xlu0 %5733
        %5737 = vrot.lane.b32.xlu0 %v5725, 48
        %v5738 = vpop.permute.xlu0 %5737
        %5741 = vrot.lane.b32.xlu0 %v5716, 64
        %v5742 = vpop.permute.xlu0 %5741
        %5745 = vrot.lane.b32.xlu0 %v5726, 80
        %v5746 = vpop.permute.xlu0 %5745
        %5749 = vrot.lane.b32.xlu0 %v5723, 96
        %v5750 = vpop.permute.xlu0 %5749
        %5753 = vrot.lane.b32.xlu0 %v5727, 112
        %v5754 = vpop.permute.xlu0 %5753
        %v5756 = vsel %vm454, %v5700, %v5730
        %v5757 = vsel %vm456, %v5756, %v5734
        %v5758 = vsel %vm458, %v5757, %v5738
        %v5759 = vsel %vm460, %v5758, %v5742
        %v5760 = vsel %vm462, %v5759, %v5746
        %v5761 = vsel %vm464, %v5760, %v5750
        %v5762 = vsel %vm466, %v5761, %v5754
        %5763 = vrot.lane.b32.xlu0 %v5641, 120
        %v5764 = vpop.permute.xlu0 %5763
        %5765 = vrot.lane.b32.xlu0 %v5643, 120
        %v5766 = vpop.permute.xlu0 %5765
        %5767 = vrot.lane.b32.xlu0 %v5645, 120
        %v5768 = vpop.permute.xlu0 %5767
        %5769 = vrot.lane.b32.xlu0 %v5647, 120
        %v5770 = vpop.permute.xlu0 %5769
        %v5775 = vcombine.low %v5764, %v5768
        %v5776 = vcombine.high %v5764, %v5768
        %v5778 = vunpack.c.l.s4 1983009808
        %v5779 = vunpack.c.0.s8 %v5778
        %v5780 = vlaneseq
        %v5781 = vshrl.u32 %v5780, 7
        %v5782 = vsub.s32 %v5779, %v5781
        %v5783 = vrot.slane %v5775, %v5782
        %v5785 = vunpack.c.l.s4 1983009808
        %v5786 = vunpack.c.0.s8 %v5785
        %v5787 = vlaneseq
        %v5788 = vshrl.u32 %v5787, 7
        %v5789 = vsub.s32 %v5786, %v5788
        %v5790 = vrot.slane %v5776, %v5789
        %v5791 = vcombine.low %v5766, %v5770
        %v5792 = vcombine.high %v5766, %v5770
        %v5794 = vunpack.c.l.s4 1983009808
        %v5795 = vunpack.c.0.s8 %v5794
        %v5796 = vlaneseq
        %v5797 = vshrl.u32 %v5796, 7
        %v5798 = vsub.s32 %v5795, %v5797
        %v5799 = vrot.slane %v5791, %v5798
        %v5801 = vunpack.c.l.s4 1983009808
        %v5802 = vunpack.c.0.s8 %v5801
        %v5803 = vlaneseq
        %v5804 = vshrl.u32 %v5803, 7
        %v5805 = vsub.s32 %v5802, %v5804
        %v5806 = vrot.slane %v5792, %v5805
        %v5807 = vcombine.low %v5783, %v5799
        %v5808 = vcombine.high %v5783, %v5799
        %v5810 = vunpack.c.l.s4 1934713408
        %v5811 = vunpack.c.0.s8 %v5810
        %v5812 = vlaneseq
        %v5813 = vshrl.u32 %v5812, 7
        %v5814 = vsub.s32 %v5811, %v5813
        %v5815 = vrot.slane %v5807, %v5814
        %v5817 = vunpack.c.l.s4 1934713408
        %v5818 = vunpack.c.0.s8 %v5817
        %v5819 = vlaneseq
        %v5820 = vshrl.u32 %v5819, 7
        %v5821 = vsub.s32 %v5818, %v5820
        %v5822 = vrot.slane %v5808, %v5821
        %v5823 = vcombine.low %v5790, %v5806
        %v5824 = vcombine.high %v5790, %v5806
        %v5826 = vunpack.c.l.s4 1934713408
        %v5827 = vunpack.c.0.s8 %v5826
        %v5828 = vlaneseq
        %v5829 = vshrl.u32 %v5828, 7
        %v5830 = vsub.s32 %v5827, %v5829
        %v5831 = vrot.slane %v5823, %v5830
        %v5833 = vunpack.c.l.s4 1934713408
        %v5834 = vunpack.c.0.s8 %v5833
        %v5835 = vlaneseq
        %v5836 = vshrl.u32 %v5835, 7
        %v5837 = vsub.s32 %v5834, %v5836
        %v5838 = vrot.slane %v5824, %v5837
        %v5839 = vcombine.high %v5815, 0.0
        %v5840 = vcombine.high %v5822, 0.0
        %v5841 = vcombine.high %v5831, 0.0
        %v5842 = vcombine.high %v5838, 0.0
        %5844 = vrot.lane.b32.xlu0 %v5839, 16
        %v5845 = vpop.permute.xlu0 %5844
        %5848 = vrot.lane.b32.xlu0 %v5822, 32
        %v5849 = vpop.permute.xlu0 %5848
        %5852 = vrot.lane.b32.xlu0 %v5840, 48
        %v5853 = vpop.permute.xlu0 %5852
        %5856 = vrot.lane.b32.xlu0 %v5831, 64
        %v5857 = vpop.permute.xlu0 %5856
        %5860 = vrot.lane.b32.xlu0 %v5841, 80
        %v5861 = vpop.permute.xlu0 %5860
        %5864 = vrot.lane.b32.xlu0 %v5838, 96
        %v5865 = vpop.permute.xlu0 %5864
        %5868 = vrot.lane.b32.xlu0 %v5842, 112
        %v5869 = vpop.permute.xlu0 %5868
        %v5871 = vsel %vm454, %v5815, %v5845
        %v5872 = vsel %vm456, %v5871, %v5849
        %v5873 = vsel %vm458, %v5872, %v5853
        %v5874 = vsel %vm460, %v5873, %v5857
        %v5875 = vsel %vm462, %v5874, %v5861
        %v5876 = vsel %vm464, %v5875, %v5865
        %v5877 = vsel %vm466, %v5876, %v5869
        %5878 = vrot.lane.b32.xlu0 %v5641, 116
        %v5879 = vpop.permute.xlu0 %5878
        %5880 = vrot.lane.b32.xlu0 %v5643, 116
        %v5881 = vpop.permute.xlu0 %5880
        %5882 = vrot.lane.b32.xlu0 %v5645, 116
        %v5883 = vpop.permute.xlu0 %5882
        %5884 = vrot.lane.b32.xlu0 %v5647, 116
        %v5885 = vpop.permute.xlu0 %5884
        %v5890 = vcombine.low %v5879, %v5883
        %v5891 = vcombine.high %v5879, %v5883
        %v5893 = vunpack.c.l.s4 1983009808
        %v5894 = vunpack.c.0.s8 %v5893
        %v5895 = vlaneseq
        %v5896 = vshrl.u32 %v5895, 7
        %v5897 = vsub.s32 %v5894, %v5896
        %v5898 = vrot.slane %v5890, %v5897
        %v5900 = vunpack.c.l.s4 1983009808
        %v5901 = vunpack.c.0.s8 %v5900
        %v5902 = vlaneseq
        %v5903 = vshrl.u32 %v5902, 7
        %v5904 = vsub.s32 %v5901, %v5903
        %v5905 = vrot.slane %v5891, %v5904
        %v5906 = vcombine.low %v5881, %v5885
        %v5907 = vcombine.high %v5881, %v5885
        %v5909 = vunpack.c.l.s4 1983009808
        %v5910 = vunpack.c.0.s8 %v5909
        %v5911 = vlaneseq
        %v5912 = vshrl.u32 %v5911, 7
        %v5913 = vsub.s32 %v5910, %v5912
        %v5914 = vrot.slane %v5906, %v5913
        %v5916 = vunpack.c.l.s4 1983009808
        %v5917 = vunpack.c.0.s8 %v5916
        %v5918 = vlaneseq
        %v5919 = vshrl.u32 %v5918, 7
        %v5920 = vsub.s32 %v5917, %v5919
        %v5921 = vrot.slane %v5907, %v5920
        %v5922 = vcombine.low %v5898, %v5914
        %v5923 = vcombine.high %v5898, %v5914
        %v5925 = vunpack.c.l.s4 1934713408
        %v5926 = vunpack.c.0.s8 %v5925
        %v5927 = vlaneseq
        %v5928 = vshrl.u32 %v5927, 7
        %v5929 = vsub.s32 %v5926, %v5928
        %v5930 = vrot.slane %v5922, %v5929
        %v5932 = vunpack.c.l.s4 1934713408
        %v5933 = vunpack.c.0.s8 %v5932
        %v5934 = vlaneseq
        %v5935 = vshrl.u32 %v5934, 7
        %v5936 = vsub.s32 %v5933, %v5935
        %v5937 = vrot.slane %v5923, %v5936
        %v5938 = vcombine.low %v5905, %v5921
        %v5939 = vcombine.high %v5905, %v5921
        %v5941 = vunpack.c.l.s4 1934713408
        %v5942 = vunpack.c.0.s8 %v5941
        %v5943 = vlaneseq
        %v5944 = vshrl.u32 %v5943, 7
        %v5945 = vsub.s32 %v5942, %v5944
        %v5946 = vrot.slane %v5938, %v5945
        %v5948 = vunpack.c.l.s4 1934713408
        %v5949 = vunpack.c.0.s8 %v5948
        %v5950 = vlaneseq
        %v5951 = vshrl.u32 %v5950, 7
        %v5952 = vsub.s32 %v5949, %v5951
        %v5953 = vrot.slane %v5939, %v5952
        %v5954 = vcombine.high %v5930, 0.0
        %v5955 = vcombine.high %v5937, 0.0
        %v5956 = vcombine.high %v5946, 0.0
        %v5957 = vcombine.high %v5953, 0.0
        %5959 = vrot.lane.b32.xlu0 %v5954, 16
        %v5960 = vpop.permute.xlu0 %5959
        %5963 = vrot.lane.b32.xlu0 %v5937, 32
        %v5964 = vpop.permute.xlu0 %5963
        %5967 = vrot.lane.b32.xlu0 %v5955, 48
        %v5968 = vpop.permute.xlu0 %5967
        %5971 = vrot.lane.b32.xlu0 %v5946, 64
        %v5972 = vpop.permute.xlu0 %5971
        %5975 = vrot.lane.b32.xlu0 %v5956, 80
        %v5976 = vpop.permute.xlu0 %5975
        %5979 = vrot.lane.b32.xlu0 %v5953, 96
        %v5980 = vpop.permute.xlu0 %5979
        %5983 = vrot.lane.b32.xlu0 %v5957, 112
        %v5984 = vpop.permute.xlu0 %5983
        %v5986 = vsel %vm454, %v5930, %v5960
        %v5987 = vsel %vm456, %v5986, %v5964
        %v5988 = vsel %vm458, %v5987, %v5968
        %v5989 = vsel %vm460, %v5988, %v5972
        %v5990 = vsel %vm462, %v5989, %v5976
        %v5991 = vsel %vm464, %v5990, %v5980
        %v5992 = vsel %vm466, %v5991, %v5984
        %v5995 = vrot.slane %v4942, 4
        %v5996 = vrot.slane %v4949, 4
        %v6001 = vrot.slane %v5402, 4
        %v6002 = vrot.slane %v5409, 4
        %v6007 = vrot.slane %v5632, 4
        %v6008 = vrot.slane %v5639, 4
        %v6012 = vrot.slane %v5877, 4
        %v6014 = vsel %vm2364, %v4712, %v5995
        %v6015 = vsel %vm2364, %v4719, %v5996
        %v6016 = vsel %vm2364, %v5172, %v6001
        %v6017 = vsel %vm2364, %v5179, %v6002
        %v6018 = vsel %vm2364, %v1387, %v6007
        %v6019 = vsel %vm2364, %v1394, %v6008
        %v6020 = vsel %vm2364, %v5762, %v6012
        %v6021 = vld [vmem:[%s1 + $0x10] sm:$0xff]
        %v6022 = vld [vmem:[%s2 + $0x10] sm:$0xff]
        %6024 = vset.pattern.permute.xlu0 0
        %6025 = vperm.xlu0 %6024, %v6022
        %v6026 = vpop.permute.xlu0 %6025
        %v6029 = vsel %vm2380, %v6021, 0
        %v6032 = vsel %vm2364, %v5179, 0
        %v6035 = vsel %vm2364, %v5992, 0
        %6037 = vmatprep.subr.mxu0 0.0
        %6038 = vmatpush1.msra.mxu0 0.0
        %6039 = vmatprep.subr.mxu0 0.0
        %6040 = vmatpush1.msra.mxu0 0.0
        %6041 = vmatprep.subr.mxu0 0.0
        %6042 = vmatpush1.msra.mxu0 0.0
        %6043 = vmatprep.subr.mxu0 0.0
        %6044 = vmatpush1.msra.mxu0 0.0
        %6045 = vmatprep.subr.mxu0 0.0
        %6046 = vmatpush1.msra.mxu0 0.0
        %6047 = vmatprep.subr.mxu0 0.0
        %6048 = vmatpush1.msra.mxu0 0.0
        %6049 = vmatprep.subr.mxu0 0.0
        %6050 = vmatpush1.msra.mxu0 0.0
        %6051 = vmatprep.subr.mxu0 0.0
        %6052 = vmatpush1.msra.mxu0 0.0
        %6053 = vmatprep.subr.mxu0 0.0
        %6054 = vmatpush1.msra.mxu0 0.0
        %6055 = vmatprep.subr.mxu0 0.0
        %6056 = vmatpush1.msra.mxu0 0.0
        %6057 = vmatprep.subr.mxu0 0.0
        %6058 = vmatpush1.msra.mxu0 0.0
        %6059 = vmatprep.subr.mxu0 %v6035
        %6060 = vmatpush1.msra.mxu0 %v6032
        %6061 = vmatprep.subr.mxu0 %v6020
        %6062 = vmatpush1.msra.mxu0 %v6015
        %6063 = vmatprep.subr.mxu0 %v6019
        %6064 = vmatpush1.msra.mxu0 %v6018
        %6065 = vmatprep.subr.mxu0 %v6017
        %6066 = vmatpush1.msra.mxu0 %v6016
        %6067 = vmatprep.subr.mxu0 %v6015
        %6068 = vmatpush1.msra.mxu0 %v6014
        %6069 = vmatprep.subr.mxu0 0.0
        %6070 = vmatpush2.msra.mxu0 0.0
        %6071 = vmatprep.subr.mxu0 0.0
        %6072 = vmatpush2.msra.mxu0 0.0
        %6073 = vmatprep.subr.mxu0 0.0
        %6074 = vmatpush2.msra.mxu0 0.0
        %6075 = vmatprep.subr.mxu0 0.0
        %6076 = vmatpush2.msra.mxu0 0.0
        %6077 = vmatprep.subr.mxu0 0.0
        %6078 = vmatpush2.msra.mxu0 0.0
        %6079 = vmatprep.subr.mxu0 0.0
        %6080 = vmatpush2.msra.mxu0 0.0
        %6081 = vmatprep.subr.mxu0 0.0
        %6082 = vmatpush2.msra.mxu0 0.0
        %6083 = vmatprep.subr.mxu0 0.0
        %6084 = vmatpush2.msra.mxu0 0.0
        %6085 = vmatprep.subr.mxu0 0.0
        %6086 = vmatpush2.msra.mxu0 0.0
        %6087 = vmatprep.subr.mxu0 0.0
        %6088 = vmatpush2.msra.mxu0 0.0
        %6089 = vmatprep.subr.mxu0 0.0
        %6090 = vmatpush2.msra.mxu0 0.0
        %6091 = vmatprep.subr.mxu0 0.0
        %6092 = vmatpush2.msra.mxu0 0.0
        %6093 = vmatprep.subr.mxu0 0.0
        %6094 = vmatpush2.msra.mxu0 0.0
        %6095 = vmatprep.subr.mxu0 0.0
        %6096 = vmatpush2.msra.mxu0 0.0
        %6097 = vmatprep.subr.mxu0 0.0
        %6098 = vmatpush2.msra.mxu0 0.0
        %6099 = vmatprep.subr.mxu0 0.0
        %6100 = vmatpush2.msra.mxu0 0.0
        %6101 = vmatprep.mubr.f32.mxu0 0.0
        %6102 = vmatmul.mubr.f32.gmra.mxu0 %v6029
        %v6103 = vpop.f32.mrf.mxu0
        %v6104 = vadd.f32 %v6026, %v6103
        %v6105 = vpop.f32.mrf.mxu0
        %v6106 = vadd.f32 %v6026, %v6105
        %6107 = vdwg.mxu0
        %v6108 = vmax.f32 %v6104, 0.0
        %v6109 = vmax.f32 %v6106, 0.0
        %6110 = vst [vmem:[%s188 + $0x20] sm:$0xff] %v6108
        %6111 = vst [vmem:[%s188 + $0x28] sm:$0xff] %v6109
        %v6112 = vcombine.low %v189, %v197
        %v6113 = vcombine.high %v189, %v197
        %v6115 = vunpack.c.l.s4 1983009808
        %v6116 = vunpack.c.0.s8 %v6115
        %v6117 = vlaneseq
        %v6118 = vshrl.u32 %v6117, 7
        %v6119 = vsub.s32 %v6116, %v6118
        %v6120 = vrot.slane %v6112, %v6119
        %v6122 = vunpack.c.l.s4 1983009808
        %v6123 = vunpack.c.0.s8 %v6122
        %v6124 = vlaneseq
        %v6125 = vshrl.u32 %v6124, 7
        %v6126 = vsub.s32 %v6123, %v6125
        %v6127 = vrot.slane %v6113, %v6126
        %v6128 = vcombine.low %v193, %v201
        %v6129 = vcombine.high %v193, %v201
        %v6131 = vunpack.c.l.s4 1983009808
        %v6132 = vunpack.c.0.s8 %v6131
        %v6133 = vlaneseq
        %v6134 = vshrl.u32 %v6133, 7
        %v6135 = vsub.s32 %v6132, %v6134
        %v6136 = vrot.slane %v6128, %v6135
        %v6138 = vunpack.c.l.s4 1983009808
        %v6139 = vunpack.c.0.s8 %v6138
        %v6140 = vlaneseq
        %v6141 = vshrl.u32 %v6140, 7
        %v6142 = vsub.s32 %v6139, %v6141
        %v6143 = vrot.slane %v6129, %v6142
        %v6144 = vcombine.low %v6120, %v6136
        %v6145 = vcombine.high %v6120, %v6136
        %v6147 = vunpack.c.l.s4 1934713408
        %v6148 = vunpack.c.0.s8 %v6147
        %v6149 = vlaneseq
        %v6150 = vshrl.u32 %v6149, 7
        %v6151 = vsub.s32 %v6148, %v6150
        %v6152 = vrot.slane %v6144, %v6151
        %v6154 = vunpack.c.l.s4 1934713408
        %v6155 = vunpack.c.0.s8 %v6154
        %v6156 = vlaneseq
        %v6157 = vshrl.u32 %v6156, 7
        %v6158 = vsub.s32 %v6155, %v6157
        %v6159 = vrot.slane %v6145, %v6158
        %v6160 = vcombine.low %v6127, %v6143
        %v6161 = vcombine.high %v6127, %v6143
        %v6163 = vunpack.c.l.s4 1934713408
        %v6164 = vunpack.c.0.s8 %v6163
        %v6165 = vlaneseq
        %v6166 = vshrl.u32 %v6165, 7
        %v6167 = vsub.s32 %v6164, %v6166
        %v6168 = vrot.slane %v6160, %v6167
        %v6170 = vunpack.c.l.s4 1934713408
        %v6171 = vunpack.c.0.s8 %v6170
        %v6172 = vlaneseq
        %v6173 = vshrl.u32 %v6172, 7
        %v6174 = vsub.s32 %v6171, %v6173
        %v6175 = vrot.slane %v6161, %v6174
        %v6176 = vcombine.high %v6152, 0.0
        %v6177 = vcombine.high %v6159, 0.0
        %v6178 = vcombine.high %v6168, 0.0
        %v6179 = vcombine.high %v6175, 0.0
        %v6180 = vcombine.low %v190, %v198
        %v6181 = vcombine.high %v190, %v198
        %v6183 = vunpack.c.l.s4 1983009808
        %v6184 = vunpack.c.0.s8 %v6183
        %v6185 = vlaneseq
        %v6186 = vshrl.u32 %v6185, 7
        %v6187 = vsub.s32 %v6184, %v6186
        %v6188 = vrot.slane %v6180, %v6187
        %v6190 = vunpack.c.l.s4 1983009808
        %v6191 = vunpack.c.0.s8 %v6190
        %v6192 = vlaneseq
        %v6193 = vshrl.u32 %v6192, 7
        %v6194 = vsub.s32 %v6191, %v6193
        %v6195 = vrot.slane %v6181, %v6194
        %v6196 = vcombine.low %v194, %v202
        %v6197 = vcombine.high %v194, %v202
        %v6199 = vunpack.c.l.s4 1983009808
        %v6200 = vunpack.c.0.s8 %v6199
        %v6201 = vlaneseq
        %v6202 = vshrl.u32 %v6201, 7
        %v6203 = vsub.s32 %v6200, %v6202
        %v6204 = vrot.slane %v6196, %v6203
        %v6206 = vunpack.c.l.s4 1983009808
        %v6207 = vunpack.c.0.s8 %v6206
        %v6208 = vlaneseq
        %v6209 = vshrl.u32 %v6208, 7
        %v6210 = vsub.s32 %v6207, %v6209
        %v6211 = vrot.slane %v6197, %v6210
        %v6212 = vcombine.low %v6188, %v6204
        %v6213 = vcombine.high %v6188, %v6204
        %v6215 = vunpack.c.l.s4 1934713408
        %v6216 = vunpack.c.0.s8 %v6215
        %v6217 = vlaneseq
        %v6218 = vshrl.u32 %v6217, 7
        %v6219 = vsub.s32 %v6216, %v6218
        %v6220 = vrot.slane %v6212, %v6219
        %v6222 = vunpack.c.l.s4 1934713408
        %v6223 = vunpack.c.0.s8 %v6222
        %v6224 = vlaneseq
        %v6225 = vshrl.u32 %v6224, 7
        %v6226 = vsub.s32 %v6223, %v6225
        %v6227 = vrot.slane %v6213, %v6226
        %v6228 = vcombine.low %v6195, %v6211
        %v6229 = vcombine.high %v6195, %v6211
        %v6231 = vunpack.c.l.s4 1934713408
        %v6232 = vunpack.c.0.s8 %v6231
        %v6233 = vlaneseq
        %v6234 = vshrl.u32 %v6233, 7
        %v6235 = vsub.s32 %v6232, %v6234
        %v6236 = vrot.slane %v6228, %v6235
        %v6238 = vunpack.c.l.s4 1934713408
        %v6239 = vunpack.c.0.s8 %v6238
        %v6240 = vlaneseq
        %v6241 = vshrl.u32 %v6240, 7
        %v6242 = vsub.s32 %v6239, %v6241
        %v6243 = vrot.slane %v6229, %v6242
        %v6244 = vcombine.high %v6220, 0.0
        %v6245 = vcombine.high %v6227, 0.0
        %v6246 = vcombine.high %v6236, 0.0
        %v6247 = vcombine.high %v6243, 0.0
        %6249 = vrot.lane.b32.xlu0 %v6176, 16
        %v6250 = vpop.permute.xlu0 %6249
        %6253 = vrot.lane.b32.xlu0 %v6159, 32
        %v6254 = vpop.permute.xlu0 %6253
        %6257 = vrot.lane.b32.xlu0 %v6177, 48
        %v6258 = vpop.permute.xlu0 %6257
        %6261 = vrot.lane.b32.xlu0 %v6168, 64
        %v6262 = vpop.permute.xlu0 %6261
        %6265 = vrot.lane.b32.xlu0 %v6178, 80
        %v6266 = vpop.permute.xlu0 %6265
        %6269 = vrot.lane.b32.xlu0 %v6175, 96
        %v6270 = vpop.permute.xlu0 %6269
        %6273 = vrot.lane.b32.xlu0 %v6179, 112
        %v6274 = vpop.permute.xlu0 %6273
        %6277 = vrot.lane.b32.xlu0 %v6244, 16
        %v6278 = vpop.permute.xlu0 %6277
        %6281 = vrot.lane.b32.xlu0 %v6227, 32
        %v6282 = vpop.permute.xlu0 %6281
        %6285 = vrot.lane.b32.xlu0 %v6245, 48
        %v6286 = vpop.permute.xlu0 %6285
        %6289 = vrot.lane.b32.xlu0 %v6236, 64
        %v6290 = vpop.permute.xlu0 %6289
        %6293 = vrot.lane.b32.xlu0 %v6246, 80
        %v6294 = vpop.permute.xlu0 %6293
        %6297 = vrot.lane.b32.xlu0 %v6243, 96
        %v6298 = vpop.permute.xlu0 %6297
        %6301 = vrot.lane.b32.xlu0 %v6247, 112
        %v6302 = vpop.permute.xlu0 %6301
        %v6304 = vsel %vm454, %v6152, %v6250
        %v6305 = vsel %vm456, %v6304, %v6254
        %v6306 = vsel %vm458, %v6305, %v6258
        %v6307 = vsel %vm460, %v6306, %v6262
        %v6308 = vsel %vm462, %v6307, %v6266
        %v6309 = vsel %vm464, %v6308, %v6270
        %v6310 = vsel %vm466, %v6309, %v6274
        %v6311 = vsel %vm454, %v6220, %v6278
        %v6312 = vsel %vm456, %v6311, %v6282
        %v6313 = vsel %vm458, %v6312, %v6286
        %v6314 = vsel %vm460, %v6313, %v6290
        %v6315 = vsel %vm462, %v6314, %v6294
        %v6316 = vsel %vm464, %v6315, %v6298
        %v6317 = vsel %vm466, %v6316, %v6302
        %6318 = vrot.lane.b32.xlu0 %v189, 120
        %v6319 = vpop.permute.xlu0 %6318
        %6320 = vrot.lane.b32.xlu0 %v193, 120
        %v6321 = vpop.permute.xlu0 %6320
        %6322 = vrot.lane.b32.xlu0 %v197, 120
        %v6323 = vpop.permute.xlu0 %6322
        %6324 = vrot.lane.b32.xlu0 %v201, 120
        %v6325 = vpop.permute.xlu0 %6324
        %v6330 = vcombine.low %v6319, %v6323
        %v6331 = vcombine.high %v6319, %v6323
        %v6333 = vunpack.c.l.s4 1983009808
        %v6334 = vunpack.c.0.s8 %v6333
        %v6335 = vlaneseq
        %v6336 = vshrl.u32 %v6335, 7
        %v6337 = vsub.s32 %v6334, %v6336
        %v6338 = vrot.slane %v6330, %v6337
        %v6340 = vunpack.c.l.s4 1983009808
        %v6341 = vunpack.c.0.s8 %v6340
        %v6342 = vlaneseq
        %v6343 = vshrl.u32 %v6342, 7
        %v6344 = vsub.s32 %v6341, %v6343
        %v6345 = vrot.slane %v6331, %v6344
        %v6346 = vcombine.low %v6321, %v6325
        %v6347 = vcombine.high %v6321, %v6325
        %v6349 = vunpack.c.l.s4 1983009808
        %v6350 = vunpack.c.0.s8 %v6349
        %v6351 = vlaneseq
        %v6352 = vshrl.u32 %v6351, 7
        %v6353 = vsub.s32 %v6350, %v6352
        %v6354 = vrot.slane %v6346, %v6353
        %v6356 = vunpack.c.l.s4 1983009808
        %v6357 = vunpack.c.0.s8 %v6356
        %v6358 = vlaneseq
        %v6359 = vshrl.u32 %v6358, 7
        %v6360 = vsub.s32 %v6357, %v6359
        %v6361 = vrot.slane %v6347, %v6360
        %v6362 = vcombine.low %v6338, %v6354
        %v6363 = vcombine.high %v6338, %v6354
        %v6365 = vunpack.c.l.s4 1934713408
        %v6366 = vunpack.c.0.s8 %v6365
        %v6367 = vlaneseq
        %v6368 = vshrl.u32 %v6367, 7
        %v6369 = vsub.s32 %v6366, %v6368
        %v6370 = vrot.slane %v6362, %v6369
        %v6372 = vunpack.c.l.s4 1934713408
        %v6373 = vunpack.c.0.s8 %v6372
        %v6374 = vlaneseq
        %v6375 = vshrl.u32 %v6374, 7
        %v6376 = vsub.s32 %v6373, %v6375
        %v6377 = vrot.slane %v6363, %v6376
        %v6378 = vcombine.low %v6345, %v6361
        %v6379 = vcombine.high %v6345, %v6361
        %v6381 = vunpack.c.l.s4 1934713408
        %v6382 = vunpack.c.0.s8 %v6381
        %v6383 = vlaneseq
        %v6384 = vshrl.u32 %v6383, 7
        %v6385 = vsub.s32 %v6382, %v6384
        %v6386 = vrot.slane %v6378, %v6385
        %v6388 = vunpack.c.l.s4 1934713408
        %v6389 = vunpack.c.0.s8 %v6388
        %v6390 = vlaneseq
        %v6391 = vshrl.u32 %v6390, 7
        %v6392 = vsub.s32 %v6389, %v6391
        %v6393 = vrot.slane %v6379, %v6392
        %v6394 = vcombine.high %v6370, 0.0
        %v6395 = vcombine.high %v6377, 0.0
        %v6396 = vcombine.high %v6386, 0.0
        %v6397 = vcombine.high %v6393, 0.0
        %6399 = vrot.lane.b32.xlu0 %v6394, 16
        %v6400 = vpop.permute.xlu0 %6399
        %6403 = vrot.lane.b32.xlu0 %v6377, 32
        %v6404 = vpop.permute.xlu0 %6403
        %6407 = vrot.lane.b32.xlu0 %v6395, 48
        %v6408 = vpop.permute.xlu0 %6407
        %6411 = vrot.lane.b32.xlu0 %v6386, 64
        %v6412 = vpop.permute.xlu0 %6411
        %6415 = vrot.lane.b32.xlu0 %v6396, 80
        %v6416 = vpop.permute.xlu0 %6415
        %6419 = vrot.lane.b32.xlu0 %v6393, 96
        %v6420 = vpop.permute.xlu0 %6419
        %6423 = vrot.lane.b32.xlu0 %v6397, 112
        %v6424 = vpop.permute.xlu0 %6423
        %v6426 = vsel %vm454, %v6370, %v6400
        %v6427 = vsel %vm456, %v6426, %v6404
        %v6428 = vsel %vm458, %v6427, %v6408
        %v6429 = vsel %vm460, %v6428, %v6412
        %v6430 = vsel %vm462, %v6429, %v6416
        %v6431 = vsel %vm464, %v6430, %v6420
        %v6432 = vsel %vm466, %v6431, %v6424
        %6433 = vrot.lane.b32.xlu0 %v189, 112
        %v6434 = vpop.permute.xlu0 %6433
        %6435 = vrot.lane.b32.xlu0 %v190, 112
        %v6436 = vpop.permute.xlu0 %6435
        %6437 = vrot.lane.b32.xlu0 %v193, 112
        %v6438 = vpop.permute.xlu0 %6437
        %6439 = vrot.lane.b32.xlu0 %v194, 112
        %v6440 = vpop.permute.xlu0 %6439
        %6441 = vrot.lane.b32.xlu0 %v197, 112
        %v6442 = vpop.permute.xlu0 %6441
        %6443 = vrot.lane.b32.xlu0 %v198, 112
        %v6444 = vpop.permute.xlu0 %6443
        %6445 = vrot.lane.b32.xlu0 %v201, 112
        %v6446 = vpop.permute.xlu0 %6445
        %6447 = vrot.lane.b32.xlu0 %v202, 112
        %v6448 = vpop.permute.xlu0 %6447
        %v6457 = vcombine.low %v6434, %v6442
        %v6458 = vcombine.high %v6434, %v6442
        %v6460 = vunpack.c.l.s4 1983009808
        %v6461 = vunpack.c.0.s8 %v6460
        %v6462 = vlaneseq
        %v6463 = vshrl.u32 %v6462, 7
        %v6464 = vsub.s32 %v6461, %v6463
        %v6465 = vrot.slane %v6457, %v6464
        %v6467 = vunpack.c.l.s4 1983009808
        %v6468 = vunpack.c.0.s8 %v6467
        %v6469 = vlaneseq
        %v6470 = vshrl.u32 %v6469, 7
        %v6471 = vsub.s32 %v6468, %v6470
        %v6472 = vrot.slane %v6458, %v6471
        %v6473 = vcombine.low %v6438, %v6446
        %v6474 = vcombine.high %v6438, %v6446
        %v6476 = vunpack.c.l.s4 1983009808
        %v6477 = vunpack.c.0.s8 %v6476
        %v6478 = vlaneseq
        %v6479 = vshrl.u32 %v6478, 7
        %v6480 = vsub.s32 %v6477, %v6479
        %v6481 = vrot.slane %v6473, %v6480
        %v6483 = vunpack.c.l.s4 1983009808
        %v6484 = vunpack.c.0.s8 %v6483
        %v6485 = vlaneseq
        %v6486 = vshrl.u32 %v6485, 7
        %v6487 = vsub.s32 %v6484, %v6486
        %v6488 = vrot.slane %v6474, %v6487
        %v6489 = vcombine.low %v6465, %v6481
        %v6490 = vcombine.high %v6465, %v6481
        %v6492 = vunpack.c.l.s4 1934713408
        %v6493 = vunpack.c.0.s8 %v6492
        %v6494 = vlaneseq
        %v6495 = vshrl.u32 %v6494, 7
        %v6496 = vsub.s32 %v6493, %v6495
        %v6497 = vrot.slane %v6489, %v6496
        %v6499 = vunpack.c.l.s4 1934713408
        %v6500 = vunpack.c.0.s8 %v6499
        %v6501 = vlaneseq
        %v6502 = vshrl.u32 %v6501, 7
        %v6503 = vsub.s32 %v6500, %v6502
        %v6504 = vrot.slane %v6490, %v6503
        %v6505 = vcombine.low %v6472, %v6488
        %v6506 = vcombine.high %v6472, %v6488
        %v6508 = vunpack.c.l.s4 1934713408
        %v6509 = vunpack.c.0.s8 %v6508
        %v6510 = vlaneseq
        %v6511 = vshrl.u32 %v6510, 7
        %v6512 = vsub.s32 %v6509, %v6511
        %v6513 = vrot.slane %v6505, %v6512
        %v6515 = vunpack.c.l.s4 1934713408
        %v6516 = vunpack.c.0.s8 %v6515
        %v6517 = vlaneseq
        %v6518 = vshrl.u32 %v6517, 7
        %v6519 = vsub.s32 %v6516, %v6518
        %v6520 = vrot.slane %v6506, %v6519
        %v6521 = vcombine.high %v6497, 0.0
        %v6522 = vcombine.high %v6504, 0.0
        %v6523 = vcombine.high %v6513, 0.0
        %v6524 = vcombine.high %v6520, 0.0
        %v6525 = vcombine.low %v6436, %v6444
        %v6526 = vcombine.high %v6436, %v6444
        %v6528 = vunpack.c.l.s4 1983009808
        %v6529 = vunpack.c.0.s8 %v6528
        %v6530 = vlaneseq
        %v6531 = vshrl.u32 %v6530, 7
        %v6532 = vsub.s32 %v6529, %v6531
        %v6533 = vrot.slane %v6525, %v6532
        %v6535 = vunpack.c.l.s4 1983009808
        %v6536 = vunpack.c.0.s8 %v6535
        %v6537 = vlaneseq
        %v6538 = vshrl.u32 %v6537, 7
        %v6539 = vsub.s32 %v6536, %v6538
        %v6540 = vrot.slane %v6526, %v6539
        %v6541 = vcombine.low %v6440, %v6448
        %v6542 = vcombine.high %v6440, %v6448
        %v6544 = vunpack.c.l.s4 1983009808
        %v6545 = vunpack.c.0.s8 %v6544
        %v6546 = vlaneseq
        %v6547 = vshrl.u32 %v6546, 7
        %v6548 = vsub.s32 %v6545, %v6547
        %v6549 = vrot.slane %v6541, %v6548
        %v6551 = vunpack.c.l.s4 1983009808
        %v6552 = vunpack.c.0.s8 %v6551
        %v6553 = vlaneseq
        %v6554 = vshrl.u32 %v6553, 7
        %v6555 = vsub.s32 %v6552, %v6554
        %v6556 = vrot.slane %v6542, %v6555
        %v6557 = vcombine.low %v6533, %v6549
        %v6558 = vcombine.high %v6533, %v6549
        %v6560 = vunpack.c.l.s4 1934713408
        %v6561 = vunpack.c.0.s8 %v6560
        %v6562 = vlaneseq
        %v6563 = vshrl.u32 %v6562, 7
        %v6564 = vsub.s32 %v6561, %v6563
        %v6565 = vrot.slane %v6557, %v6564
        %v6567 = vunpack.c.l.s4 1934713408
        %v6568 = vunpack.c.0.s8 %v6567
        %v6569 = vlaneseq
        %v6570 = vshrl.u32 %v6569, 7
        %v6571 = vsub.s32 %v6568, %v6570
        %v6572 = vrot.slane %v6558, %v6571
        %v6573 = vcombine.low %v6540, %v6556
        %v6574 = vcombine.high %v6540, %v6556
        %v6576 = vunpack.c.l.s4 1934713408
        %v6577 = vunpack.c.0.s8 %v6576
        %v6578 = vlaneseq
        %v6579 = vshrl.u32 %v6578, 7
        %v6580 = vsub.s32 %v6577, %v6579
        %v6581 = vrot.slane %v6573, %v6580
        %v6583 = vunpack.c.l.s4 1934713408
        %v6584 = vunpack.c.0.s8 %v6583
        %v6585 = vlaneseq
        %v6586 = vshrl.u32 %v6585, 7
        %v6587 = vsub.s32 %v6584, %v6586
        %v6588 = vrot.slane %v6574, %v6587
        %v6589 = vcombine.high %v6565, 0.0
        %v6590 = vcombine.high %v6572, 0.0
        %v6591 = vcombine.high %v6581, 0.0
        %v6592 = vcombine.high %v6588, 0.0
        %6594 = vrot.lane.b32.xlu0 %v6521, 16
        %v6595 = vpop.permute.xlu0 %6594
        %6598 = vrot.lane.b32.xlu0 %v6504, 32
        %v6599 = vpop.permute.xlu0 %6598
        %6602 = vrot.lane.b32.xlu0 %v6522, 48
        %v6603 = vpop.permute.xlu0 %6602
        %6606 = vrot.lane.b32.xlu0 %v6513, 64
        %v6607 = vpop.permute.xlu0 %6606
        %6610 = vrot.lane.b32.xlu0 %v6523, 80
        %v6611 = vpop.permute.xlu0 %6610
        %6614 = vrot.lane.b32.xlu0 %v6520, 96
        %v6615 = vpop.permute.xlu0 %6614
        %6618 = vrot.lane.b32.xlu0 %v6524, 112
        %v6619 = vpop.permute.xlu0 %6618
        %6622 = vrot.lane.b32.xlu0 %v6589, 16
        %v6623 = vpop.permute.xlu0 %6622
        %6626 = vrot.lane.b32.xlu0 %v6572, 32
        %v6627 = vpop.permute.xlu0 %6626
        %6630 = vrot.lane.b32.xlu0 %v6590, 48
        %v6631 = vpop.permute.xlu0 %6630
        %6634 = vrot.lane.b32.xlu0 %v6581, 64
        %v6635 = vpop.permute.xlu0 %6634
        %6638 = vrot.lane.b32.xlu0 %v6591, 80
        %v6639 = vpop.permute.xlu0 %6638
        %6642 = vrot.lane.b32.xlu0 %v6588, 96
        %v6643 = vpop.permute.xlu0 %6642
        %6646 = vrot.lane.b32.xlu0 %v6592, 112
        %v6647 = vpop.permute.xlu0 %6646
        %v6649 = vsel %vm454, %v6497, %v6595
        %v6650 = vsel %vm456, %v6649, %v6599
        %v6651 = vsel %vm458, %v6650, %v6603
        %v6652 = vsel %vm460, %v6651, %v6607
        %v6653 = vsel %vm462, %v6652, %v6611
        %v6654 = vsel %vm464, %v6653, %v6615
        %v6655 = vsel %vm466, %v6654, %v6619
        %v6656 = vsel %vm454, %v6565, %v6623
        %v6657 = vsel %vm456, %v6656, %v6627
        %v6658 = vsel %vm458, %v6657, %v6631
        %v6659 = vsel %vm460, %v6658, %v6635
        %v6660 = vsel %vm462, %v6659, %v6639
        %v6661 = vsel %vm464, %v6660, %v6643
        %v6662 = vsel %vm466, %v6661, %v6647
        %v6663 = vcombine.low %v191, %v199
        %v6664 = vcombine.high %v191, %v199
        %v6666 = vunpack.c.l.s4 1983009808
        %v6667 = vunpack.c.0.s8 %v6666
        %v6668 = vlaneseq
        %v6669 = vshrl.u32 %v6668, 7
        %v6670 = vsub.s32 %v6667, %v6669
        %v6671 = vrot.slane %v6663, %v6670
        %v6673 = vunpack.c.l.s4 1983009808
        %v6674 = vunpack.c.0.s8 %v6673
        %v6675 = vlaneseq
        %v6676 = vshrl.u32 %v6675, 7
        %v6677 = vsub.s32 %v6674, %v6676
        %v6678 = vrot.slane %v6664, %v6677
        %v6679 = vcombine.low %v195, %v203
        %v6680 = vcombine.high %v195, %v203
        %v6682 = vunpack.c.l.s4 1983009808
        %v6683 = vunpack.c.0.s8 %v6682
        %v6684 = vlaneseq
        %v6685 = vshrl.u32 %v6684, 7
        %v6686 = vsub.s32 %v6683, %v6685
        %v6687 = vrot.slane %v6679, %v6686
        %v6689 = vunpack.c.l.s4 1983009808
        %v6690 = vunpack.c.0.s8 %v6689
        %v6691 = vlaneseq
        %v6692 = vshrl.u32 %v6691, 7
        %v6693 = vsub.s32 %v6690, %v6692
        %v6694 = vrot.slane %v6680, %v6693
        %v6695 = vcombine.low %v6671, %v6687
        %v6696 = vcombine.high %v6671, %v6687
        %v6698 = vunpack.c.l.s4 1934713408
        %v6699 = vunpack.c.0.s8 %v6698
        %v6700 = vlaneseq
        %v6701 = vshrl.u32 %v6700, 7
        %v6702 = vsub.s32 %v6699, %v6701
        %v6703 = vrot.slane %v6695, %v6702
        %v6705 = vunpack.c.l.s4 1934713408
        %v6706 = vunpack.c.0.s8 %v6705
        %v6707 = vlaneseq
        %v6708 = vshrl.u32 %v6707, 7
        %v6709 = vsub.s32 %v6706, %v6708
        %v6710 = vrot.slane %v6696, %v6709
        %v6711 = vcombine.low %v6678, %v6694
        %v6712 = vcombine.high %v6678, %v6694
        %v6714 = vunpack.c.l.s4 1934713408
        %v6715 = vunpack.c.0.s8 %v6714
        %v6716 = vlaneseq
        %v6717 = vshrl.u32 %v6716, 7
        %v6718 = vsub.s32 %v6715, %v6717
        %v6719 = vrot.slane %v6711, %v6718
        %v6721 = vunpack.c.l.s4 1934713408
        %v6722 = vunpack.c.0.s8 %v6721
        %v6723 = vlaneseq
        %v6724 = vshrl.u32 %v6723, 7
        %v6725 = vsub.s32 %v6722, %v6724
        %v6726 = vrot.slane %v6712, %v6725
        %v6727 = vcombine.high %v6703, 0.0
        %v6728 = vcombine.high %v6710, 0.0
        %v6729 = vcombine.high %v6719, 0.0
        %v6730 = vcombine.high %v6726, 0.0
        %6732 = vrot.lane.b32.xlu0 %v6727, 16
        %v6733 = vpop.permute.xlu0 %6732
        %6736 = vrot.lane.b32.xlu0 %v6710, 32
        %v6737 = vpop.permute.xlu0 %6736
        %6740 = vrot.lane.b32.xlu0 %v6728, 48
        %v6741 = vpop.permute.xlu0 %6740
        %6744 = vrot.lane.b32.xlu0 %v6719, 64
        %v6745 = vpop.permute.xlu0 %6744
        %6748 = vrot.lane.b32.xlu0 %v6729, 80
        %v6749 = vpop.permute.xlu0 %6748
        %6752 = vrot.lane.b32.xlu0 %v6726, 96
        %v6753 = vpop.permute.xlu0 %6752
        %6756 = vrot.lane.b32.xlu0 %v6730, 112
        %v6757 = vpop.permute.xlu0 %6756
        %v6759 = vsel %vm454, %v6703, %v6733
        %v6760 = vsel %vm456, %v6759, %v6737
        %v6761 = vsel %vm458, %v6760, %v6741
        %v6762 = vsel %vm460, %v6761, %v6745
        %v6763 = vsel %vm462, %v6762, %v6749
        %v6764 = vsel %vm464, %v6763, %v6753
        %v6765 = vsel %vm466, %v6764, %v6757
        %6766 = vrot.lane.b32.xlu0 %v191, 112
        %v6767 = vpop.permute.xlu0 %6766
        %6768 = vrot.lane.b32.xlu0 %v195, 112
        %v6769 = vpop.permute.xlu0 %6768
        %6770 = vrot.lane.b32.xlu0 %v199, 112
        %v6771 = vpop.permute.xlu0 %6770
        %6772 = vrot.lane.b32.xlu0 %v203, 112
        %v6773 = vpop.permute.xlu0 %6772
        %v6778 = vcombine.low %v6767, %v6771
        %v6779 = vcombine.high %v6767, %v6771
        %v6781 = vunpack.c.l.s4 1983009808
        %v6782 = vunpack.c.0.s8 %v6781
        %v6783 = vlaneseq
        %v6784 = vshrl.u32 %v6783, 7
        %v6785 = vsub.s32 %v6782, %v6784
        %v6786 = vrot.slane %v6778, %v6785
        %v6788 = vunpack.c.l.s4 1983009808
        %v6789 = vunpack.c.0.s8 %v6788
        %v6790 = vlaneseq
        %v6791 = vshrl.u32 %v6790, 7
        %v6792 = vsub.s32 %v6789, %v6791
        %v6793 = vrot.slane %v6779, %v6792
        %v6794 = vcombine.low %v6769, %v6773
        %v6795 = vcombine.high %v6769, %v6773
        %v6797 = vunpack.c.l.s4 1983009808
        %v6798 = vunpack.c.0.s8 %v6797
        %v6799 = vlaneseq
        %v6800 = vshrl.u32 %v6799, 7
        %v6801 = vsub.s32 %v6798, %v6800
        %v6802 = vrot.slane %v6794, %v6801
        %v6804 = vunpack.c.l.s4 1983009808
        %v6805 = vunpack.c.0.s8 %v6804
        %v6806 = vlaneseq
        %v6807 = vshrl.u32 %v6806, 7
        %v6808 = vsub.s32 %v6805, %v6807
        %v6809 = vrot.slane %v6795, %v6808
        %v6810 = vcombine.low %v6786, %v6802
        %v6811 = vcombine.high %v6786, %v6802
        %v6813 = vunpack.c.l.s4 1934713408
        %v6814 = vunpack.c.0.s8 %v6813
        %v6815 = vlaneseq
        %v6816 = vshrl.u32 %v6815, 7
        %v6817 = vsub.s32 %v6814, %v6816
        %v6818 = vrot.slane %v6810, %v6817
        %v6820 = vunpack.c.l.s4 1934713408
        %v6821 = vunpack.c.0.s8 %v6820
        %v6822 = vlaneseq
        %v6823 = vshrl.u32 %v6822, 7
        %v6824 = vsub.s32 %v6821, %v6823
        %v6825 = vrot.slane %v6811, %v6824
        %v6826 = vcombine.low %v6793, %v6809
        %v6827 = vcombine.high %v6793, %v6809
        %v6829 = vunpack.c.l.s4 1934713408
        %v6830 = vunpack.c.0.s8 %v6829
        %v6831 = vlaneseq
        %v6832 = vshrl.u32 %v6831, 7
        %v6833 = vsub.s32 %v6830, %v6832
        %v6834 = vrot.slane %v6826, %v6833
        %v6836 = vunpack.c.l.s4 1934713408
        %v6837 = vunpack.c.0.s8 %v6836
        %v6838 = vlaneseq
        %v6839 = vshrl.u32 %v6838, 7
        %v6840 = vsub.s32 %v6837, %v6839
        %v6841 = vrot.slane %v6827, %v6840
        %v6842 = vcombine.high %v6818, 0.0
        %v6843 = vcombine.high %v6825, 0.0
        %v6844 = vcombine.high %v6834, 0.0
        %v6845 = vcombine.high %v6841, 0.0
        %6847 = vrot.lane.b32.xlu0 %v6842, 16
        %v6848 = vpop.permute.xlu0 %6847
        %6851 = vrot.lane.b32.xlu0 %v6825, 32
        %v6852 = vpop.permute.xlu0 %6851
        %6855 = vrot.lane.b32.xlu0 %v6843, 48
        %v6856 = vpop.permute.xlu0 %6855
        %6859 = vrot.lane.b32.xlu0 %v6834, 64
        %v6860 = vpop.permute.xlu0 %6859
        %6863 = vrot.lane.b32.xlu0 %v6844, 80
        %v6864 = vpop.permute.xlu0 %6863
        %6867 = vrot.lane.b32.xlu0 %v6841, 96
        %v6868 = vpop.permute.xlu0 %6867
        %6871 = vrot.lane.b32.xlu0 %v6845, 112
        %v6872 = vpop.permute.xlu0 %6871
        %v6874 = vsel %vm454, %v6818, %v6848
        %v6875 = vsel %vm456, %v6874, %v6852
        %v6876 = vsel %vm458, %v6875, %v6856
        %v6877 = vsel %vm460, %v6876, %v6860
        %v6878 = vsel %vm462, %v6877, %v6864
        %v6879 = vsel %vm464, %v6878, %v6868
        %v6880 = vsel %vm466, %v6879, %v6872
        %v6881 = vcombine.low %v192, %v200
        %v6882 = vcombine.high %v192, %v200
        %v6884 = vunpack.c.l.s4 1983009808
        %v6885 = vunpack.c.0.s8 %v6884
        %v6886 = vlaneseq
        %v6887 = vshrl.u32 %v6886, 7
        %v6888 = vsub.s32 %v6885, %v6887
        %v6889 = vrot.slane %v6881, %v6888
        %v6891 = vunpack.c.l.s4 1983009808
        %v6892 = vunpack.c.0.s8 %v6891
        %v6893 = vlaneseq
        %v6894 = vshrl.u32 %v6893, 7
        %v6895 = vsub.s32 %v6892, %v6894
        %v6896 = vrot.slane %v6882, %v6895
        %v6897 = vcombine.low %v196, %v204
        %v6898 = vcombine.high %v196, %v204
        %v6900 = vunpack.c.l.s4 1983009808
        %v6901 = vunpack.c.0.s8 %v6900
        %v6902 = vlaneseq
        %v6903 = vshrl.u32 %v6902, 7
        %v6904 = vsub.s32 %v6901, %v6903
        %v6905 = vrot.slane %v6897, %v6904
        %v6907 = vunpack.c.l.s4 1983009808
        %v6908 = vunpack.c.0.s8 %v6907
        %v6909 = vlaneseq
        %v6910 = vshrl.u32 %v6909, 7
        %v6911 = vsub.s32 %v6908, %v6910
        %v6912 = vrot.slane %v6898, %v6911
        %v6913 = vcombine.low %v6889, %v6905
        %v6914 = vcombine.high %v6889, %v6905
        %v6916 = vunpack.c.l.s4 1934713408
        %v6917 = vunpack.c.0.s8 %v6916
        %v6918 = vlaneseq
        %v6919 = vshrl.u32 %v6918, 7
        %v6920 = vsub.s32 %v6917, %v6919
        %v6921 = vrot.slane %v6913, %v6920
        %v6923 = vunpack.c.l.s4 1934713408
        %v6924 = vunpack.c.0.s8 %v6923
        %v6925 = vlaneseq
        %v6926 = vshrl.u32 %v6925, 7
        %v6927 = vsub.s32 %v6924, %v6926
        %v6928 = vrot.slane %v6914, %v6927
        %v6929 = vcombine.low %v6896, %v6912
        %v6930 = vcombine.high %v6896, %v6912
        %v6932 = vunpack.c.l.s4 1934713408
        %v6933 = vunpack.c.0.s8 %v6932
        %v6934 = vlaneseq
        %v6935 = vshrl.u32 %v6934, 7
        %v6936 = vsub.s32 %v6933, %v6935
        %v6937 = vrot.slane %v6929, %v6936
        %v6939 = vunpack.c.l.s4 1934713408
        %v6940 = vunpack.c.0.s8 %v6939
        %v6941 = vlaneseq
        %v6942 = vshrl.u32 %v6941, 7
        %v6943 = vsub.s32 %v6940, %v6942
        %v6944 = vrot.slane %v6930, %v6943
        %v6945 = vcombine.high %v6921, 0.0
        %v6946 = vcombine.high %v6928, 0.0
        %v6947 = vcombine.high %v6937, 0.0
        %v6948 = vcombine.high %v6944, 0.0
        %6950 = vrot.lane.b32.xlu0 %v6945, 16
        %v6951 = vpop.permute.xlu0 %6950
        %6954 = vrot.lane.b32.xlu0 %v6928, 32
        %v6955 = vpop.permute.xlu0 %6954
        %6958 = vrot.lane.b32.xlu0 %v6946, 48
        %v6959 = vpop.permute.xlu0 %6958
        %6962 = vrot.lane.b32.xlu0 %v6937, 64
        %v6963 = vpop.permute.xlu0 %6962
        %6966 = vrot.lane.b32.xlu0 %v6947, 80
        %v6967 = vpop.permute.xlu0 %6966
        %6970 = vrot.lane.b32.xlu0 %v6944, 96
        %v6971 = vpop.permute.xlu0 %6970
        %6974 = vrot.lane.b32.xlu0 %v6948, 112
        %v6975 = vpop.permute.xlu0 %6974
        %v6977 = vsel %vm454, %v6921, %v6951
        %v6978 = vsel %vm456, %v6977, %v6955
        %v6979 = vsel %vm458, %v6978, %v6959
        %v6980 = vsel %vm460, %v6979, %v6963
        %v6981 = vsel %vm462, %v6980, %v6967
        %v6982 = vsel %vm464, %v6981, %v6971
        %v6983 = vsel %vm466, %v6982, %v6975
        %6984 = vrot.lane.b32.xlu0 %v192, 120
        %v6985 = vpop.permute.xlu0 %6984
        %6986 = vrot.lane.b32.xlu0 %v196, 120
        %v6987 = vpop.permute.xlu0 %6986
        %6988 = vrot.lane.b32.xlu0 %v200, 120
        %v6989 = vpop.permute.xlu0 %6988
        %6990 = vrot.lane.b32.xlu0 %v204, 120
        %v6991 = vpop.permute.xlu0 %6990
        %v6996 = vcombine.low %v6985, %v6989
        %v6997 = vcombine.high %v6985, %v6989
        %v6999 = vunpack.c.l.s4 1983009808
        %v7000 = vunpack.c.0.s8 %v6999
        %v7001 = vlaneseq
        %v7002 = vshrl.u32 %v7001, 7
        %v7003 = vsub.s32 %v7000, %v7002
        %v7004 = vrot.slane %v6996, %v7003
        %v7006 = vunpack.c.l.s4 1983009808
        %v7007 = vunpack.c.0.s8 %v7006
        %v7008 = vlaneseq
        %v7009 = vshrl.u32 %v7008, 7
        %v7010 = vsub.s32 %v7007, %v7009
        %v7011 = vrot.slane %v6997, %v7010
        %v7012 = vcombine.low %v6987, %v6991
        %v7013 = vcombine.high %v6987, %v6991
        %v7015 = vunpack.c.l.s4 1983009808
        %v7016 = vunpack.c.0.s8 %v7015
        %v7017 = vlaneseq
        %v7018 = vshrl.u32 %v7017, 7
        %v7019 = vsub.s32 %v7016, %v7018
        %v7020 = vrot.slane %v7012, %v7019
        %v7022 = vunpack.c.l.s4 1983009808
        %v7023 = vunpack.c.0.s8 %v7022
        %v7024 = vlaneseq
        %v7025 = vshrl.u32 %v7024, 7
        %v7026 = vsub.s32 %v7023, %v7025
        %v7027 = vrot.slane %v7013, %v7026
        %v7028 = vcombine.low %v7004, %v7020
        %v7029 = vcombine.high %v7004, %v7020
        %v7031 = vunpack.c.l.s4 1934713408
        %v7032 = vunpack.c.0.s8 %v7031
        %v7033 = vlaneseq
        %v7034 = vshrl.u32 %v7033, 7
        %v7035 = vsub.s32 %v7032, %v7034
        %v7036 = vrot.slane %v7028, %v7035
        %v7038 = vunpack.c.l.s4 1934713408
        %v7039 = vunpack.c.0.s8 %v7038
        %v7040 = vlaneseq
        %v7041 = vshrl.u32 %v7040, 7
        %v7042 = vsub.s32 %v7039, %v7041
        %v7043 = vrot.slane %v7029, %v7042
        %v7044 = vcombine.low %v7011, %v7027
        %v7045 = vcombine.high %v7011, %v7027
        %v7047 = vunpack.c.l.s4 1934713408
        %v7048 = vunpack.c.0.s8 %v7047
        %v7049 = vlaneseq
        %v7050 = vshrl.u32 %v7049, 7
        %v7051 = vsub.s32 %v7048, %v7050
        %v7052 = vrot.slane %v7044, %v7051
        %v7054 = vunpack.c.l.s4 1934713408
        %v7055 = vunpack.c.0.s8 %v7054
        %v7056 = vlaneseq
        %v7057 = vshrl.u32 %v7056, 7
        %v7058 = vsub.s32 %v7055, %v7057
        %v7059 = vrot.slane %v7045, %v7058
        %v7060 = vcombine.high %v7036, 0.0
        %v7061 = vcombine.high %v7043, 0.0
        %v7062 = vcombine.high %v7052, 0.0
        %v7063 = vcombine.high %v7059, 0.0
        %7065 = vrot.lane.b32.xlu0 %v7060, 16
        %v7066 = vpop.permute.xlu0 %7065
        %7069 = vrot.lane.b32.xlu0 %v7043, 32
        %v7070 = vpop.permute.xlu0 %7069
        %7073 = vrot.lane.b32.xlu0 %v7061, 48
        %v7074 = vpop.permute.xlu0 %7073
        %7077 = vrot.lane.b32.xlu0 %v7052, 64
        %v7078 = vpop.permute.xlu0 %7077
        %7081 = vrot.lane.b32.xlu0 %v7062, 80
        %v7082 = vpop.permute.xlu0 %7081
        %7085 = vrot.lane.b32.xlu0 %v7059, 96
        %v7086 = vpop.permute.xlu0 %7085
        %7089 = vrot.lane.b32.xlu0 %v7063, 112
        %v7090 = vpop.permute.xlu0 %7089
        %v7092 = vsel %vm454, %v7036, %v7066
        %v7093 = vsel %vm456, %v7092, %v7070
        %v7094 = vsel %vm458, %v7093, %v7074
        %v7095 = vsel %vm460, %v7094, %v7078
        %v7096 = vsel %vm462, %v7095, %v7082
        %v7097 = vsel %vm464, %v7096, %v7086
        %v7098 = vsel %vm466, %v7097, %v7090
        %7099 = vrot.lane.b32.xlu0 %v192, 112
        %v7100 = vpop.permute.xlu0 %7099
        %7101 = vrot.lane.b32.xlu0 %v196, 112
        %v7102 = vpop.permute.xlu0 %7101
        %7103 = vrot.lane.b32.xlu0 %v200, 112
        %v7104 = vpop.permute.xlu0 %7103
        %7105 = vrot.lane.b32.xlu0 %v204, 112
        %v7106 = vpop.permute.xlu0 %7105
        %v7111 = vcombine.low %v7100, %v7104
        %v7112 = vcombine.high %v7100, %v7104
        %v7114 = vunpack.c.l.s4 1983009808
        %v7115 = vunpack.c.0.s8 %v7114
        %v7116 = vlaneseq
        %v7117 = vshrl.u32 %v7116, 7
        %v7118 = vsub.s32 %v7115, %v7117
        %v7119 = vrot.slane %v7111, %v7118
        %v7121 = vunpack.c.l.s4 1983009808
        %v7122 = vunpack.c.0.s8 %v7121
        %v7123 = vlaneseq
        %v7124 = vshrl.u32 %v7123, 7
        %v7125 = vsub.s32 %v7122, %v7124
        %v7126 = vrot.slane %v7112, %v7125
        %v7127 = vcombine.low %v7102, %v7106
        %v7128 = vcombine.high %v7102, %v7106
        %v7130 = vunpack.c.l.s4 1983009808
        %v7131 = vunpack.c.0.s8 %v7130
        %v7132 = vlaneseq
        %v7133 = vshrl.u32 %v7132, 7
        %v7134 = vsub.s32 %v7131, %v7133
        %v7135 = vrot.slane %v7127, %v7134
        %v7137 = vunpack.c.l.s4 1983009808
        %v7138 = vunpack.c.0.s8 %v7137
        %v7139 = vlaneseq
        %v7140 = vshrl.u32 %v7139, 7
        %v7141 = vsub.s32 %v7138, %v7140
        %v7142 = vrot.slane %v7128, %v7141
        %v7143 = vcombine.low %v7119, %v7135
        %v7144 = vcombine.high %v7119, %v7135
        %v7146 = vunpack.c.l.s4 1934713408
        %v7147 = vunpack.c.0.s8 %v7146
        %v7148 = vlaneseq
        %v7149 = vshrl.u32 %v7148, 7
        %v7150 = vsub.s32 %v7147, %v7149
        %v7151 = vrot.slane %v7143, %v7150
        %v7153 = vunpack.c.l.s4 1934713408
        %v7154 = vunpack.c.0.s8 %v7153
        %v7155 = vlaneseq
        %v7156 = vshrl.u32 %v7155, 7
        %v7157 = vsub.s32 %v7154, %v7156
        %v7158 = vrot.slane %v7144, %v7157
        %v7159 = vcombine.low %v7126, %v7142
        %v7160 = vcombine.high %v7126, %v7142
        %v7162 = vunpack.c.l.s4 1934713408
        %v7163 = vunpack.c.0.s8 %v7162
        %v7164 = vlaneseq
        %v7165 = vshrl.u32 %v7164, 7
        %v7166 = vsub.s32 %v7163, %v7165
        %v7167 = vrot.slane %v7159, %v7166
        %v7169 = vunpack.c.l.s4 1934713408
        %v7170 = vunpack.c.0.s8 %v7169
        %v7171 = vlaneseq
        %v7172 = vshrl.u32 %v7171, 7
        %v7173 = vsub.s32 %v7170, %v7172
        %v7174 = vrot.slane %v7160, %v7173
        %v7175 = vcombine.high %v7151, 0.0
        %v7176 = vcombine.high %v7158, 0.0
        %v7177 = vcombine.high %v7167, 0.0
        %v7178 = vcombine.high %v7174, 0.0
        %7180 = vrot.lane.b32.xlu0 %v7175, 16
        %v7181 = vpop.permute.xlu0 %7180
        %7184 = vrot.lane.b32.xlu0 %v7158, 32
        %v7185 = vpop.permute.xlu0 %7184
        %7188 = vrot.lane.b32.xlu0 %v7176, 48
        %v7189 = vpop.permute.xlu0 %7188
        %7192 = vrot.lane.b32.xlu0 %v7167, 64
        %v7193 = vpop.permute.xlu0 %7192
        %7196 = vrot.lane.b32.xlu0 %v7177, 80
        %v7197 = vpop.permute.xlu0 %7196
        %7200 = vrot.lane.b32.xlu0 %v7174, 96
        %v7201 = vpop.permute.xlu0 %7200
        %7204 = vrot.lane.b32.xlu0 %v7178, 112
        %v7205 = vpop.permute.xlu0 %7204
        %v7207 = vsel %vm454, %v7151, %v7181
        %v7208 = vsel %vm456, %v7207, %v7185
        %v7209 = vsel %vm458, %v7208, %v7189
        %v7210 = vsel %vm460, %v7209, %v7193
        %v7211 = vsel %vm462, %v7210, %v7197
        %v7212 = vsel %vm464, %v7211, %v7201
        %v7213 = vsel %vm466, %v7212, %v7205
        %v7216 = vrot.slane %v6432, 4
        %v7217 = vrot.slane %v1387, 4
        %v7222 = vrot.slane %v6317, 4
        %v7223 = vrot.slane %v6765, 4
        %v7228 = vrot.slane %v6662, 4
        %v7229 = vrot.slane %v6880, 4
        %v7234 = vrot.slane %v1394, 4
        %v7235 = vrot.slane %v7098, 4
        %v7238 = vsel %vm2364, %v6310, %v7216
        %v7239 = vsel %vm2364, %v6317, %v7217
        %v7240 = vsel %vm2364, %v6655, %v7222
        %v7241 = vsel %vm2364, %v6662, %v7223
        %v7242 = vsel %vm2364, %v1387, %v7228
        %v7243 = vsel %vm2364, %v1394, %v7229
        %v7244 = vsel %vm2364, %v6765, %v7234
        %v7245 = vsel %vm2364, %v6983, %v7235
        %v7246 = vld [vmem:[%s1 + $0x18] sm:$0xff]
        %v7247 = vld [vmem:[%s2 + $0x18] sm:$0xff]
        %7249 = vset.pattern.permute.xlu0 0
        %7250 = vperm.xlu0 %7249, %v7247
        %v7251 = vpop.permute.xlu0 %7250
        %v7254 = vsel %vm2380, %v7246, 0
        %v7256 = vsel %vm2364, %v6880, 0
        %v7259 = vsel %vm2364, %v7213, 0
        %7261 = vmatprep.subr.mxu0 0.0
        %7262 = vmatpush1.msra.mxu0 0.0
        %7263 = vmatprep.subr.mxu0 0.0
        %7264 = vmatpush1.msra.mxu0 0.0
        %7265 = vmatprep.subr.mxu0 0.0
        %7266 = vmatpush1.msra.mxu0 0.0
        %7267 = vmatprep.subr.mxu0 0.0
        %7268 = vmatpush1.msra.mxu0 0.0
        %7269 = vmatprep.subr.mxu0 0.0
        %7270 = vmatpush1.msra.mxu0 0.0
        %7271 = vmatprep.subr.mxu0 0.0
        %7272 = vmatpush1.msra.mxu0 0.0
        %7273 = vmatprep.subr.mxu0 0.0
        %7274 = vmatpush1.msra.mxu0 0.0
        %7275 = vmatprep.subr.mxu0 0.0
        %7276 = vmatpush1.msra.mxu0 0.0
        %7277 = vmatprep.subr.mxu0 0.0
        %7278 = vmatpush1.msra.mxu0 0.0
        %7279 = vmatprep.subr.mxu0 0.0
        %7280 = vmatpush1.msra.mxu0 0.0
        %7281 = vmatprep.subr.mxu0 0.0
        %7282 = vmatpush1.msra.mxu0 0.0
        %7283 = vmatprep.subr.mxu0 %v7259
        %7284 = vmatpush1.msra.mxu0 %v7256
        %7285 = vmatprep.subr.mxu0 %v7245
        %7286 = vmatpush1.msra.mxu0 %v7244
        %7287 = vmatprep.subr.mxu0 %v7243
        %7288 = vmatpush1.msra.mxu0 %v7242
        %7289 = vmatprep.subr.mxu0 %v7241
        %7290 = vmatpush1.msra.mxu0 %v7240
        %7291 = vmatprep.subr.mxu0 %v7239
        %7292 = vmatpush1.msra.mxu0 %v7238
        %7293 = vmatprep.subr.mxu0 0.0
        %7294 = vmatpush2.msra.mxu0 0.0
        %7295 = vmatprep.subr.mxu0 0.0
        %7296 = vmatpush2.msra.mxu0 0.0
        %7297 = vmatprep.subr.mxu0 0.0
        %7298 = vmatpush2.msra.mxu0 0.0
        %7299 = vmatprep.subr.mxu0 0.0
        %7300 = vmatpush2.msra.mxu0 0.0
        %7301 = vmatprep.subr.mxu0 0.0
        %7302 = vmatpush2.msra.mxu0 0.0
        %7303 = vmatprep.subr.mxu0 0.0
        %7304 = vmatpush2.msra.mxu0 0.0
        %7305 = vmatprep.subr.mxu0 0.0
        %7306 = vmatpush2.msra.mxu0 0.0
        %7307 = vmatprep.subr.mxu0 0.0
        %7308 = vmatpush2.msra.mxu0 0.0
        %7309 = vmatprep.subr.mxu0 0.0
        %7310 = vmatpush2.msra.mxu0 0.0
        %7311 = vmatprep.subr.mxu0 0.0
        %7312 = vmatpush2.msra.mxu0 0.0
        %7313 = vmatprep.subr.mxu0 0.0
        %7314 = vmatpush2.msra.mxu0 0.0
        %7315 = vmatprep.subr.mxu0 0.0
        %7316 = vmatpush2.msra.mxu0 0.0
        %7317 = vmatprep.subr.mxu0 0.0
        %7318 = vmatpush2.msra.mxu0 0.0
        %7319 = vmatprep.subr.mxu0 0.0
        %7320 = vmatpush2.msra.mxu0 0.0
        %7321 = vmatprep.subr.mxu0 0.0
        %7322 = vmatpush2.msra.mxu0 0.0
        %7323 = vmatprep.subr.mxu0 0.0
        %7324 = vmatpush2.msra.mxu0 0.0
        %7325 = vmatprep.mubr.f32.mxu0 0.0
        %7326 = vmatmul.mubr.f32.gmra.mxu0 %v7254
        %v7327 = vpop.f32.mrf.mxu0
        %v7328 = vadd.f32 %v7251, %v7327
        %v7329 = vpop.f32.mrf.mxu0
        %v7330 = vadd.f32 %v7251, %v7329
        %7331 = vdwg.mxu0
        %v7332 = vmax.f32 %v7328, 0.0
        %v7333 = vmax.f32 %v7330, 0.0
        %7334 = vst [vmem:[%s188 + $0x30] sm:$0xff] %v7332
        %7335 = vst [vmem:[%s188 + $0x38] sm:$0xff] %v7333
        %s7336 = sand.u32 %s96, 1
        %s7337 = scalar_lea.sflag [#allocation4], %s7336
        %s7338 = sand.u32 %s96, 1
        %s7339 = smul.addr %s7338, 64
        %s7340 = scalar_lea.vmem [#allocation5], %s7339
        // Predicated region
        $region37: #{tpu_custom_call.1} parent=31 // pred_check
          %p7341 = pneg %p106
        $region38: #{tpu_custom_call.1} parent=31 // pred_check_branch
          %7343 = sbr.rel (%p7341) target = $region40
        $region39: #{tpu_custom_call.1} parent=31 // pred_region
          %s7345 = ssub.s32 1024, 1024
          %7346 = vsyncadd %s7337, %s7345
          %s7347 = smul.addr %s20, 8
          %s7348 = smul.addr %s7347, 128
          %s7349 = scalar_lea.hbm %s3, %s7348
          %s7350 = sshll.u32 %s7340, 4
          %s7351 = int_to_ptr.vmem [resolvable:$true] %s7350
          %7356 = dma.vmem_to_hbm [thread:$0]  %s7351, 1024, %s7349, %s7337, 256, 256, 16
        $region40: #{tpu_custom_call.1} parent=31 // pred_fallthru
          _
      $region32: #{tpu_custom_call.1} parent=5 // pred_fallthru
        _
      %p7357 = scmp.le.s32.totalorder 2, %s15
      // Predicated region
      $region41: #{tpu_custom_call.1} parent=5 // pred_check
        %p7358 = pneg %p7357
      $region42: #{tpu_custom_call.1} parent=5 // pred_check_branch
        %7360 = sbr.rel (%p7358) target = $region44
      $region43: #{tpu_custom_call.1} parent=5 // pred_region
        %s7361 = ssub.s32 %s15, 2
        // Predicated region
        $region45: #{tpu_custom_call.1} parent=43 // pred_check
          %p7362 = pneg %p112
        $region46: #{tpu_custom_call.1} parent=43 // pred_check_branch
          %7364 = sbr.rel (%p7362) target = $region48
        $region47: #{tpu_custom_call.1} parent=43 // pred_region
          %s7365 = sand.u32 %s97, 1
          %s7366 = scalar_lea.sflag [#allocation4], %s7365
          %s7367 = sand.u32 %s97, 1
          %s7368 = smul.addr %s7367, 64
          %s7369 = scalar_lea.vmem [#allocation5], %s7368
          %7370 = dma.done %s7366, 1024
        $region48: #{tpu_custom_call.1} parent=43 // pred_fallthru
          _
      $region44: #{tpu_custom_call.1} parent=5 // pred_fallthru
        _
    $region6: #{tpu_custom_call.1} parent=1 // loop_footer
      %s19 = sadd.s32 1, %s15
    $region7: #{tpu_custom_call.1} parent=1 // loop_footer_branch
      %14 = sbr.rel target = $region3
    $region8: #{tpu_custom_call.1} parent=1 // loop_exit
      _
    %7371 = vsyncpa [#allocation3], 1
    %s7372 = scalar_lea.sflag [#allocation3], 1
    %7373 = vsyncpa %s7372, 1
    %7374 = vsyncpa [#allocation4], 1
    %s7375 = scalar_lea.sflag [#allocation4], 1
    %7376 = vsyncpa %s7375, 1

</llo_original>
